<compile_context>
chip_gen: v7x
topology: tpu7x:2x2x1
jax: 0.10.0
libtpu: 0.0.40
codegen_flags: <defaults>
</compile_context>

<pallas_src>
import math

import jax
import jax.numpy as jnp
from jax.experimental import pallas as pl
from jax.experimental.pallas import tpu as pltpu

HEADS = 8
EMBED = 64

# VMEM budgeting (bytes).
_SAFE_VMEM_BUDGET = 10 * 1024 * 1024    # fits every generation's default scoped VMEM
_RAISED_VMEM_BUDGET = 24 * 1024 * 1024  # working-set target when limit is raised
_RAISED_VMEM_LIMIT = 40 * 1024 * 1024   # still well under v7x's 64 MiB physical VMEM

_SINGLE_CORE_TAGS = ("lite", "v5e", "v6e", "v6")


def _self_attention_kernel(x_ref, wqkv_ref, wproj_ref, o_ref):
    # x_ref:    (BB, T, C)  block of batch elements
    # wqkv_ref: (C, 3C)     fused q/k/v weight, bf16, 1/sqrt(D) folded into q cols
    # wproj_ref:(C, C)      output projection weight (bf16)
    # o_ref:    (BB, T, C)
    BB, T, C = x_ref.shape
    H = HEADS
    D = C // H

    # (1) One fused QKV projection over all BB*T rows (fills the MXU M dim).
    x = x_ref[...].reshape(BB * T, C).astype(jnp.bfloat16)
    qkv = jnp.dot(x, wqkv_ref[...], preferred_element_type=jnp.float32)  # (BB*T, 3C) f32

    q = qkv[:, :C].astype(jnp.bfloat16)          # scale already folded into the weight
    k = qkv[:, C:2 * C].astype(jnp.bfloat16)
    v = qkv[:, 2 * C:].astype(jnp.bfloat16)

    # (2) Regroup to a fused (head, batch) leading axis g = h*BB + b using only
    #     static lane slices + leading-axis reshapes/concat (no 4-D transposes),
    #     then run attention as single batched einsums over g.
    def to_heads(a):  # (BB*T, C) -> (H*BB, T, D)
        return jnp.concatenate(
            [a[:, h * D:(h + 1) * D].reshape(BB, T, D) for h in range(H)], axis=0)

    qh = to_heads(q)
    kh = to_heads(k)
    vh = to_heads(v)

    s = jnp.einsum("gtd,gsd->gts", qh, kh,
                   preferred_element_type=jnp.float32)                   # (H*BB, T, T) f32
    m = jnp.max(s, axis=-1, keepdims=True)
    p = jnp.exp(s - m)                                                    # f32 (v5e-safe)
    l = jnp.sum(p, axis=-1, keepdims=True)                                # (H*BB, T, 1)
    y = jnp.einsum("gts,gsd->gtd", p.astype(jnp.bfloat16), vh,
                   preferred_element_type=jnp.float32)                    # (H*BB, T, D) f32
    y = y * (1.0 / l)            # exact softmax normalization on the small (G,T,1) tensor

    # (3) Merge heads back to (BB*T, C) (one 8-piece lane concat) and run a
    #     single output projection for the whole block.
    y = jnp.concatenate(
        [y[h * BB:(h + 1) * BB].reshape(BB * T, D) for h in range(H)],
        axis=-1).astype(jnp.bfloat16)                                     # (BB*T, C)
    out = jnp.dot(y, wproj_ref[...], preferred_element_type=jnp.float32)  # (BB*T, C)
    o_ref[...] = out.reshape(BB, T, C).astype(o_ref.dtype)


def _tensorcores_per_chip():
    """Perf heuristic only: dual-TensorCore parts (v4/v5p/v7x) want an even
    'parallel' grid; single-core parts (v5e/v6e) prefer one big step."""
    try:
        kind = jax.devices()[0].device_kind.lower()
    except Exception:  # pragma: no cover - detection failure is non-fatal
        return 2
    if any(tag in kind for tag in _SINGLE_CORE_TAGS):
        return 1
    return 2


def _per_batch_vmem_bytes(T, C):
    """Rough in-kernel working set per batch element (lane padding included)."""
    H = HEADS
    s_bytes = H * T * T * 4            # scores (f32)
    p_bytes = H * T * T * (4 + 2)      # probs f32 + bf16 copy for the PV matmul
    qkv_bytes = T * 3 * C * (4 + 2)    # fused projection f32 + bf16 q/k/v
    head_pad = 4 * H * T * 128 * 4     # (T, D) head slabs padded to 128 lanes
    return s_bytes + p_bytes + qkv_bytes + head_pad


def _pick_block_b(B, per_b_bytes, n_cores):
    cap = max(1, _RAISED_VMEM_BUDGET // per_b_bytes)
    if n_cores >= 2:
        # Two balanced "parallel" steps keep both TensorCores equally busy.
        if B % 2 == 0 and B // 2 <= cap:
            return B // 2
    elif B <= cap:
        return B  # single-core part: one grid step, zero per-step overhead
    for d in range(min(B, cap), 0, -1):
        if B % d == 0:
            return d
    return 1


def self_attention_pallas(x, w_qkv, w_proj, *, block_b=None):
    """x: (B, T, C); w_qkv: (C, 3C); w_proj: (C, C) — (in, out) layout."""
    B, T, C = x.shape
    assert C == EMBED and C % HEADS == 0
    assert T % 8 == 0, "sequence length must be a multiple of 8 (sublane tiling)"
    D = C // HEADS

    n_cores = _tensorcores_per_chip()
    per_b = _per_batch_vmem_bytes(T, C)
    if block_b is None:
        block_b = _pick_block_b(B, per_b, n_cores)
    assert B % block_b == 0
    grid = (B // block_b,)

    # One-time weight prep: fold 1/sqrt(D) into the q columns, cast to bf16.
    scale = 1.0 / math.sqrt(D)
    col_scale = jnp.concatenate(
        [jnp.full((C,), scale, dtype=w_qkv.dtype),
         jnp.ones((2 * C,), dtype=w_qkv.dtype)])
    w_qkv_p = (w_qkv * col_scale[None, :]).astype(jnp.bfloat16)
    w_proj_p = w_proj.astype(jnp.bfloat16)

    # Raise scoped VMEM only when the chosen block actually needs it.
    io_bytes = 2 * 2 * block_b * T * C * x.dtype.itemsize  # double-buffered x/out blocks
    need = block_b * per_b + io_bytes
    compiler_kwargs = dict(dimension_semantics=("parallel",))
    if need > _SAFE_VMEM_BUDGET:
        compiler_kwargs["vmem_limit_bytes"] = _RAISED_VMEM_LIMIT

    flops_per_batch = (2 * T * C * 3 * C            # qkv projection
                       + 2 * 2 * HEADS * T * T * D  # QK^T + PV
                       + 2 * T * C * C)             # output projection
    cost = pl.CostEstimate(
        flops=int(B * flops_per_batch),
        transcendentals=int(B * HEADS * T * T),
        bytes_accessed=int(2 * B * T * C * x.dtype.itemsize
                           + w_qkv.size * 2 + w_proj.size * 2))

    return pl.pallas_call(
        _self_attention_kernel,
        out_shape=jax.ShapeDtypeStruct((B, T, C), x.dtype),
        grid_spec=pltpu.PrefetchScalarGridSpec(
            num_scalar_prefetch=0,
            grid=grid,
            in_specs=[
                pl.BlockSpec((block_b, T, C), lambda b: (b, 0, 0)),
                pl.BlockSpec((C, 3 * C), lambda b: (0, 0)),
                pl.BlockSpec((C, C), lambda b: (0, 0)),
            ],
            out_specs=pl.BlockSpec((block_b, T, C), lambda b: (b, 0, 0)),
        ),
        compiler_params=pltpu.CompilerParams(**compiler_kwargs),
        cost_estimate=cost,
    )(x, w_qkv_p, w_proj_p)


def self_attention_ref(x, w_qkv, w_proj):
    """Pure-JAX f32 reference mirroring the PyTorch forward (bias=False path)."""
    B, T, C = x.shape
    H, D = HEADS, C // HEADS
    qkv = jnp.einsum("btc,cd->btd", x, w_qkv)
    q, k, v = jnp.split(qkv, 3, axis=-1)
    q = q.reshape(B, T, H, D).transpose(0, 2, 1, 3)
    k = k.reshape(B, T, H, D).transpose(0, 2, 1, 3)
    v = v.reshape(B, T, H, D).transpose(0, 2, 1, 3)
    att = jnp.einsum("bhtd,bhsd->bhts", q, k) * (1.0 / math.sqrt(D))
    att = jax.nn.softmax(att, axis=-1)
    y = jnp.einsum("bhts,bhsd->bhtd", att, v)
    y = y.transpose(0, 2, 1, 3).reshape(B, T, C)
    return jnp.einsum("btc,cd->btd", y, w_proj)


if __name__ == "__main__":
    B, T, C = 2, 128, EMBED

    key = jax.random.PRNGKey(0)
    kx, kqkv, kproj = jax.random.split(key, 3)
    x = jax.random.normal(kx, (B, T, C), dtype=jnp.float32)
    # Deterministic synthetic weights (nn.Linear(embed, 3*embed, bias=False) and
    # nn.Linear(embed, embed, bias=False)), stored as (in, out).
    w_qkv = jax.random.normal(kqkv, (C, 3 * C), dtype=jnp.float32) * 0.02
    w_proj = jax.random.normal(kproj, (C, C), dtype=jnp.float32) * 0.02

    out = self_attention_pallas(x, w_qkv, w_proj)
    out = jax.block_until_ready(out)

    ref = self_attention_ref(x, w_qkv, w_proj)
    assert out.shape == (B, T, C)
    # bf16 MXU operands (f32 accumulation) -> tolerance loosened vs. pure-f32.
    assert jnp.allclose(out, ref, atol=1e-3, rtol=1e-2), float(
        jnp.max(jnp.abs(out - ref))
    )

    print("KERNEL_OK")
</pallas_src>

<mosaic_0001>
module attributes {stable_mosaic.version = 11 : i64} {
  func.func @_self_attention_kernel(%arg0: i32, %arg1: memref<1x128x64xf32, #tpu.memory_space<vmem>>, %arg2: memref<64x192xbf16, #tpu.memory_space<vmem>>, %arg3: memref<64x64xbf16, #tpu.memory_space<vmem>>, %arg4: memref<1x128x64xf32, #tpu.memory_space<vmem>>) attributes {dimension_semantics = [#tpu.dimension_semantics<parallel>], iteration_bounds = array<i64: 2>, scalar_prefetch = 0 : i64, scratch_operands = 0 : i64, tpu.core_type = #tpu.core_type<tc>, window_params = [{transform_indices = @transform_0, window_bounds = array<i64: 1, 128, 64>}, {pipeline_mode = #tpu.pipeline_mode<synchronous>, transform_indices = @transform_1, window_bounds = array<i64: 64, 192>}, {pipeline_mode = #tpu.pipeline_mode<synchronous>, transform_indices = @transform_2, window_bounds = array<i64: 64, 64>}, {transform_indices = @transform_3, window_bounds = array<i64: 1, 128, 64>}]} {
    %c0 = arith.constant 0 : index
    %c0_0 = arith.constant 0 : index
    %c0_1 = arith.constant 0 : index
    %0 = vector.load %arg1[%c0, %c0_0, %c0_1] : memref<1x128x64xf32, #tpu.memory_space<vmem>>, vector<1x128x64xf32>
    %1 = vector.shape_cast %0 : vector<1x128x64xf32> to vector<128x64xf32>
    %2 = arith.truncf %1 : vector<128x64xf32> to vector<128x64xbf16>
    %c0_2 = arith.constant 0 : index
    %c0_3 = arith.constant 0 : index
    %3 = vector.load %arg2[%c0_2, %c0_3] : memref<64x192xbf16, #tpu.memory_space<vmem>>, vector<64x192xbf16>
    %cst = arith.constant dense<0.000000e+00> : vector<128x192xf32>
    %4 = tpu.matmul %2, %3, %cst {dimension_numbers = #tpu.dot_dimension_numbers<[1], [0], [0], [1], [0, 0, 1, 1], [], []>} : vector<128x64xbf16>, vector<64x192xbf16>, vector<128x192xf32> -> vector<128x192xf32>
    %5 = vector.extract_strided_slice %4 {offsets = [0, 0], sizes = [128, 64], strides = [1, 1]} : vector<128x192xf32> to vector<128x64xf32>
    %6 = arith.truncf %5 : vector<128x64xf32> to vector<128x64xbf16>
    %7 = vector.extract_strided_slice %4 {offsets = [0, 64], sizes = [128, 64], strides = [1, 1]} : vector<128x192xf32> to vector<128x64xf32>
    %8 = arith.truncf %7 : vector<128x64xf32> to vector<128x64xbf16>
    %9 = vector.extract_strided_slice %4 {offsets = [0, 128], sizes = [128, 64], strides = [1, 1]} : vector<128x192xf32> to vector<128x64xf32>
    %10 = arith.truncf %9 : vector<128x64xf32> to vector<128x64xbf16>
    %11 = vector.extract_strided_slice %6 {offsets = [0, 0], sizes = [128, 8], strides = [1, 1]} : vector<128x64xbf16> to vector<128x8xbf16>
    %12 = vector.shape_cast %11 : vector<128x8xbf16> to vector<1x128x8xbf16>
    %13 = vector.extract_strided_slice %6 {offsets = [0, 8], sizes = [128, 8], strides = [1, 1]} : vector<128x64xbf16> to vector<128x8xbf16>
    %14 = vector.shape_cast %13 : vector<128x8xbf16> to vector<1x128x8xbf16>
    %15 = vector.extract_strided_slice %6 {offsets = [0, 16], sizes = [128, 8], strides = [1, 1]} : vector<128x64xbf16> to vector<128x8xbf16>
    %16 = vector.shape_cast %15 : vector<128x8xbf16> to vector<1x128x8xbf16>
    %17 = vector.extract_strided_slice %6 {offsets = [0, 24], sizes = [128, 8], strides = [1, 1]} : vector<128x64xbf16> to vector<128x8xbf16>
    %18 = vector.shape_cast %17 : vector<128x8xbf16> to vector<1x128x8xbf16>
    %19 = vector.extract_strided_slice %6 {offsets = [0, 32], sizes = [128, 8], strides = [1, 1]} : vector<128x64xbf16> to vector<128x8xbf16>
    %20 = vector.shape_cast %19 : vector<128x8xbf16> to vector<1x128x8xbf16>
    %21 = vector.extract_strided_slice %6 {offsets = [0, 40], sizes = [128, 8], strides = [1, 1]} : vector<128x64xbf16> to vector<128x8xbf16>
    %22 = vector.shape_cast %21 : vector<128x8xbf16> to vector<1x128x8xbf16>
    %23 = vector.extract_strided_slice %6 {offsets = [0, 48], sizes = [128, 8], strides = [1, 1]} : vector<128x64xbf16> to vector<128x8xbf16>
    %24 = vector.shape_cast %23 : vector<128x8xbf16> to vector<1x128x8xbf16>
    %25 = vector.extract_strided_slice %6 {offsets = [0, 56], sizes = [128, 8], strides = [1, 1]} : vector<128x64xbf16> to vector<128x8xbf16>
    %26 = vector.shape_cast %25 : vector<128x8xbf16> to vector<1x128x8xbf16>
    %27 = tpu.concatenate %12, %14, %16, %18, %20, %22, %24, %26 in 0 : vector<1x128x8xbf16>, vector<1x128x8xbf16>, vector<1x128x8xbf16>, vector<1x128x8xbf16>, vector<1x128x8xbf16>, vector<1x128x8xbf16>, vector<1x128x8xbf16>, vector<1x128x8xbf16> -> vector<8x128x8xbf16>
    %28 = vector.extract_strided_slice %8 {offsets = [0, 0], sizes = [128, 8], strides = [1, 1]} : vector<128x64xbf16> to vector<128x8xbf16>
    %29 = vector.shape_cast %28 : vector<128x8xbf16> to vector<1x128x8xbf16>
    %30 = vector.extract_strided_slice %8 {offsets = [0, 8], sizes = [128, 8], strides = [1, 1]} : vector<128x64xbf16> to vector<128x8xbf16>
    %31 = vector.shape_cast %30 : vector<128x8xbf16> to vector<1x128x8xbf16>
    %32 = vector.extract_strided_slice %8 {offsets = [0, 16], sizes = [128, 8], strides = [1, 1]} : vector<128x64xbf16> to vector<128x8xbf16>
    %33 = vector.shape_cast %32 : vector<128x8xbf16> to vector<1x128x8xbf16>
    %34 = vector.extract_strided_slice %8 {offsets = [0, 24], sizes = [128, 8], strides = [1, 1]} : vector<128x64xbf16> to vector<128x8xbf16>
    %35 = vector.shape_cast %34 : vector<128x8xbf16> to vector<1x128x8xbf16>
    %36 = vector.extract_strided_slice %8 {offsets = [0, 32], sizes = [128, 8], strides = [1, 1]} : vector<128x64xbf16> to vector<128x8xbf16>
    %37 = vector.shape_cast %36 : vector<128x8xbf16> to vector<1x128x8xbf16>
    %38 = vector.extract_strided_slice %8 {offsets = [0, 40], sizes = [128, 8], strides = [1, 1]} : vector<128x64xbf16> to vector<128x8xbf16>
    %39 = vector.shape_cast %38 : vector<128x8xbf16> to vector<1x128x8xbf16>
    %40 = vector.extract_strided_slice %8 {offsets = [0, 48], sizes = [128, 8], strides = [1, 1]} : vector<128x64xbf16> to vector<128x8xbf16>
    %41 = vector.shape_cast %40 : vector<128x8xbf16> to vector<1x128x8xbf16>
    %42 = vector.extract_strided_slice %8 {offsets = [0, 56], sizes = [128, 8], strides = [1, 1]} : vector<128x64xbf16> to vector<128x8xbf16>
    %43 = vector.shape_cast %42 : vector<128x8xbf16> to vector<1x128x8xbf16>
    %44 = tpu.concatenate %29, %31, %33, %35, %37, %39, %41, %43 in 0 : vector<1x128x8xbf16>, vector<1x128x8xbf16>, vector<1x128x8xbf16>, vector<1x128x8xbf16>, vector<1x128x8xbf16>, vector<1x128x8xbf16>, vector<1x128x8xbf16>, vector<1x128x8xbf16> -> vector<8x128x8xbf16>
    %45 = vector.extract_strided_slice %10 {offsets = [0, 0], sizes = [128, 8], strides = [1, 1]} : vector<128x64xbf16> to vector<128x8xbf16>
    %46 = vector.shape_cast %45 : vector<128x8xbf16> to vector<1x128x8xbf16>
    %47 = vector.extract_strided_slice %10 {offsets = [0, 8], sizes = [128, 8], strides = [1, 1]} : vector<128x64xbf16> to vector<128x8xbf16>
    %48 = vector.shape_cast %47 : vector<128x8xbf16> to vector<1x128x8xbf16>
    %49 = vector.extract_strided_slice %10 {offsets = [0, 16], sizes = [128, 8], strides = [1, 1]} : vector<128x64xbf16> to vector<128x8xbf16>
    %50 = vector.shape_cast %49 : vector<128x8xbf16> to vector<1x128x8xbf16>
    %51 = vector.extract_strided_slice %10 {offsets = [0, 24], sizes = [128, 8], strides = [1, 1]} : vector<128x64xbf16> to vector<128x8xbf16>
    %52 = vector.shape_cast %51 : vector<128x8xbf16> to vector<1x128x8xbf16>
    %53 = vector.extract_strided_slice %10 {offsets = [0, 32], sizes = [128, 8], strides = [1, 1]} : vector<128x64xbf16> to vector<128x8xbf16>
    %54 = vector.shape_cast %53 : vector<128x8xbf16> to vector<1x128x8xbf16>
    %55 = vector.extract_strided_slice %10 {offsets = [0, 40], sizes = [128, 8], strides = [1, 1]} : vector<128x64xbf16> to vector<128x8xbf16>
    %56 = vector.shape_cast %55 : vector<128x8xbf16> to vector<1x128x8xbf16>
    %57 = vector.extract_strided_slice %10 {offsets = [0, 48], sizes = [128, 8], strides = [1, 1]} : vector<128x64xbf16> to vector<128x8xbf16>
    %58 = vector.shape_cast %57 : vector<128x8xbf16> to vector<1x128x8xbf16>
    %59 = vector.extract_strided_slice %10 {offsets = [0, 56], sizes = [128, 8], strides = [1, 1]} : vector<128x64xbf16> to vector<128x8xbf16>
    %60 = vector.shape_cast %59 : vector<128x8xbf16> to vector<1x128x8xbf16>
    %61 = tpu.concatenate %46, %48, %50, %52, %54, %56, %58, %60 in 0 : vector<1x128x8xbf16>, vector<1x128x8xbf16>, vector<1x128x8xbf16>, vector<1x128x8xbf16>, vector<1x128x8xbf16>, vector<1x128x8xbf16>, vector<1x128x8xbf16>, vector<1x128x8xbf16> -> vector<8x128x8xbf16>
    "tpu.trace_start"() <{level = 10 : i32, message = "gtd,gsd->gts"}> : () -> ()
    %cst_4 = arith.constant dense<0.000000e+00> : vector<8x128x128xf32>
    %62 = tpu.matmul %27, %44, %cst_4 {dimension_numbers = #tpu.dot_dimension_numbers<[2], [2], [1], [1], [0, 0, 0, 1, 1, 1], [0], [0]>} : vector<8x128x8xbf16>, vector<8x128x8xbf16>, vector<8x128x128xf32> -> vector<8x128x128xf32>
    "tpu.trace_stop"() : () -> ()
    %cst_5 = arith.constant dense<0xFF800000> : vector<8x128xf32>
    %63 = vector.multi_reduction <maximumf>, %62, %cst_5 [2] : vector<8x128x128xf32> to vector<8x128xf32>
    %64 = vector.shape_cast %63 : vector<8x128xf32> to vector<8x128x1xf32>
    %65 = vector.broadcast %64 : vector<8x128x1xf32> to vector<8x128x128xf32>
    %66 = arith.subf %62, %65 : vector<8x128x128xf32>
    %67 = math.exp %66 : vector<8x128x128xf32>
    %cst_6 = arith.constant dense<0.000000e+00> : vector<8x128xf32>
    %68 = vector.multi_reduction <add>, %67, %cst_6 [2] : vector<8x128x128xf32> to vector<8x128xf32>
    %69 = vector.shape_cast %68 : vector<8x128xf32> to vector<8x128x1xf32>
    %70 = arith.truncf %67 : vector<8x128x128xf32> to vector<8x128x128xbf16>
    "tpu.trace_start"() <{level = 10 : i32, message = "gts,gsd->gtd"}> : () -> ()
    %cst_7 = arith.constant dense<0.000000e+00> : vector<8x128x8xf32>
    %71 = tpu.matmul %70, %61, %cst_7 {dimension_numbers = #tpu.dot_dimension_numbers<[2], [1], [1], [2], [0, 0, 0, 1, 1, 2], [0], [0]>} : vector<8x128x128xbf16>, vector<8x128x8xbf16>, vector<8x128x8xf32> -> vector<8x128x8xf32>
    "tpu.trace_stop"() : () -> ()
    %cst_8 = arith.constant 1.000000e+00 : f32
    %72 = vector.broadcast %cst_8 : f32 to vector<8x128x1xf32>
    %73 = arith.divf %72, %69 : vector<8x128x1xf32>
    %74 = vector.broadcast %73 : vector<8x128x1xf32> to vector<8x128x8xf32>
    %75 = arith.mulf %71, %74 : vector<8x128x8xf32>
    %76 = vector.extract_strided_slice %75 {offsets = [0, 0, 0], sizes = [1, 128, 8], strides = [1, 1, 1]} : vector<8x128x8xf32> to vector<1x128x8xf32>
    %77 = vector.shape_cast %76 : vector<1x128x8xf32> to vector<128x8xf32>
    %78 = vector.extract_strided_slice %75 {offsets = [1, 0, 0], sizes = [1, 128, 8], strides = [1, 1, 1]} : vector<8x128x8xf32> to vector<1x128x8xf32>
    %79 = vector.shape_cast %78 : vector<1x128x8xf32> to vector<128x8xf32>
    %80 = vector.extract_strided_slice %75 {offsets = [2, 0, 0], sizes = [1, 128, 8], strides = [1, 1, 1]} : vector<8x128x8xf32> to vector<1x128x8xf32>
    %81 = vector.shape_cast %80 : vector<1x128x8xf32> to vector<128x8xf32>
    %82 = vector.extract_strided_slice %75 {offsets = [3, 0, 0], sizes = [1, 128, 8], strides = [1, 1, 1]} : vector<8x128x8xf32> to vector<1x128x8xf32>
    %83 = vector.shape_cast %82 : vector<1x128x8xf32> to vector<128x8xf32>
    %84 = vector.extract_strided_slice %75 {offsets = [4, 0, 0], sizes = [1, 128, 8], strides = [1, 1, 1]} : vector<8x128x8xf32> to vector<1x128x8xf32>
    %85 = vector.shape_cast %84 : vector<1x128x8xf32> to vector<128x8xf32>
    %86 = vector.extract_strided_slice %75 {offsets = [5, 0, 0], sizes = [1, 128, 8], strides = [1, 1, 1]} : vector<8x128x8xf32> to vector<1x128x8xf32>
    %87 = vector.shape_cast %86 : vector<1x128x8xf32> to vector<128x8xf32>
    %88 = vector.extract_strided_slice %75 {offsets = [6, 0, 0], sizes = [1, 128, 8], strides = [1, 1, 1]} : vector<8x128x8xf32> to vector<1x128x8xf32>
    %89 = vector.shape_cast %88 : vector<1x128x8xf32> to vector<128x8xf32>
    %90 = vector.extract_strided_slice %75 {offsets = [7, 0, 0], sizes = [1, 128, 8], strides = [1, 1, 1]} : vector<8x128x8xf32> to vector<1x128x8xf32>
    %91 = vector.shape_cast %90 : vector<1x128x8xf32> to vector<128x8xf32>
    %92 = tpu.concatenate %77, %79, %81, %83, %85, %87, %89, %91 in 1 : vector<128x8xf32>, vector<128x8xf32>, vector<128x8xf32>, vector<128x8xf32>, vector<128x8xf32>, vector<128x8xf32>, vector<128x8xf32>, vector<128x8xf32> -> vector<128x64xf32>
    %93 = arith.truncf %92 : vector<128x64xf32> to vector<128x64xbf16>
    %c0_9 = arith.constant 0 : index
    %c0_10 = arith.constant 0 : index
    %94 = vector.load %arg3[%c0_9, %c0_10] : memref<64x64xbf16, #tpu.memory_space<vmem>>, vector<64x64xbf16>
    %cst_11 = arith.constant dense<0.000000e+00> : vector<128x64xf32>
    %95 = tpu.matmul %93, %94, %cst_11 {dimension_numbers = #tpu.dot_dimension_numbers<[1], [0], [0], [1], [0, 0, 1, 1], [], []>} : vector<128x64xbf16>, vector<64x64xbf16>, vector<128x64xf32> -> vector<128x64xf32>
    %96 = vector.shape_cast %95 : vector<128x64xf32> to vector<1x128x64xf32>
    %c0_12 = arith.constant 0 : index
    %c0_13 = arith.constant 0 : index
    %c0_14 = arith.constant 0 : index
    %97 = vector.load %arg4[%c0_12, %c0_13, %c0_14] : memref<1x128x64xf32, #tpu.memory_space<vmem>>, vector<1x128x64xf32>
    tpu.vector_store %arg4[%c0_12, %c0_13, %c0_14], %96 {strides = array<i32>} : memref<1x128x64xf32, #tpu.memory_space<vmem>>, vector<1x128x64xf32>,
    return
  }
  func.func @transform_0(%arg0: i32) -> (i32, i32, i32) {
    %c0_i32 = arith.constant 0 : i32
    %c0_i32_0 = arith.constant 0 : i32
    %c0_i32_1 = arith.constant 0 : i32
    return %arg0, %c0_i32, %c0_i32_0 : i32, i32, i32
  }
  func.func @transform_1(%arg0: i32) -> (i32, i32) {
    %c0_i32 = arith.constant 0 : i32
    %c0_i32_0 = arith.constant 0 : i32
    %c0_i32_1 = arith.constant 0 : i32
    return %c0_i32, %c0_i32_0 : i32, i32
  }
  func.func @transform_2(%arg0: i32) -> (i32, i32) {
    %c0_i32 = arith.constant 0 : i32
    %c0_i32_0 = arith.constant 0 : i32
    %c0_i32_1 = arith.constant 0 : i32
    return %c0_i32, %c0_i32_0 : i32, i32
  }
  func.func @transform_3(%arg0: i32) -> (i32, i32, i32) {
    %c0_i32 = arith.constant 0 : i32
    %c0_i32_0 = arith.constant 0 : i32
    %c0_i32_1 = arith.constant 0 : i32
    return %arg0, %c0_i32, %c0_i32_0 : i32, i32, i32
  }
}

</mosaic_0001>

<llo_original>
// kernel: tpu_custom_call.1
$region0: #{tpu_custom_call.1}
  #allocation0 [shape = 'u32[]', space=smem, size = 0x4, offset = 0x4, fixed_abs, tag = 'smem constant byte address 0x4 - core index']
  #allocation1 [shape = 'u32[144,128]{1,0:T(1,128)}', space=vmem, size = 0x12000, scoped, tag = 'internal scratch']
  %s0 = inlined_call_operand.vmem [shape: f32[2,128,64], index: 0, kind: input, shape index: {}]
  %s1 = inlined_call_operand.vmem [shape: bf16[64,192], index: 1, kind: input, shape index: {}]
  %s2 = inlined_call_operand.vmem [shape: bf16[64,64], index: 2, kind: input, shape index: {}]
  %s3 = inlined_call_operand.vmem [shape: f32[2,128,64], index: 3, kind: output, shape index: {}]
  %s4 = sld [smem:[#allocation0]]
  $region45: #{tpu_custom_call.1} parent=0
    _
  %s6 = ssub.s32 1, %s4
  %s7 = scalar_select 0, %s6, %s4
  loop: start=0, step=1, limit=4
  $region2: #{tpu_custom_call.1} parent=0 // loop_pre_header
    _
  $region3: #{tpu_custom_call.1} parent=0 // loop_header
    %s9 = sphi 0, %s13
    %p10 = scmp.ge.s32.totalorder %s9, 4
    %s19 = sphi 0, %s21
    %s22 = sphi 0, %s19
    %s23 = sphi 0, %s22
    %s39 = sphi 0, %s23
    %s43 = sphi 0, %s43
    %s45 = sphi 0, %s43
    %s46 = sphi 0, %s45
    %s60 = sphi 0, %s46
    %s64 = sphi 0, %s64
    %s66 = sphi 0, %s64
    %s67 = sphi 0, %s66
    %s81 = sphi 0, %s67
    %s87 = sphi 0, %s89
    %s90 = sphi 0, %s87
    %s91 = sphi 0, %s90
    %s107 = sphi 0, %s91
  $region4: #{tpu_custom_call.1} parent=0 // loop_header_branch
    %12 = sbr.rel (%p10) target = $region8
  $region5: #{tpu_custom_call.1} parent=0 // loop_body
    %s14 = ssub.s32 %s9, 1
    %s15 = ssub.s32 %s9, 2
    %s16 = sadd.s32 %s9, 1
    %s17 = ssub.s32 %s9, %s16
    %p18 = scmp.eq.s32.totalorder %s17, 0
    %s20 = sadd.s32 %s19, 1
    %s21 = scalar_select %p18, %s19, %s20
    %p24 = pneg %p18
    %p25 = scmp.eq.s32.totalorder %s9, 1
    %p26 = por %p24, %p25
    %p27 = scmp.ne.s32.totalorder %s19, %s22
    %p28 = scmp.eq.s32.totalorder %s9, 0
    %p29 = por %p27, %p28
    %p30 = scmp.ne.s32.totalorder %s19, %s22
    %p31 = scmp.eq.s32.totalorder %s14, 1
    %p32 = por %p30, %p31
    %p33 = scmp.ne.s32.totalorder %s22, %s23
    %p34 = scmp.eq.s32.totalorder %s14, 0
    %p35 = por %p33, %p34
    %p36 = scmp.ne.s32.totalorder %s22, %s23
    %p37 = scmp.eq.s32.totalorder %s15, 1
    %p38 = por %p36, %p37
    %p40 = scmp.ne.s32.totalorder %s23, %s39
    %p41 = scmp.eq.s32.totalorder %s15, 0
    %p42 = por %p40, %p41
    %s44 = sadd.s32 %s43, 1
    %p47 = scmp.eq.s32.totalorder %s9, 1
    %p48 = scmp.ne.s32.totalorder %s43, %s45
    %p49 = scmp.eq.s32.totalorder %s9, 0
    %p50 = por %p48, %p49
    %p51 = scmp.ne.s32.totalorder %s43, %s45
    %p52 = scmp.eq.s32.totalorder %s14, 1
    %p53 = por %p51, %p52
    %p54 = scmp.ne.s32.totalorder %s45, %s46
    %p55 = scmp.eq.s32.totalorder %s14, 0
    %p56 = por %p54, %p55
    %p57 = scmp.ne.s32.totalorder %s45, %s46
    %p58 = scmp.eq.s32.totalorder %s15, 1
    %p59 = por %p57, %p58
    %p61 = scmp.ne.s32.totalorder %s46, %s60
    %p62 = scmp.eq.s32.totalorder %s15, 0
    %p63 = por %p61, %p62
    %s65 = sadd.s32 %s64, 1
    %p68 = scmp.eq.s32.totalorder %s9, 1
    %p69 = scmp.ne.s32.totalorder %s64, %s66
    %p70 = scmp.eq.s32.totalorder %s9, 0
    %p71 = por %p69, %p70
    %p72 = scmp.ne.s32.totalorder %s64, %s66
    %p73 = scmp.eq.s32.totalorder %s14, 1
    %p74 = por %p72, %p73
    %p75 = scmp.ne.s32.totalorder %s66, %s67
    %p76 = scmp.eq.s32.totalorder %s14, 0
    %p77 = por %p75, %p76
    %p78 = scmp.ne.s32.totalorder %s66, %s67
    %p79 = scmp.eq.s32.totalorder %s15, 1
    %p80 = por %p78, %p79
    %p82 = scmp.ne.s32.totalorder %s67, %s81
    %p83 = scmp.eq.s32.totalorder %s15, 0
    %p84 = por %p82, %p83
    %s85 = ssub.s32 %s9, %s16
    %p86 = scmp.eq.s32.totalorder %s85, 0
    %s88 = sadd.s32 %s87, 1
    %s89 = scalar_select %p86, %s87, %s88
    %p92 = pneg %p86
    %p93 = scmp.eq.s32.totalorder %s9, 1
    %p94 = por %p92, %p93
    %p95 = scmp.ne.s32.totalorder %s87, %s90
    %p96 = scmp.eq.s32.totalorder %s9, 0
    %p97 = por %p95, %p96
    %p98 = scmp.ne.s32.totalorder %s87, %s90
    %p99 = scmp.eq.s32.totalorder %s14, 1
    %p100 = por %p98, %p99
    %p101 = scmp.ne.s32.totalorder %s90, %s91
    %p102 = scmp.eq.s32.totalorder %s14, 0
    %p103 = por %p101, %p102
    %p104 = scmp.ne.s32.totalorder %s90, %s91
    %p105 = scmp.eq.s32.totalorder %s15, 1
    %p106 = por %p104, %p105
    %p108 = scmp.ne.s32.totalorder %s91, %s107
    %p109 = scmp.eq.s32.totalorder %s15, 0
    %p110 = por %p108, %p109
    %p111 = scmp.le.s32.totalorder 1, %s9
    %p112 = scmp.lt.s32.totalorder %s9, 3
    %p113 = pnand %p111, %p112
    %p114 = pneg %p113
    // Predicated region
    $region9: #{tpu_custom_call.1} parent=5 // pred_check
      _
    $region10: #{tpu_custom_call.1} parent=5 // pred_check_branch
      %116 = sbr.rel (%p113) target = $region12
    $region11: #{tpu_custom_call.1} parent=5 // pred_region
      %s117 = ssub.s32 %s9, 1
      // Predicated region
      $region13: #{tpu_custom_call.1} parent=11 // pred_check
        %p118 = pneg %p56
      $region14: #{tpu_custom_call.1} parent=11 // pred_check_branch
        %120 = sbr.rel (%p118) target = $region16
      $region15: #{tpu_custom_call.1} parent=11 // pred_region
        _
      $region16: #{tpu_custom_call.1} parent=11 // pred_fallthru
        _
      // Predicated region
      $region17: #{tpu_custom_call.1} parent=11 // pred_check
        %p121 = pneg %p77
      $region18: #{tpu_custom_call.1} parent=11 // pred_check_branch
        %123 = sbr.rel (%p121) target = $region20
      $region19: #{tpu_custom_call.1} parent=11 // pred_region
        _
      $region20: #{tpu_custom_call.1} parent=11 // pred_fallthru
        _
    $region12: #{tpu_custom_call.1} parent=5 // pred_fallthru
      _
    %p124 = scmp.lt.s32.totalorder %s9, 2
    // Predicated region
    $region21: #{tpu_custom_call.1} parent=5 // pred_check
      %p125 = pneg %p124
    $region22: #{tpu_custom_call.1} parent=5 // pred_check_branch
      %127 = sbr.rel (%p125) target = $region24
    $region23: #{tpu_custom_call.1} parent=5 // pred_region
      // Predicated region
      $region25: #{tpu_custom_call.1} parent=23 // pred_check
        %p128 = pneg %p29
      $region26: #{tpu_custom_call.1} parent=23 // pred_check_branch
        %130 = sbr.rel (%p128) target = $region28
      $region27: #{tpu_custom_call.1} parent=23 // pred_region
        %p131 = scmp.lt.s32.totalorder %s9, 1
        %s132 = scalar_select %p131, %s9, 1
        %s133 = smul.addr %s132, 16
        %s134 = smul.addr %s133, 8
        %s135 = scalar_lea.vmem %s0, %s134
      $region28: #{tpu_custom_call.1} parent=23 // pred_fallthru
        _
    $region24: #{tpu_custom_call.1} parent=5 // pred_fallthru
      _
    %p136 = scmp.le.s32.totalorder 1, %s9
    %p137 = scmp.lt.s32.totalorder %s9, 3
    %p138 = pnand %p136, %p137
    %p139 = pneg %p138
    // Predicated region
    $region29: #{tpu_custom_call.1} parent=5 // pred_check
      _
    $region30: #{tpu_custom_call.1} parent=5 // pred_check_branch
      %141 = sbr.rel (%p138) target = $region32
    $region31: #{tpu_custom_call.1} parent=5 // pred_region
      %s142 = ssub.s32 %s9, 1
      %p143 = scmp.lt.s32.totalorder %s14, 1
      %s144 = scalar_select %p143, %s14, 1
      %s145 = smul.addr %s144, 16
      %s146 = smul.addr %s145, 8
      %s147 = scalar_lea.vmem %s0, %s146
      %p148 = pneg %p35
      %p149 = pneg %p32
      %p150 = pneg %p56
      %p151 = pneg %p53
      %p152 = pneg %p77
      %p153 = pneg %p74
      %p154 = pneg %p103
      %p155 = pneg %p100
      %p156 = scmp.lt.s32.totalorder %s14, 1
      %s157 = scalar_select %p156, %s14, 1
      %s158 = smul.addr %s157, 16
      %s159 = smul.addr %s158, 8
      %s160 = scalar_lea.vmem %s3, %s159
      %p161 = scmp.lt.s32.totalorder %s14, 1
      %s162 = scalar_select %p161, %s14, 1
      %s163 = smul.addr %s162, 16
      %s164 = smul.addr %s163, 8
      %s165 = scalar_lea.vmem %s0, %s164
      %p166 = scmp.lt.s32.totalorder %s14, 1
      %s167 = scalar_select %p166, %s14, 1
      %s168 = smul.addr %s167, 16
      %s169 = smul.addr %s168, 8
      %s170 = scalar_lea.vmem %s3, %s169
      %v172 = vld [vmem:[%s165] sm:$0xff]
      %v173 = vld [vmem:[%s165 + $0x8] sm:$0xff]
      %v174 = vld [vmem:[%s165 + $0x10] sm:$0xff]
      %v175 = vld [vmem:[%s165 + $0x18] sm:$0xff]
      %v176 = vld [vmem:[%s165 + $0x20] sm:$0xff]
      %v177 = vld [vmem:[%s165 + $0x28] sm:$0xff]
      %v178 = vld [vmem:[%s165 + $0x30] sm:$0xff]
      %v179 = vld [vmem:[%s165 + $0x38] sm:$0xff]
      %v180 = vld [vmem:[%s165 + $0x40] sm:$0xff]
      %v181 = vld [vmem:[%s165 + $0x48] sm:$0xff]
      %v182 = vld [vmem:[%s165 + $0x50] sm:$0xff]
      %v183 = vld [vmem:[%s165 + $0x58] sm:$0xff]
      %v184 = vld [vmem:[%s165 + $0x60] sm:$0xff]
      %v185 = vld [vmem:[%s165 + $0x68] sm:$0xff]
      %v186 = vld [vmem:[%s165 + $0x70] sm:$0xff]
      %v187 = vld [vmem:[%s165 + $0x78] sm:$0xff]
      %v188 = vpack.c.bf16 %v173, %v172
      %v189 = vpack.c.bf16 %v175, %v174
      %v190 = vpack.c.bf16 %v177, %v176
      %v191 = vpack.c.bf16 %v179, %v178
      %v192 = vpack.c.bf16 %v181, %v180
      %v193 = vpack.c.bf16 %v183, %v182
      %v194 = vpack.c.bf16 %v185, %v184
      %v195 = vpack.c.bf16 %v187, %v186
      %v196 = vld [vmem:[%s1] sm:$0xff]
      %v197 = vld [vmem:[%s1 + $0x8] sm:$0xff]
      %v198 = vld [vmem:[%s1 + $0x10] sm:$0xff]
      %v199 = vld [vmem:[%s1 + $0x18] sm:$0xff]
      %v200 = vld [vmem:[%s1 + $0x20] sm:$0xff]
      %v201 = vld [vmem:[%s1 + $0x28] sm:$0xff]
      %v202 = vld [vmem:[%s1 + $0x30] sm:$0xff]
      %v203 = vld [vmem:[%s1 + $0x38] sm:$0xff]
      %v212 = vunpack.c.l.b16 %v196
      %v213 = vunpack.c.h.b16 %v196
      %v214 = vunpack.c.l.b16 %v197
      %v215 = vunpack.c.h.b16 %v197
      %v216 = vunpack.c.l.b16 %v198
      %v217 = vunpack.c.h.b16 %v198
      %v218 = vunpack.c.l.b16 %v199
      %v219 = vunpack.c.h.b16 %v199
      %v220 = vunpack.c.l.b16 %v200
      %v221 = vunpack.c.h.b16 %v200
      %v222 = vunpack.c.l.b16 %v201
      %v223 = vunpack.c.h.b16 %v201
      %v224 = vunpack.c.l.b16 %v202
      %v225 = vunpack.c.h.b16 %v202
      %v226 = vunpack.c.l.b16 %v203
      %v227 = vunpack.c.h.b16 %v203
      %v228 = vpack.c.b16 %v214, %v212
      %v229 = vpack.c.b16 %v215, %v213
      %v230 = vpack.c.b16 %v218, %v216
      %v231 = vpack.c.b16 %v219, %v217
      %v232 = vpack.c.b16 %v222, %v220
      %v233 = vpack.c.b16 %v223, %v221
      %v234 = vpack.c.b16 %v226, %v224
      %v235 = vpack.c.b16 %v227, %v225
      %vm244 = vcmask 523264
      %v246 = vsel %vm244, %v188, 0
      %v249 = vsel %vm244, %v189, 0
      %v252 = vsel %vm244, %v190, 0
      %v255 = vsel %vm244, %v191, 0
      %v258 = vsel %vm244, %v192, 0
      %v261 = vsel %vm244, %v193, 0
      %v264 = vsel %vm244, %v194, 0
      %v267 = vsel %vm244, %v195, 0
      %269 = vmatprep.subr.bf16.mxu0 %v229
      %270 = vmatpush1.bf16.msra.mxu0 %v228
      %271 = vmatprep.subr.bf16.mxu0 %v231
      %272 = vmatpush1.bf16.msra.mxu0 %v230
      %273 = vmatprep.subr.bf16.mxu0 %v233
      %274 = vmatpush1.bf16.msra.mxu0 %v232
      %275 = vmatprep.subr.bf16.mxu0 %v235
      %276 = vmatpush1.bf16.msra.mxu0 %v234
      %277 = vmatprep.subr.bf16.mxu0 0
      %278 = vmatpush1.bf16.msra.mxu0 0
      %279 = vmatprep.subr.bf16.mxu0 0
      %280 = vmatpush1.bf16.msra.mxu0 0
      %281 = vmatprep.subr.bf16.mxu0 0
      %282 = vmatpush1.bf16.msra.mxu0 0
      %283 = vmatprep.subr.bf16.mxu0 0
      %284 = vmatpush1.bf16.msra.mxu0 0
      %285 = vmatprep.subr.bf16.mxu0 0
      %286 = vmatpush1.bf16.msra.mxu0 0
      %287 = vmatprep.subr.bf16.mxu0 0
      %288 = vmatpush1.bf16.msra.mxu0 0
      %289 = vmatprep.subr.bf16.mxu0 0
      %290 = vmatpush1.bf16.msra.mxu0 0
      %291 = vmatprep.subr.bf16.mxu0 0
      %292 = vmatpush1.bf16.msra.mxu0 0
      %293 = vmatprep.subr.bf16.mxu0 0
      %294 = vmatpush1.bf16.msra.mxu0 0
      %295 = vmatprep.subr.bf16.mxu0 0
      %296 = vmatpush1.bf16.msra.mxu0 0
      %297 = vmatprep.subr.bf16.mxu0 0
      %298 = vmatpush1.bf16.msra.mxu0 0
      %299 = vmatprep.subr.bf16.mxu0 0
      %300 = vmatpush1.bf16.msra.mxu0 0
      %301 = vmatprep.mubr.bf16.mxu0 0
      %302 = vmatmul.mubr.bf16.gmra.mrb[0].mxu0 %v246
      %v303 = vpop.f32.mrb[0].mxu0
      %v304 = vadd.f32 0.0, %v303
      %v305 = vpop.f32.mrb[0].mxu0
      %v306 = vadd.f32 0.0, %v305
      %v307 = vpop.f32.mrb[0].mxu0
      %v308 = vadd.f32 0.0, %v307
      %v309 = vpop.f32.mrb[0].mxu0
      %v310 = vadd.f32 0.0, %v309
      %311 = vmatprep.mubr.bf16.mxu0 0
      %312 = vmatmul.mubr.bf16.gmra.mrb[0].mxu0 %v249
      %v313 = vpop.f32.mrb[0].mxu0
      %v314 = vadd.f32 0.0, %v313
      %v315 = vpop.f32.mrb[0].mxu0
      %v316 = vadd.f32 0.0, %v315
      %v317 = vpop.f32.mrb[0].mxu0
      %v318 = vadd.f32 0.0, %v317
      %v319 = vpop.f32.mrb[0].mxu0
      %v320 = vadd.f32 0.0, %v319
      %321 = vmatprep.mubr.bf16.mxu0 0
      %322 = vmatmul.mubr.bf16.gmra.mrb[0].mxu0 %v252
      %v323 = vpop.f32.mrb[0].mxu0
      %v324 = vadd.f32 0.0, %v323
      %v325 = vpop.f32.mrb[0].mxu0
      %v326 = vadd.f32 0.0, %v325
      %v327 = vpop.f32.mrb[0].mxu0
      %v328 = vadd.f32 0.0, %v327
      %v329 = vpop.f32.mrb[0].mxu0
      %v330 = vadd.f32 0.0, %v329
      %331 = vmatprep.mubr.bf16.mxu0 0
      %332 = vmatmul.mubr.bf16.gmra.mrb[0].mxu0 %v255
      %v333 = vpop.f32.mrb[0].mxu0
      %v334 = vadd.f32 0.0, %v333
      %v335 = vpop.f32.mrb[0].mxu0
      %v336 = vadd.f32 0.0, %v335
      %v337 = vpop.f32.mrb[0].mxu0
      %v338 = vadd.f32 0.0, %v337
      %v339 = vpop.f32.mrb[0].mxu0
      %v340 = vadd.f32 0.0, %v339
      %341 = vmatprep.mubr.bf16.mxu0 0
      %342 = vmatmul.mubr.bf16.gmra.mrb[0].mxu0 %v258
      %v343 = vpop.f32.mrb[0].mxu0
      %v344 = vadd.f32 0.0, %v343
      %v345 = vpop.f32.mrb[0].mxu0
      %v346 = vadd.f32 0.0, %v345
      %v347 = vpop.f32.mrb[0].mxu0
      %v348 = vadd.f32 0.0, %v347
      %v349 = vpop.f32.mrb[0].mxu0
      %v350 = vadd.f32 0.0, %v349
      %351 = vmatprep.mubr.bf16.mxu0 0
      %352 = vmatmul.mubr.bf16.gmra.mrb[0].mxu0 %v261
      %v353 = vpop.f32.mrb[0].mxu0
      %v354 = vadd.f32 0.0, %v353
      %v355 = vpop.f32.mrb[0].mxu0
      %v356 = vadd.f32 0.0, %v355
      %v357 = vpop.f32.mrb[0].mxu0
      %v358 = vadd.f32 0.0, %v357
      %v359 = vpop.f32.mrb[0].mxu0
      %v360 = vadd.f32 0.0, %v359
      %361 = vmatprep.mubr.bf16.mxu0 0
      %362 = vmatmul.mubr.bf16.gmra.mrb[0].mxu0 %v264
      %v363 = vpop.f32.mrb[0].mxu0
      %v364 = vadd.f32 0.0, %v363
      %v365 = vpop.f32.mrb[0].mxu0
      %v366 = vadd.f32 0.0, %v365
      %v367 = vpop.f32.mrb[0].mxu0
      %v368 = vadd.f32 0.0, %v367
      %v369 = vpop.f32.mrb[0].mxu0
      %v370 = vadd.f32 0.0, %v369
      %371 = vmatprep.mubr.bf16.mxu0 0
      %372 = vmatmul.mubr.bf16.gmra.mrb[0].mxu0 %v267
      %v373 = vpop.f32.mrb[0].mxu0
      %v374 = vadd.f32 0.0, %v373
      %v375 = vpop.f32.mrb[0].mxu0
      %v376 = vadd.f32 0.0, %v375
      %v377 = vpop.f32.mrb[0].mxu0
      %v378 = vadd.f32 0.0, %v377
      %v379 = vpop.f32.mrb[0].mxu0
      %v380 = vadd.f32 0.0, %v379
      %381 = vdwg.mxu0
      %v382 = vpack.c.bf16 %v308, %v304
      %v383 = vpack.c.bf16 %v318, %v314
      %v384 = vpack.c.bf16 %v328, %v324
      %v385 = vpack.c.bf16 %v338, %v334
      %v386 = vpack.c.bf16 %v348, %v344
      %v387 = vpack.c.bf16 %v358, %v354
      %v388 = vpack.c.bf16 %v368, %v364
      %v389 = vpack.c.bf16 %v378, %v374
      %v390 = vpack.c.bf16 %v310, %v306
      %v391 = vpack.c.bf16 %v320, %v316
      %v392 = vpack.c.bf16 %v330, %v326
      %v393 = vpack.c.bf16 %v340, %v336
      %v394 = vpack.c.bf16 %v350, %v346
      %v395 = vpack.c.bf16 %v360, %v356
      %v396 = vpack.c.bf16 %v370, %v366
      %v397 = vpack.c.bf16 %v380, %v376
      %406 = vrot.lane.b32.xlu0 %v382, 120
      %v407 = vpop.permute.xlu0 %406
      %408 = vrot.lane.b32.xlu0 %v383, 120
      %v409 = vpop.permute.xlu0 %408
      %410 = vrot.lane.b32.xlu0 %v384, 120
      %v411 = vpop.permute.xlu0 %410
      %412 = vrot.lane.b32.xlu0 %v385, 120
      %v413 = vpop.permute.xlu0 %412
      %414 = vrot.lane.b32.xlu0 %v386, 120
      %v415 = vpop.permute.xlu0 %414
      %416 = vrot.lane.b32.xlu0 %v387, 120
      %v417 = vpop.permute.xlu0 %416
      %418 = vrot.lane.b32.xlu0 %v388, 120
      %v419 = vpop.permute.xlu0 %418
      %420 = vrot.lane.b32.xlu0 %v389, 120
      %v421 = vpop.permute.xlu0 %420
      %422 = vrot.lane.b32.xlu0 %v382, 112
      %v423 = vpop.permute.xlu0 %422
      %424 = vrot.lane.b32.xlu0 %v383, 112
      %v425 = vpop.permute.xlu0 %424
      %426 = vrot.lane.b32.xlu0 %v384, 112
      %v427 = vpop.permute.xlu0 %426
      %428 = vrot.lane.b32.xlu0 %v385, 112
      %v429 = vpop.permute.xlu0 %428
      %430 = vrot.lane.b32.xlu0 %v386, 112
      %v431 = vpop.permute.xlu0 %430
      %432 = vrot.lane.b32.xlu0 %v387, 112
      %v433 = vpop.permute.xlu0 %432
      %434 = vrot.lane.b32.xlu0 %v388, 112
      %v435 = vpop.permute.xlu0 %434
      %436 = vrot.lane.b32.xlu0 %v389, 112
      %v437 = vpop.permute.xlu0 %436
      %438 = vrot.lane.b32.xlu0 %v382, 104
      %v439 = vpop.permute.xlu0 %438
      %440 = vrot.lane.b32.xlu0 %v383, 104
      %v441 = vpop.permute.xlu0 %440
      %442 = vrot.lane.b32.xlu0 %v384, 104
      %v443 = vpop.permute.xlu0 %442
      %444 = vrot.lane.b32.xlu0 %v385, 104
      %v445 = vpop.permute.xlu0 %444
      %446 = vrot.lane.b32.xlu0 %v386, 104
      %v447 = vpop.permute.xlu0 %446
      %448 = vrot.lane.b32.xlu0 %v387, 104
      %v449 = vpop.permute.xlu0 %448
      %450 = vrot.lane.b32.xlu0 %v388, 104
      %v451 = vpop.permute.xlu0 %450
      %452 = vrot.lane.b32.xlu0 %v389, 104
      %v453 = vpop.permute.xlu0 %452
      %454 = vrot.lane.b32.xlu0 %v382, 96
      %v455 = vpop.permute.xlu0 %454
      %456 = vrot.lane.b32.xlu0 %v383, 96
      %v457 = vpop.permute.xlu0 %456
      %458 = vrot.lane.b32.xlu0 %v384, 96
      %v459 = vpop.permute.xlu0 %458
      %460 = vrot.lane.b32.xlu0 %v385, 96
      %v461 = vpop.permute.xlu0 %460
      %462 = vrot.lane.b32.xlu0 %v386, 96
      %v463 = vpop.permute.xlu0 %462
      %464 = vrot.lane.b32.xlu0 %v387, 96
      %v465 = vpop.permute.xlu0 %464
      %466 = vrot.lane.b32.xlu0 %v388, 96
      %v467 = vpop.permute.xlu0 %466
      %468 = vrot.lane.b32.xlu0 %v389, 96
      %v469 = vpop.permute.xlu0 %468
      %470 = vrot.lane.b32.xlu0 %v382, 88
      %v471 = vpop.permute.xlu0 %470
      %472 = vrot.lane.b32.xlu0 %v383, 88
      %v473 = vpop.permute.xlu0 %472
      %474 = vrot.lane.b32.xlu0 %v384, 88
      %v475 = vpop.permute.xlu0 %474
      %476 = vrot.lane.b32.xlu0 %v385, 88
      %v477 = vpop.permute.xlu0 %476
      %478 = vrot.lane.b32.xlu0 %v386, 88
      %v479 = vpop.permute.xlu0 %478
      %480 = vrot.lane.b32.xlu0 %v387, 88
      %v481 = vpop.permute.xlu0 %480
      %482 = vrot.lane.b32.xlu0 %v388, 88
      %v483 = vpop.permute.xlu0 %482
      %484 = vrot.lane.b32.xlu0 %v389, 88
      %v485 = vpop.permute.xlu0 %484
      %486 = vrot.lane.b32.xlu0 %v382, 80
      %v487 = vpop.permute.xlu0 %486
      %488 = vrot.lane.b32.xlu0 %v383, 80
      %v489 = vpop.permute.xlu0 %488
      %490 = vrot.lane.b32.xlu0 %v384, 80
      %v491 = vpop.permute.xlu0 %490
      %492 = vrot.lane.b32.xlu0 %v385, 80
      %v493 = vpop.permute.xlu0 %492
      %494 = vrot.lane.b32.xlu0 %v386, 80
      %v495 = vpop.permute.xlu0 %494
      %496 = vrot.lane.b32.xlu0 %v387, 80
      %v497 = vpop.permute.xlu0 %496
      %498 = vrot.lane.b32.xlu0 %v388, 80
      %v499 = vpop.permute.xlu0 %498
      %500 = vrot.lane.b32.xlu0 %v389, 80
      %v501 = vpop.permute.xlu0 %500
      %502 = vrot.lane.b32.xlu0 %v382, 72
      %v503 = vpop.permute.xlu0 %502
      %504 = vrot.lane.b32.xlu0 %v383, 72
      %v505 = vpop.permute.xlu0 %504
      %506 = vrot.lane.b32.xlu0 %v384, 72
      %v507 = vpop.permute.xlu0 %506
      %508 = vrot.lane.b32.xlu0 %v385, 72
      %v509 = vpop.permute.xlu0 %508
      %510 = vrot.lane.b32.xlu0 %v386, 72
      %v511 = vpop.permute.xlu0 %510
      %512 = vrot.lane.b32.xlu0 %v387, 72
      %v513 = vpop.permute.xlu0 %512
      %514 = vrot.lane.b32.xlu0 %v388, 72
      %v515 = vpop.permute.xlu0 %514
      %516 = vrot.lane.b32.xlu0 %v389, 72
      %v517 = vpop.permute.xlu0 %516
      %526 = vrot.lane.b32.xlu0 %v390, 120
      %v527 = vpop.permute.xlu0 %526
      %528 = vrot.lane.b32.xlu0 %v391, 120
      %v529 = vpop.permute.xlu0 %528
      %530 = vrot.lane.b32.xlu0 %v392, 120
      %v531 = vpop.permute.xlu0 %530
      %532 = vrot.lane.b32.xlu0 %v393, 120
      %v533 = vpop.permute.xlu0 %532
      %534 = vrot.lane.b32.xlu0 %v394, 120
      %v535 = vpop.permute.xlu0 %534
      %536 = vrot.lane.b32.xlu0 %v395, 120
      %v537 = vpop.permute.xlu0 %536
      %538 = vrot.lane.b32.xlu0 %v396, 120
      %v539 = vpop.permute.xlu0 %538
      %540 = vrot.lane.b32.xlu0 %v397, 120
      %v541 = vpop.permute.xlu0 %540
      %550 = vrot.lane.b32.xlu0 %v390, 112
      %v551 = vpop.permute.xlu0 %550
      %552 = vrot.lane.b32.xlu0 %v391, 112
      %v553 = vpop.permute.xlu0 %552
      %554 = vrot.lane.b32.xlu0 %v392, 112
      %v555 = vpop.permute.xlu0 %554
      %556 = vrot.lane.b32.xlu0 %v393, 112
      %v557 = vpop.permute.xlu0 %556
      %558 = vrot.lane.b32.xlu0 %v394, 112
      %v559 = vpop.permute.xlu0 %558
      %560 = vrot.lane.b32.xlu0 %v395, 112
      %v561 = vpop.permute.xlu0 %560
      %562 = vrot.lane.b32.xlu0 %v396, 112
      %v563 = vpop.permute.xlu0 %562
      %564 = vrot.lane.b32.xlu0 %v397, 112
      %v565 = vpop.permute.xlu0 %564
      %574 = vrot.lane.b32.xlu0 %v390, 104
      %v575 = vpop.permute.xlu0 %574
      %576 = vrot.lane.b32.xlu0 %v391, 104
      %v577 = vpop.permute.xlu0 %576
      %578 = vrot.lane.b32.xlu0 %v392, 104
      %v579 = vpop.permute.xlu0 %578
      %580 = vrot.lane.b32.xlu0 %v393, 104
      %v581 = vpop.permute.xlu0 %580
      %582 = vrot.lane.b32.xlu0 %v394, 104
      %v583 = vpop.permute.xlu0 %582
      %584 = vrot.lane.b32.xlu0 %v395, 104
      %v585 = vpop.permute.xlu0 %584
      %586 = vrot.lane.b32.xlu0 %v396, 104
      %v587 = vpop.permute.xlu0 %586
      %588 = vrot.lane.b32.xlu0 %v397, 104
      %v589 = vpop.permute.xlu0 %588
      %598 = vrot.lane.b32.xlu0 %v390, 96
      %v599 = vpop.permute.xlu0 %598
      %600 = vrot.lane.b32.xlu0 %v391, 96
      %v601 = vpop.permute.xlu0 %600
      %602 = vrot.lane.b32.xlu0 %v392, 96
      %v603 = vpop.permute.xlu0 %602
      %604 = vrot.lane.b32.xlu0 %v393, 96
      %v605 = vpop.permute.xlu0 %604
      %606 = vrot.lane.b32.xlu0 %v394, 96
      %v607 = vpop.permute.xlu0 %606
      %608 = vrot.lane.b32.xlu0 %v395, 96
      %v609 = vpop.permute.xlu0 %608
      %610 = vrot.lane.b32.xlu0 %v396, 96
      %v611 = vpop.permute.xlu0 %610
      %612 = vrot.lane.b32.xlu0 %v397, 96
      %v613 = vpop.permute.xlu0 %612
      %622 = vrot.lane.b32.xlu0 %v390, 88
      %v623 = vpop.permute.xlu0 %622
      %624 = vrot.lane.b32.xlu0 %v391, 88
      %v625 = vpop.permute.xlu0 %624
      %626 = vrot.lane.b32.xlu0 %v392, 88
      %v627 = vpop.permute.xlu0 %626
      %628 = vrot.lane.b32.xlu0 %v393, 88
      %v629 = vpop.permute.xlu0 %628
      %630 = vrot.lane.b32.xlu0 %v394, 88
      %v631 = vpop.permute.xlu0 %630
      %632 = vrot.lane.b32.xlu0 %v395, 88
      %v633 = vpop.permute.xlu0 %632
      %634 = vrot.lane.b32.xlu0 %v396, 88
      %v635 = vpop.permute.xlu0 %634
      %636 = vrot.lane.b32.xlu0 %v397, 88
      %v637 = vpop.permute.xlu0 %636
      %646 = vrot.lane.b32.xlu0 %v390, 80
      %v647 = vpop.permute.xlu0 %646
      %648 = vrot.lane.b32.xlu0 %v391, 80
      %v649 = vpop.permute.xlu0 %648
      %650 = vrot.lane.b32.xlu0 %v392, 80
      %v651 = vpop.permute.xlu0 %650
      %652 = vrot.lane.b32.xlu0 %v393, 80
      %v653 = vpop.permute.xlu0 %652
      %654 = vrot.lane.b32.xlu0 %v394, 80
      %v655 = vpop.permute.xlu0 %654
      %656 = vrot.lane.b32.xlu0 %v395, 80
      %v657 = vpop.permute.xlu0 %656
      %658 = vrot.lane.b32.xlu0 %v396, 80
      %v659 = vpop.permute.xlu0 %658
      %660 = vrot.lane.b32.xlu0 %v397, 80
      %v661 = vpop.permute.xlu0 %660
      %670 = vrot.lane.b32.xlu0 %v390, 72
      %v671 = vpop.permute.xlu0 %670
      %672 = vrot.lane.b32.xlu0 %v391, 72
      %v673 = vpop.permute.xlu0 %672
      %674 = vrot.lane.b32.xlu0 %v392, 72
      %v675 = vpop.permute.xlu0 %674
      %676 = vrot.lane.b32.xlu0 %v393, 72
      %v677 = vpop.permute.xlu0 %676
      %678 = vrot.lane.b32.xlu0 %v394, 72
      %v679 = vpop.permute.xlu0 %678
      %680 = vrot.lane.b32.xlu0 %v395, 72
      %v681 = vpop.permute.xlu0 %680
      %682 = vrot.lane.b32.xlu0 %v396, 72
      %v683 = vpop.permute.xlu0 %682
      %684 = vrot.lane.b32.xlu0 %v397, 72
      %v685 = vpop.permute.xlu0 %684
      %694 = vrot.lane.b32.xlu0 %v382, 64
      %v695 = vpop.permute.xlu0 %694
      %696 = vrot.lane.b32.xlu0 %v383, 64
      %v697 = vpop.permute.xlu0 %696
      %698 = vrot.lane.b32.xlu0 %v384, 64
      %v699 = vpop.permute.xlu0 %698
      %700 = vrot.lane.b32.xlu0 %v385, 64
      %v701 = vpop.permute.xlu0 %700
      %702 = vrot.lane.b32.xlu0 %v386, 64
      %v703 = vpop.permute.xlu0 %702
      %704 = vrot.lane.b32.xlu0 %v387, 64
      %v705 = vpop.permute.xlu0 %704
      %706 = vrot.lane.b32.xlu0 %v388, 64
      %v707 = vpop.permute.xlu0 %706
      %708 = vrot.lane.b32.xlu0 %v389, 64
      %v709 = vpop.permute.xlu0 %708
      %vm710 = vcmask 64512
      %v712 = vsel %vm710, %v382, 0
      %v715 = vsel %vm710, %v383, 0
      %v718 = vsel %vm710, %v384, 0
      %v721 = vsel %vm710, %v385, 0
      %v724 = vsel %vm710, %v386, 0
      %v727 = vsel %vm710, %v387, 0
      %v730 = vsel %vm710, %v388, 0
      %v733 = vsel %vm710, %v389, 0
      %v736 = vsel %vm710, %v695, 0
      %v739 = vsel %vm710, %v697, 0
      %v742 = vsel %vm710, %v699, 0
      %v745 = vsel %vm710, %v701, 0
      %v748 = vsel %vm710, %v703, 0
      %v751 = vsel %vm710, %v705, 0
      %v754 = vsel %vm710, %v707, 0
      %v757 = vsel %vm710, %v709, 0
      %759 = vmatprep.subr.bf16.mxu0 0
      %760 = vmatpush1.bf16.xpose.msra.mxu0 %v736
      %761 = vmatprep.subr.bf16.mxu0 0
      %762 = vmatpush1.bf16.xpose.msra.mxu0 %v739
      %763 = vmatprep.subr.bf16.mxu0 0
      %764 = vmatpush1.bf16.xpose.msra.mxu0 %v742
      %765 = vmatprep.subr.bf16.mxu0 0
      %766 = vmatpush1.bf16.xpose.msra.mxu0 %v745
      %767 = vmatprep.subr.bf16.mxu0 0
      %768 = vmatpush1.bf16.xpose.msra.mxu0 %v748
      %769 = vmatprep.subr.bf16.mxu0 0
      %770 = vmatpush1.bf16.xpose.msra.mxu0 %v751
      %771 = vmatprep.subr.bf16.mxu0 0
      %772 = vmatpush1.bf16.xpose.msra.mxu0 %v754
      %773 = vmatprep.subr.bf16.mxu0 0
      %774 = vmatpush1.bf16.xpose.msra.mxu0 %v757
      %775 = vmatprep.subr.bf16.mxu0 0
      %776 = vmatpush1.bf16.xpose.msra.mxu0 0
      %777 = vmatprep.subr.bf16.mxu0 0
      %778 = vmatpush1.bf16.xpose.msra.mxu0 0
      %779 = vmatprep.subr.bf16.mxu0 0
      %780 = vmatpush1.bf16.xpose.msra.mxu0 0
      %781 = vmatprep.subr.bf16.mxu0 0
      %782 = vmatpush1.bf16.xpose.msra.mxu0 0
      %783 = vmatprep.subr.bf16.mxu0 0
      %784 = vmatpush1.bf16.xpose.msra.mxu0 0
      %785 = vmatprep.subr.bf16.mxu0 0
      %786 = vmatpush1.bf16.xpose.msra.mxu0 0
      %787 = vmatprep.subr.bf16.mxu0 0
      %788 = vmatpush1.bf16.xpose.msra.mxu0 0
      %789 = vmatprep.subr.bf16.mxu0 0
      %790 = vmatpush1.bf16.xpose.msra.mxu0 0
      %791 = vmatprep.mubr.bf16.mxu0 0
      %792 = vmatmul.mubr.bf16.gmra.mrb[0].mxu0 %v712
      %v793 = vpop.f32.mrb[0].mxu0
      %v794 = vadd.f32 0.0, %v793
      %v795 = vpop.f32.mrb[0].mxu0
      %v796 = vpop.f32.mrb[0].mxu0
      %v797 = vadd.f32 0.0, %v796
      %v798 = vpop.f32.mrb[0].mxu0
      %799 = vmatprep.mubr.bf16.mxu0 0
      %800 = vmatmul.mubr.bf16.gmra.mrb[0].mxu0 %v715
      %v801 = vpop.f32.mrb[0].mxu0
      %v802 = vadd.f32 0.0, %v801
      %v803 = vpop.f32.mrb[0].mxu0
      %v804 = vpop.f32.mrb[0].mxu0
      %v805 = vadd.f32 0.0, %v804
      %v806 = vpop.f32.mrb[0].mxu0
      %807 = vmatprep.mubr.bf16.mxu0 0
      %808 = vmatmul.mubr.bf16.gmra.mrb[0].mxu0 %v718
      %v809 = vpop.f32.mrb[0].mxu0
      %v810 = vadd.f32 0.0, %v809
      %v811 = vpop.f32.mrb[0].mxu0
      %v812 = vpop.f32.mrb[0].mxu0
      %v813 = vadd.f32 0.0, %v812
      %v814 = vpop.f32.mrb[0].mxu0
      %815 = vmatprep.mubr.bf16.mxu0 0
      %816 = vmatmul.mubr.bf16.gmra.mrb[0].mxu0 %v721
      %v817 = vpop.f32.mrb[0].mxu0
      %v818 = vadd.f32 0.0, %v817
      %v819 = vpop.f32.mrb[0].mxu0
      %v820 = vpop.f32.mrb[0].mxu0
      %v821 = vadd.f32 0.0, %v820
      %v822 = vpop.f32.mrb[0].mxu0
      %823 = vmatprep.mubr.bf16.mxu0 0
      %824 = vmatmul.mubr.bf16.gmra.mrb[0].mxu0 %v724
      %v825 = vpop.f32.mrb[0].mxu0
      %v826 = vadd.f32 0.0, %v825
      %v827 = vpop.f32.mrb[0].mxu0
      %v828 = vpop.f32.mrb[0].mxu0
      %v829 = vadd.f32 0.0, %v828
      %v830 = vpop.f32.mrb[0].mxu0
      %831 = vmatprep.mubr.bf16.mxu0 0
      %832 = vmatmul.mubr.bf16.gmra.mrb[0].mxu0 %v727
      %v833 = vpop.f32.mrb[0].mxu0
      %v834 = vadd.f32 0.0, %v833
      %v835 = vpop.f32.mrb[0].mxu0
      %v836 = vpop.f32.mrb[0].mxu0
      %v837 = vadd.f32 0.0, %v836
      %v838 = vpop.f32.mrb[0].mxu0
      %839 = vmatprep.mubr.bf16.mxu0 0
      %840 = vmatmul.mubr.bf16.gmra.mrb[0].mxu0 %v730
      %v841 = vpop.f32.mrb[0].mxu0
      %v842 = vadd.f32 0.0, %v841
      %v843 = vpop.f32.mrb[0].mxu0
      %v844 = vpop.f32.mrb[0].mxu0
      %v845 = vadd.f32 0.0, %v844
      %v846 = vpop.f32.mrb[0].mxu0
      %847 = vmatprep.mubr.bf16.mxu0 0
      %848 = vmatmul.mubr.bf16.gmra.mrb[0].mxu0 %v733
      %v849 = vpop.f32.mrb[0].mxu0
      %v850 = vadd.f32 0.0, %v849
      %v851 = vpop.f32.mrb[0].mxu0
      %v852 = vpop.f32.mrb[0].mxu0
      %v853 = vadd.f32 0.0, %v852
      %v854 = vpop.f32.mrb[0].mxu0
      %855 = vdwg.mxu0
      %856 = vrot.lane.b32.xlu0 %v407, 64
      %v857 = vpop.permute.xlu0 %856
      %858 = vrot.lane.b32.xlu0 %v409, 64
      %v859 = vpop.permute.xlu0 %858
      %860 = vrot.lane.b32.xlu0 %v411, 64
      %v861 = vpop.permute.xlu0 %860
      %862 = vrot.lane.b32.xlu0 %v413, 64
      %v863 = vpop.permute.xlu0 %862
      %864 = vrot.lane.b32.xlu0 %v415, 64
      %v865 = vpop.permute.xlu0 %864
      %866 = vrot.lane.b32.xlu0 %v417, 64
      %v867 = vpop.permute.xlu0 %866
      %868 = vrot.lane.b32.xlu0 %v419, 64
      %v869 = vpop.permute.xlu0 %868
      %870 = vrot.lane.b32.xlu0 %v421, 64
      %v871 = vpop.permute.xlu0 %870
      %v873 = vsel %vm710, %v407, 0
      %v876 = vsel %vm710, %v409, 0
      %v879 = vsel %vm710, %v411, 0
      %v882 = vsel %vm710, %v413, 0
      %v885 = vsel %vm710, %v415, 0
      %v888 = vsel %vm710, %v417, 0
      %v891 = vsel %vm710, %v419, 0
      %v894 = vsel %vm710, %v421, 0
      %v897 = vsel %vm710, %v857, 0
      %v900 = vsel %vm710, %v859, 0
      %v903 = vsel %vm710, %v861, 0
      %v906 = vsel %vm710, %v863, 0
      %v909 = vsel %vm710, %v865, 0
      %v912 = vsel %vm710, %v867, 0
      %v915 = vsel %vm710, %v869, 0
      %v918 = vsel %vm710, %v871, 0
      %920 = vmatprep.subr.bf16.mxu0 0
      %921 = vmatpush1.bf16.xpose.msra.mxu0 %v897
      %922 = vmatprep.subr.bf16.mxu0 0
      %923 = vmatpush1.bf16.xpose.msra.mxu0 %v900
      %924 = vmatprep.subr.bf16.mxu0 0
      %925 = vmatpush1.bf16.xpose.msra.mxu0 %v903
      %926 = vmatprep.subr.bf16.mxu0 0
      %927 = vmatpush1.bf16.xpose.msra.mxu0 %v906
      %928 = vmatprep.subr.bf16.mxu0 0
      %929 = vmatpush1.bf16.xpose.msra.mxu0 %v909
      %930 = vmatprep.subr.bf16.mxu0 0
      %931 = vmatpush1.bf16.xpose.msra.mxu0 %v912
      %932 = vmatprep.subr.bf16.mxu0 0
      %933 = vmatpush1.bf16.xpose.msra.mxu0 %v915
      %934 = vmatprep.subr.bf16.mxu0 0
      %935 = vmatpush1.bf16.xpose.msra.mxu0 %v918
      %936 = vmatprep.subr.bf16.mxu0 0
      %937 = vmatpush1.bf16.xpose.msra.mxu0 0
      %938 = vmatprep.subr.bf16.mxu0 0
      %939 = vmatpush1.bf16.xpose.msra.mxu0 0
      %940 = vmatprep.subr.bf16.mxu0 0
      %941 = vmatpush1.bf16.xpose.msra.mxu0 0
      %942 = vmatprep.subr.bf16.mxu0 0
      %943 = vmatpush1.bf16.xpose.msra.mxu0 0
      %944 = vmatprep.subr.bf16.mxu0 0
      %945 = vmatpush1.bf16.xpose.msra.mxu0 0
      %946 = vmatprep.subr.bf16.mxu0 0
      %947 = vmatpush1.bf16.xpose.msra.mxu0 0
      %948 = vmatprep.subr.bf16.mxu0 0
      %949 = vmatpush1.bf16.xpose.msra.mxu0 0
      %950 = vmatprep.subr.bf16.mxu0 0
      %951 = vmatpush1.bf16.xpose.msra.mxu0 0
      %952 = vmatprep.mubr.bf16.mxu0 0
      %953 = vmatmul.mubr.bf16.gmra.mrb[0].mxu0 %v873
      %v954 = vpop.f32.mrb[0].mxu0
      %v955 = vadd.f32 0.0, %v954
      %v956 = vpop.f32.mrb[0].mxu0
      %v957 = vpop.f32.mrb[0].mxu0
      %v958 = vadd.f32 0.0, %v957
      %v959 = vpop.f32.mrb[0].mxu0
      %960 = vmatprep.mubr.bf16.mxu0 0
      %961 = vmatmul.mubr.bf16.gmra.mrb[0].mxu0 %v876
      %v962 = vpop.f32.mrb[0].mxu0
      %v963 = vadd.f32 0.0, %v962
      %v964 = vpop.f32.mrb[0].mxu0
      %v965 = vpop.f32.mrb[0].mxu0
      %v966 = vadd.f32 0.0, %v965
      %v967 = vpop.f32.mrb[0].mxu0
      %968 = vmatprep.mubr.bf16.mxu0 0
      %969 = vmatmul.mubr.bf16.gmra.mrb[0].mxu0 %v879
      %v970 = vpop.f32.mrb[0].mxu0
      %v971 = vadd.f32 0.0, %v970
      %v972 = vpop.f32.mrb[0].mxu0
      %v973 = vpop.f32.mrb[0].mxu0
      %v974 = vadd.f32 0.0, %v973
      %v975 = vpop.f32.mrb[0].mxu0
      %976 = vmatprep.mubr.bf16.mxu0 0
      %977 = vmatmul.mubr.bf16.gmra.mrb[0].mxu0 %v882
      %v978 = vpop.f32.mrb[0].mxu0
      %v979 = vadd.f32 0.0, %v978
      %v980 = vpop.f32.mrb[0].mxu0
      %v981 = vpop.f32.mrb[0].mxu0
      %v982 = vadd.f32 0.0, %v981
      %v983 = vpop.f32.mrb[0].mxu0
      %984 = vmatprep.mubr.bf16.mxu0 0
      %985 = vmatmul.mubr.bf16.gmra.mrb[0].mxu0 %v885
      %v986 = vpop.f32.mrb[0].mxu0
      %v987 = vadd.f32 0.0, %v986
      %v988 = vpop.f32.mrb[0].mxu0
      %v989 = vpop.f32.mrb[0].mxu0
      %v990 = vadd.f32 0.0, %v989
      %v991 = vpop.f32.mrb[0].mxu0
      %992 = vmatprep.mubr.bf16.mxu0 0
      %993 = vmatmul.mubr.bf16.gmra.mrb[0].mxu0 %v888
      %v994 = vpop.f32.mrb[0].mxu0
      %v995 = vadd.f32 0.0, %v994
      %v996 = vpop.f32.mrb[0].mxu0
      %v997 = vpop.f32.mrb[0].mxu0
      %v998 = vadd.f32 0.0, %v997
      %v999 = vpop.f32.mrb[0].mxu0
      %1000 = vmatprep.mubr.bf16.mxu0 0
      %1001 = vmatmul.mubr.bf16.gmra.mrb[0].mxu0 %v891
      %v1002 = vpop.f32.mrb[0].mxu0
      %v1003 = vadd.f32 0.0, %v1002
      %v1004 = vpop.f32.mrb[0].mxu0
      %v1005 = vpop.f32.mrb[0].mxu0
      %v1006 = vadd.f32 0.0, %v1005
      %v1007 = vpop.f32.mrb[0].mxu0
      %1008 = vmatprep.mubr.bf16.mxu0 0
      %1009 = vmatmul.mubr.bf16.gmra.mrb[0].mxu0 %v894
      %v1010 = vpop.f32.mrb[0].mxu0
      %v1011 = vadd.f32 0.0, %v1010
      %v1012 = vpop.f32.mrb[0].mxu0
      %v1013 = vpop.f32.mrb[0].mxu0
      %v1014 = vadd.f32 0.0, %v1013
      %v1015 = vpop.f32.mrb[0].mxu0
      %1016 = vdwg.mxu0
      %1017 = vrot.lane.b32.xlu0 %v423, 64
      %v1018 = vpop.permute.xlu0 %1017
      %1019 = vrot.lane.b32.xlu0 %v425, 64
      %v1020 = vpop.permute.xlu0 %1019
      %1021 = vrot.lane.b32.xlu0 %v427, 64
      %v1022 = vpop.permute.xlu0 %1021
      %1023 = vrot.lane.b32.xlu0 %v429, 64
      %v1024 = vpop.permute.xlu0 %1023
      %1025 = vrot.lane.b32.xlu0 %v431, 64
      %v1026 = vpop.permute.xlu0 %1025
      %1027 = vrot.lane.b32.xlu0 %v433, 64
      %v1028 = vpop.permute.xlu0 %1027
      %1029 = vrot.lane.b32.xlu0 %v435, 64
      %v1030 = vpop.permute.xlu0 %1029
      %1031 = vrot.lane.b32.xlu0 %v437, 64
      %v1032 = vpop.permute.xlu0 %1031
      %v1034 = vsel %vm710, %v423, 0
      %v1037 = vsel %vm710, %v425, 0
      %v1040 = vsel %vm710, %v427, 0
      %v1043 = vsel %vm710, %v429, 0
      %v1046 = vsel %vm710, %v431, 0
      %v1049 = vsel %vm710, %v433, 0
      %v1052 = vsel %vm710, %v435, 0
      %v1055 = vsel %vm710, %v437, 0
      %v1058 = vsel %vm710, %v1018, 0
      %v1061 = vsel %vm710, %v1020, 0
      %v1064 = vsel %vm710, %v1022, 0
      %v1067 = vsel %vm710, %v1024, 0
      %v1070 = vsel %vm710, %v1026, 0
      %v1073 = vsel %vm710, %v1028, 0
      %v1076 = vsel %vm710, %v1030, 0
      %v1079 = vsel %vm710, %v1032, 0
      %1081 = vmatprep.subr.bf16.mxu0 0
      %1082 = vmatpush1.bf16.xpose.msra.mxu0 %v1058
      %1083 = vmatprep.subr.bf16.mxu0 0
      %1084 = vmatpush1.bf16.xpose.msra.mxu0 %v1061
      %1085 = vmatprep.subr.bf16.mxu0 0
      %1086 = vmatpush1.bf16.xpose.msra.mxu0 %v1064
      %1087 = vmatprep.subr.bf16.mxu0 0
      %1088 = vmatpush1.bf16.xpose.msra.mxu0 %v1067
      %1089 = vmatprep.subr.bf16.mxu0 0
      %1090 = vmatpush1.bf16.xpose.msra.mxu0 %v1070
      %1091 = vmatprep.subr.bf16.mxu0 0
      %1092 = vmatpush1.bf16.xpose.msra.mxu0 %v1073
      %1093 = vmatprep.subr.bf16.mxu0 0
      %1094 = vmatpush1.bf16.xpose.msra.mxu0 %v1076
      %1095 = vmatprep.subr.bf16.mxu0 0
      %1096 = vmatpush1.bf16.xpose.msra.mxu0 %v1079
      %1097 = vmatprep.subr.bf16.mxu0 0
      %1098 = vmatpush1.bf16.xpose.msra.mxu0 0
      %1099 = vmatprep.subr.bf16.mxu0 0
      %1100 = vmatpush1.bf16.xpose.msra.mxu0 0
      %1101 = vmatprep.subr.bf16.mxu0 0
      %1102 = vmatpush1.bf16.xpose.msra.mxu0 0
      %1103 = vmatprep.subr.bf16.mxu0 0
      %1104 = vmatpush1.bf16.xpose.msra.mxu0 0
      %1105 = vmatprep.subr.bf16.mxu0 0
      %1106 = vmatpush1.bf16.xpose.msra.mxu0 0
      %1107 = vmatprep.subr.bf16.mxu0 0
      %1108 = vmatpush1.bf16.xpose.msra.mxu0 0
      %1109 = vmatprep.subr.bf16.mxu0 0
      %1110 = vmatpush1.bf16.xpose.msra.mxu0 0
      %1111 = vmatprep.subr.bf16.mxu0 0
      %1112 = vmatpush1.bf16.xpose.msra.mxu0 0
      %1113 = vmatprep.mubr.bf16.mxu0 0
      %1114 = vmatmul.mubr.bf16.gmra.mrb[0].mxu0 %v1034
      %v1115 = vpop.f32.mrb[0].mxu0
      %v1116 = vadd.f32 0.0, %v1115
      %v1117 = vpop.f32.mrb[0].mxu0
      %v1118 = vpop.f32.mrb[0].mxu0
      %v1119 = vadd.f32 0.0, %v1118
      %v1120 = vpop.f32.mrb[0].mxu0
      %1121 = vmatprep.mubr.bf16.mxu0 0
      %1122 = vmatmul.mubr.bf16.gmra.mrb[0].mxu0 %v1037
      %v1123 = vpop.f32.mrb[0].mxu0
      %v1124 = vadd.f32 0.0, %v1123
      %v1125 = vpop.f32.mrb[0].mxu0
      %v1126 = vpop.f32.mrb[0].mxu0
      %v1127 = vadd.f32 0.0, %v1126
      %v1128 = vpop.f32.mrb[0].mxu0
      %1129 = vmatprep.mubr.bf16.mxu0 0
      %1130 = vmatmul.mubr.bf16.gmra.mrb[0].mxu0 %v1040
      %v1131 = vpop.f32.mrb[0].mxu0
      %v1132 = vadd.f32 0.0, %v1131
      %v1133 = vpop.f32.mrb[0].mxu0
      %v1134 = vpop.f32.mrb[0].mxu0
      %v1135 = vadd.f32 0.0, %v1134
      %v1136 = vpop.f32.mrb[0].mxu0
      %1137 = vmatprep.mubr.bf16.mxu0 0
      %1138 = vmatmul.mubr.bf16.gmra.mrb[0].mxu0 %v1043
      %v1139 = vpop.f32.mrb[0].mxu0
      %v1140 = vadd.f32 0.0, %v1139
      %v1141 = vpop.f32.mrb[0].mxu0
      %v1142 = vpop.f32.mrb[0].mxu0
      %v1143 = vadd.f32 0.0, %v1142
      %v1144 = vpop.f32.mrb[0].mxu0
      %1145 = vmatprep.mubr.bf16.mxu0 0
      %1146 = vmatmul.mubr.bf16.gmra.mrb[0].mxu0 %v1046
      %v1147 = vpop.f32.mrb[0].mxu0
      %v1148 = vadd.f32 0.0, %v1147
      %v1149 = vpop.f32.mrb[0].mxu0
      %v1150 = vpop.f32.mrb[0].mxu0
      %v1151 = vadd.f32 0.0, %v1150
      %v1152 = vpop.f32.mrb[0].mxu0
      %1153 = vmatprep.mubr.bf16.mxu0 0
      %1154 = vmatmul.mubr.bf16.gmra.mrb[0].mxu0 %v1049
      %v1155 = vpop.f32.mrb[0].mxu0
      %v1156 = vadd.f32 0.0, %v1155
      %v1157 = vpop.f32.mrb[0].mxu0
      %v1158 = vpop.f32.mrb[0].mxu0
      %v1159 = vadd.f32 0.0, %v1158
      %v1160 = vpop.f32.mrb[0].mxu0
      %1161 = vmatprep.mubr.bf16.mxu0 0
      %1162 = vmatmul.mubr.bf16.gmra.mrb[0].mxu0 %v1052
      %v1163 = vpop.f32.mrb[0].mxu0
      %v1164 = vadd.f32 0.0, %v1163
      %v1165 = vpop.f32.mrb[0].mxu0
      %v1166 = vpop.f32.mrb[0].mxu0
      %v1167 = vadd.f32 0.0, %v1166
      %v1168 = vpop.f32.mrb[0].mxu0
      %1169 = vmatprep.mubr.bf16.mxu0 0
      %1170 = vmatmul.mubr.bf16.gmra.mrb[0].mxu0 %v1055
      %v1171 = vpop.f32.mrb[0].mxu0
      %v1172 = vadd.f32 0.0, %v1171
      %v1173 = vpop.f32.mrb[0].mxu0
      %v1174 = vpop.f32.mrb[0].mxu0
      %v1175 = vadd.f32 0.0, %v1174
      %v1176 = vpop.f32.mrb[0].mxu0
      %1177 = vdwg.mxu0
      %1178 = vrot.lane.b32.xlu0 %v439, 64
      %v1179 = vpop.permute.xlu0 %1178
      %1180 = vrot.lane.b32.xlu0 %v441, 64
      %v1181 = vpop.permute.xlu0 %1180
      %1182 = vrot.lane.b32.xlu0 %v443, 64
      %v1183 = vpop.permute.xlu0 %1182
      %1184 = vrot.lane.b32.xlu0 %v445, 64
      %v1185 = vpop.permute.xlu0 %1184
      %1186 = vrot.lane.b32.xlu0 %v447, 64
      %v1187 = vpop.permute.xlu0 %1186
      %1188 = vrot.lane.b32.xlu0 %v449, 64
      %v1189 = vpop.permute.xlu0 %1188
      %1190 = vrot.lane.b32.xlu0 %v451, 64
      %v1191 = vpop.permute.xlu0 %1190
      %1192 = vrot.lane.b32.xlu0 %v453, 64
      %v1193 = vpop.permute.xlu0 %1192
      %v1195 = vsel %vm710, %v439, 0
      %v1198 = vsel %vm710, %v441, 0
      %v1201 = vsel %vm710, %v443, 0
      %v1204 = vsel %vm710, %v445, 0
      %v1207 = vsel %vm710, %v447, 0
      %v1210 = vsel %vm710, %v449, 0
      %v1213 = vsel %vm710, %v451, 0
      %v1216 = vsel %vm710, %v453, 0
      %v1219 = vsel %vm710, %v1179, 0
      %v1222 = vsel %vm710, %v1181, 0
      %v1225 = vsel %vm710, %v1183, 0
      %v1228 = vsel %vm710, %v1185, 0
      %v1231 = vsel %vm710, %v1187, 0
      %v1234 = vsel %vm710, %v1189, 0
      %v1237 = vsel %vm710, %v1191, 0
      %v1240 = vsel %vm710, %v1193, 0
      %1242 = vmatprep.subr.bf16.mxu0 0
      %1243 = vmatpush1.bf16.xpose.msra.mxu0 %v1219
      %1244 = vmatprep.subr.bf16.mxu0 0
      %1245 = vmatpush1.bf16.xpose.msra.mxu0 %v1222
      %1246 = vmatprep.subr.bf16.mxu0 0
      %1247 = vmatpush1.bf16.xpose.msra.mxu0 %v1225
      %1248 = vmatprep.subr.bf16.mxu0 0
      %1249 = vmatpush1.bf16.xpose.msra.mxu0 %v1228
      %1250 = vmatprep.subr.bf16.mxu0 0
      %1251 = vmatpush1.bf16.xpose.msra.mxu0 %v1231
      %1252 = vmatprep.subr.bf16.mxu0 0
      %1253 = vmatpush1.bf16.xpose.msra.mxu0 %v1234
      %1254 = vmatprep.subr.bf16.mxu0 0
      %1255 = vmatpush1.bf16.xpose.msra.mxu0 %v1237
      %1256 = vmatprep.subr.bf16.mxu0 0
      %1257 = vmatpush1.bf16.xpose.msra.mxu0 %v1240
      %1258 = vmatprep.subr.bf16.mxu0 0
      %1259 = vmatpush1.bf16.xpose.msra.mxu0 0
      %1260 = vmatprep.subr.bf16.mxu0 0
      %1261 = vmatpush1.bf16.xpose.msra.mxu0 0
      %1262 = vmatprep.subr.bf16.mxu0 0
      %1263 = vmatpush1.bf16.xpose.msra.mxu0 0
      %1264 = vmatprep.subr.bf16.mxu0 0
      %1265 = vmatpush1.bf16.xpose.msra.mxu0 0
      %1266 = vmatprep.subr.bf16.mxu0 0
      %1267 = vmatpush1.bf16.xpose.msra.mxu0 0
      %1268 = vmatprep.subr.bf16.mxu0 0
      %1269 = vmatpush1.bf16.xpose.msra.mxu0 0
      %1270 = vmatprep.subr.bf16.mxu0 0
      %1271 = vmatpush1.bf16.xpose.msra.mxu0 0
      %1272 = vmatprep.subr.bf16.mxu0 0
      %1273 = vmatpush1.bf16.xpose.msra.mxu0 0
      %1274 = vmatprep.mubr.bf16.mxu0 0
      %1275 = vmatmul.mubr.bf16.gmra.mrb[0].mxu0 %v1195
      %v1276 = vpop.f32.mrb[0].mxu0
      %v1277 = vadd.f32 0.0, %v1276
      %v1278 = vpop.f32.mrb[0].mxu0
      %v1279 = vpop.f32.mrb[0].mxu0
      %v1280 = vadd.f32 0.0, %v1279
      %v1281 = vpop.f32.mrb[0].mxu0
      %1282 = vmatprep.mubr.bf16.mxu0 0
      %1283 = vmatmul.mubr.bf16.gmra.mrb[0].mxu0 %v1198
      %v1284 = vpop.f32.mrb[0].mxu0
      %v1285 = vadd.f32 0.0, %v1284
      %v1286 = vpop.f32.mrb[0].mxu0
      %v1287 = vpop.f32.mrb[0].mxu0
      %v1288 = vadd.f32 0.0, %v1287
      %v1289 = vpop.f32.mrb[0].mxu0
      %1290 = vmatprep.mubr.bf16.mxu0 0
      %1291 = vmatmul.mubr.bf16.gmra.mrb[0].mxu0 %v1201
      %v1292 = vpop.f32.mrb[0].mxu0
      %v1293 = vadd.f32 0.0, %v1292
      %v1294 = vpop.f32.mrb[0].mxu0
      %v1295 = vpop.f32.mrb[0].mxu0
      %v1296 = vadd.f32 0.0, %v1295
      %v1297 = vpop.f32.mrb[0].mxu0
      %1298 = vmatprep.mubr.bf16.mxu0 0
      %1299 = vmatmul.mubr.bf16.gmra.mrb[0].mxu0 %v1204
      %v1300 = vpop.f32.mrb[0].mxu0
      %v1301 = vadd.f32 0.0, %v1300
      %v1302 = vpop.f32.mrb[0].mxu0
      %v1303 = vpop.f32.mrb[0].mxu0
      %v1304 = vadd.f32 0.0, %v1303
      %v1305 = vpop.f32.mrb[0].mxu0
      %1306 = vmatprep.mubr.bf16.mxu0 0
      %1307 = vmatmul.mubr.bf16.gmra.mrb[0].mxu0 %v1207
      %v1308 = vpop.f32.mrb[0].mxu0
      %v1309 = vadd.f32 0.0, %v1308
      %v1310 = vpop.f32.mrb[0].mxu0
      %v1311 = vpop.f32.mrb[0].mxu0
      %v1312 = vadd.f32 0.0, %v1311
      %v1313 = vpop.f32.mrb[0].mxu0
      %1314 = vmatprep.mubr.bf16.mxu0 0
      %1315 = vmatmul.mubr.bf16.gmra.mrb[0].mxu0 %v1210
      %v1316 = vpop.f32.mrb[0].mxu0
      %v1317 = vadd.f32 0.0, %v1316
      %v1318 = vpop.f32.mrb[0].mxu0
      %v1319 = vpop.f32.mrb[0].mxu0
      %v1320 = vadd.f32 0.0, %v1319
      %v1321 = vpop.f32.mrb[0].mxu0
      %1322 = vmatprep.mubr.bf16.mxu0 0
      %1323 = vmatmul.mubr.bf16.gmra.mrb[0].mxu0 %v1213
      %v1324 = vpop.f32.mrb[0].mxu0
      %v1325 = vadd.f32 0.0, %v1324
      %v1326 = vpop.f32.mrb[0].mxu0
      %v1327 = vpop.f32.mrb[0].mxu0
      %v1328 = vadd.f32 0.0, %v1327
      %v1329 = vpop.f32.mrb[0].mxu0
      %1330 = vmatprep.mubr.bf16.mxu0 0
      %1331 = vmatmul.mubr.bf16.gmra.mrb[0].mxu0 %v1216
      %v1332 = vpop.f32.mrb[0].mxu0
      %v1333 = vadd.f32 0.0, %v1332
      %v1334 = vpop.f32.mrb[0].mxu0
      %v1335 = vpop.f32.mrb[0].mxu0
      %v1336 = vadd.f32 0.0, %v1335
      %v1337 = vpop.f32.mrb[0].mxu0
      %1338 = vdwg.mxu0
      %1339 = vrot.lane.b32.xlu0 %v455, 64
      %v1340 = vpop.permute.xlu0 %1339
      %1341 = vrot.lane.b32.xlu0 %v457, 64
      %v1342 = vpop.permute.xlu0 %1341
      %1343 = vrot.lane.b32.xlu0 %v459, 64
      %v1344 = vpop.permute.xlu0 %1343
      %1345 = vrot.lane.b32.xlu0 %v461, 64
      %v1346 = vpop.permute.xlu0 %1345
      %1347 = vrot.lane.b32.xlu0 %v463, 64
      %v1348 = vpop.permute.xlu0 %1347
      %1349 = vrot.lane.b32.xlu0 %v465, 64
      %v1350 = vpop.permute.xlu0 %1349
      %1351 = vrot.lane.b32.xlu0 %v467, 64
      %v1352 = vpop.permute.xlu0 %1351
      %1353 = vrot.lane.b32.xlu0 %v469, 64
      %v1354 = vpop.permute.xlu0 %1353
      %v1356 = vsel %vm710, %v455, 0
      %v1359 = vsel %vm710, %v457, 0
      %v1362 = vsel %vm710, %v459, 0
      %v1365 = vsel %vm710, %v461, 0
      %v1368 = vsel %vm710, %v463, 0
      %v1371 = vsel %vm710, %v465, 0
      %v1374 = vsel %vm710, %v467, 0
      %v1377 = vsel %vm710, %v469, 0
      %v1380 = vsel %vm710, %v1340, 0
      %v1383 = vsel %vm710, %v1342, 0
      %v1386 = vsel %vm710, %v1344, 0
      %v1389 = vsel %vm710, %v1346, 0
      %v1392 = vsel %vm710, %v1348, 0
      %v1395 = vsel %vm710, %v1350, 0
      %v1398 = vsel %vm710, %v1352, 0
      %v1401 = vsel %vm710, %v1354, 0
      %1403 = vmatprep.subr.bf16.mxu0 0
      %1404 = vmatpush1.bf16.xpose.msra.mxu0 %v1380
      %1405 = vmatprep.subr.bf16.mxu0 0
      %1406 = vmatpush1.bf16.xpose.msra.mxu0 %v1383
      %1407 = vmatprep.subr.bf16.mxu0 0
      %1408 = vmatpush1.bf16.xpose.msra.mxu0 %v1386
      %1409 = vmatprep.subr.bf16.mxu0 0
      %1410 = vmatpush1.bf16.xpose.msra.mxu0 %v1389
      %1411 = vmatprep.subr.bf16.mxu0 0
      %1412 = vmatpush1.bf16.xpose.msra.mxu0 %v1392
      %1413 = vmatprep.subr.bf16.mxu0 0
      %1414 = vmatpush1.bf16.xpose.msra.mxu0 %v1395
      %1415 = vmatprep.subr.bf16.mxu0 0
      %1416 = vmatpush1.bf16.xpose.msra.mxu0 %v1398
      %1417 = vmatprep.subr.bf16.mxu0 0
      %1418 = vmatpush1.bf16.xpose.msra.mxu0 %v1401
      %1419 = vmatprep.subr.bf16.mxu0 0
      %1420 = vmatpush1.bf16.xpose.msra.mxu0 0
      %1421 = vmatprep.subr.bf16.mxu0 0
      %1422 = vmatpush1.bf16.xpose.msra.mxu0 0
      %1423 = vmatprep.subr.bf16.mxu0 0
      %1424 = vmatpush1.bf16.xpose.msra.mxu0 0
      %1425 = vmatprep.subr.bf16.mxu0 0
      %1426 = vmatpush1.bf16.xpose.msra.mxu0 0
      %1427 = vmatprep.subr.bf16.mxu0 0
      %1428 = vmatpush1.bf16.xpose.msra.mxu0 0
      %1429 = vmatprep.subr.bf16.mxu0 0
      %1430 = vmatpush1.bf16.xpose.msra.mxu0 0
      %1431 = vmatprep.subr.bf16.mxu0 0
      %1432 = vmatpush1.bf16.xpose.msra.mxu0 0
      %1433 = vmatprep.subr.bf16.mxu0 0
      %1434 = vmatpush1.bf16.xpose.msra.mxu0 0
      %1435 = vmatprep.mubr.bf16.mxu0 0
      %1436 = vmatmul.mubr.bf16.gmra.mrb[0].mxu0 %v1356
      %v1437 = vpop.f32.mrb[0].mxu0
      %v1438 = vadd.f32 0.0, %v1437
      %v1439 = vpop.f32.mrb[0].mxu0
      %v1440 = vpop.f32.mrb[0].mxu0
      %v1441 = vadd.f32 0.0, %v1440
      %v1442 = vpop.f32.mrb[0].mxu0
      %1443 = vmatprep.mubr.bf16.mxu0 0
      %1444 = vmatmul.mubr.bf16.gmra.mrb[0].mxu0 %v1359
      %v1445 = vpop.f32.mrb[0].mxu0
      %v1446 = vadd.f32 0.0, %v1445
      %v1447 = vpop.f32.mrb[0].mxu0
      %v1448 = vpop.f32.mrb[0].mxu0
      %v1449 = vadd.f32 0.0, %v1448
      %v1450 = vpop.f32.mrb[0].mxu0
      %1451 = vmatprep.mubr.bf16.mxu0 0
      %1452 = vmatmul.mubr.bf16.gmra.mrb[0].mxu0 %v1362
      %v1453 = vpop.f32.mrb[0].mxu0
      %v1454 = vadd.f32 0.0, %v1453
      %v1455 = vpop.f32.mrb[0].mxu0
      %v1456 = vpop.f32.mrb[0].mxu0
      %v1457 = vadd.f32 0.0, %v1456
      %v1458 = vpop.f32.mrb[0].mxu0
      %1459 = vmatprep.mubr.bf16.mxu0 0
      %1460 = vmatmul.mubr.bf16.gmra.mrb[0].mxu0 %v1365
      %v1461 = vpop.f32.mrb[0].mxu0
      %v1462 = vadd.f32 0.0, %v1461
      %v1463 = vpop.f32.mrb[0].mxu0
      %v1464 = vpop.f32.mrb[0].mxu0
      %v1465 = vadd.f32 0.0, %v1464
      %v1466 = vpop.f32.mrb[0].mxu0
      %1467 = vmatprep.mubr.bf16.mxu0 0
      %1468 = vmatmul.mubr.bf16.gmra.mrb[0].mxu0 %v1368
      %v1469 = vpop.f32.mrb[0].mxu0
      %v1470 = vadd.f32 0.0, %v1469
      %v1471 = vpop.f32.mrb[0].mxu0
      %v1472 = vpop.f32.mrb[0].mxu0
      %v1473 = vadd.f32 0.0, %v1472
      %v1474 = vpop.f32.mrb[0].mxu0
      %1475 = vmatprep.mubr.bf16.mxu0 0
      %1476 = vmatmul.mubr.bf16.gmra.mrb[0].mxu0 %v1371
      %v1477 = vpop.f32.mrb[0].mxu0
      %v1478 = vadd.f32 0.0, %v1477
      %v1479 = vpop.f32.mrb[0].mxu0
      %v1480 = vpop.f32.mrb[0].mxu0
      %v1481 = vadd.f32 0.0, %v1480
      %v1482 = vpop.f32.mrb[0].mxu0
      %1483 = vmatprep.mubr.bf16.mxu0 0
      %1484 = vmatmul.mubr.bf16.gmra.mrb[0].mxu0 %v1374
      %v1485 = vpop.f32.mrb[0].mxu0
      %v1486 = vadd.f32 0.0, %v1485
      %v1487 = vpop.f32.mrb[0].mxu0
      %v1488 = vpop.f32.mrb[0].mxu0
      %v1489 = vadd.f32 0.0, %v1488
      %v1490 = vpop.f32.mrb[0].mxu0
      %1491 = vmatprep.mubr.bf16.mxu0 0
      %1492 = vmatmul.mubr.bf16.gmra.mrb[0].mxu0 %v1377
      %v1493 = vpop.f32.mrb[0].mxu0
      %v1494 = vadd.f32 0.0, %v1493
      %v1495 = vpop.f32.mrb[0].mxu0
      %v1496 = vpop.f32.mrb[0].mxu0
      %v1497 = vadd.f32 0.0, %v1496
      %v1498 = vpop.f32.mrb[0].mxu0
      %1499 = vdwg.mxu0
      %1500 = vrot.lane.b32.xlu0 %v471, 64
      %v1501 = vpop.permute.xlu0 %1500
      %1502 = vrot.lane.b32.xlu0 %v473, 64
      %v1503 = vpop.permute.xlu0 %1502
      %1504 = vrot.lane.b32.xlu0 %v475, 64
      %v1505 = vpop.permute.xlu0 %1504
      %1506 = vrot.lane.b32.xlu0 %v477, 64
      %v1507 = vpop.permute.xlu0 %1506
      %1508 = vrot.lane.b32.xlu0 %v479, 64
      %v1509 = vpop.permute.xlu0 %1508
      %1510 = vrot.lane.b32.xlu0 %v481, 64
      %v1511 = vpop.permute.xlu0 %1510
      %1512 = vrot.lane.b32.xlu0 %v483, 64
      %v1513 = vpop.permute.xlu0 %1512
      %1514 = vrot.lane.b32.xlu0 %v485, 64
      %v1515 = vpop.permute.xlu0 %1514
      %v1517 = vsel %vm710, %v471, 0
      %v1520 = vsel %vm710, %v473, 0
      %v1523 = vsel %vm710, %v475, 0
      %v1526 = vsel %vm710, %v477, 0
      %v1529 = vsel %vm710, %v479, 0
      %v1532 = vsel %vm710, %v481, 0
      %v1535 = vsel %vm710, %v483, 0
      %v1538 = vsel %vm710, %v485, 0
      %v1541 = vsel %vm710, %v1501, 0
      %v1544 = vsel %vm710, %v1503, 0
      %v1547 = vsel %vm710, %v1505, 0
      %v1550 = vsel %vm710, %v1507, 0
      %v1553 = vsel %vm710, %v1509, 0
      %v1556 = vsel %vm710, %v1511, 0
      %v1559 = vsel %vm710, %v1513, 0
      %v1562 = vsel %vm710, %v1515, 0
      %1564 = vmatprep.subr.bf16.mxu0 0
      %1565 = vmatpush1.bf16.xpose.msra.mxu0 %v1541
      %1566 = vmatprep.subr.bf16.mxu0 0
      %1567 = vmatpush1.bf16.xpose.msra.mxu0 %v1544
      %1568 = vmatprep.subr.bf16.mxu0 0
      %1569 = vmatpush1.bf16.xpose.msra.mxu0 %v1547
      %1570 = vmatprep.subr.bf16.mxu0 0
      %1571 = vmatpush1.bf16.xpose.msra.mxu0 %v1550
      %1572 = vmatprep.subr.bf16.mxu0 0
      %1573 = vmatpush1.bf16.xpose.msra.mxu0 %v1553
      %1574 = vmatprep.subr.bf16.mxu0 0
      %1575 = vmatpush1.bf16.xpose.msra.mxu0 %v1556
      %1576 = vmatprep.subr.bf16.mxu0 0
      %1577 = vmatpush1.bf16.xpose.msra.mxu0 %v1559
      %1578 = vmatprep.subr.bf16.mxu0 0
      %1579 = vmatpush1.bf16.xpose.msra.mxu0 %v1562
      %1580 = vmatprep.subr.bf16.mxu0 0
      %1581 = vmatpush1.bf16.xpose.msra.mxu0 0
      %1582 = vmatprep.subr.bf16.mxu0 0
      %1583 = vmatpush1.bf16.xpose.msra.mxu0 0
      %1584 = vmatprep.subr.bf16.mxu0 0
      %1585 = vmatpush1.bf16.xpose.msra.mxu0 0
      %1586 = vmatprep.subr.bf16.mxu0 0
      %1587 = vmatpush1.bf16.xpose.msra.mxu0 0
      %1588 = vmatprep.subr.bf16.mxu0 0
      %1589 = vmatpush1.bf16.xpose.msra.mxu0 0
      %1590 = vmatprep.subr.bf16.mxu0 0
      %1591 = vmatpush1.bf16.xpose.msra.mxu0 0
      %1592 = vmatprep.subr.bf16.mxu0 0
      %1593 = vmatpush1.bf16.xpose.msra.mxu0 0
      %1594 = vmatprep.subr.bf16.mxu0 0
      %1595 = vmatpush1.bf16.xpose.msra.mxu0 0
      %1596 = vmatprep.mubr.bf16.mxu0 0
      %1597 = vmatmul.mubr.bf16.gmra.mrb[0].mxu0 %v1517
      %v1598 = vpop.f32.mrb[0].mxu0
      %v1599 = vadd.f32 0.0, %v1598
      %v1600 = vpop.f32.mrb[0].mxu0
      %v1601 = vpop.f32.mrb[0].mxu0
      %v1602 = vadd.f32 0.0, %v1601
      %v1603 = vpop.f32.mrb[0].mxu0
      %1604 = vmatprep.mubr.bf16.mxu0 0
      %1605 = vmatmul.mubr.bf16.gmra.mrb[0].mxu0 %v1520
      %v1606 = vpop.f32.mrb[0].mxu0
      %v1607 = vadd.f32 0.0, %v1606
      %v1608 = vpop.f32.mrb[0].mxu0
      %v1609 = vpop.f32.mrb[0].mxu0
      %v1610 = vadd.f32 0.0, %v1609
      %v1611 = vpop.f32.mrb[0].mxu0
      %1612 = vmatprep.mubr.bf16.mxu0 0
      %1613 = vmatmul.mubr.bf16.gmra.mrb[0].mxu0 %v1523
      %v1614 = vpop.f32.mrb[0].mxu0
      %v1615 = vadd.f32 0.0, %v1614
      %v1616 = vpop.f32.mrb[0].mxu0
      %v1617 = vpop.f32.mrb[0].mxu0
      %v1618 = vadd.f32 0.0, %v1617
      %v1619 = vpop.f32.mrb[0].mxu0
      %1620 = vmatprep.mubr.bf16.mxu0 0
      %1621 = vmatmul.mubr.bf16.gmra.mrb[0].mxu0 %v1526
      %v1622 = vpop.f32.mrb[0].mxu0
      %v1623 = vadd.f32 0.0, %v1622
      %v1624 = vpop.f32.mrb[0].mxu0
      %v1625 = vpop.f32.mrb[0].mxu0
      %v1626 = vadd.f32 0.0, %v1625
      %v1627 = vpop.f32.mrb[0].mxu0
      %1628 = vmatprep.mubr.bf16.mxu0 0
      %1629 = vmatmul.mubr.bf16.gmra.mrb[0].mxu0 %v1529
      %v1630 = vpop.f32.mrb[0].mxu0
      %v1631 = vadd.f32 0.0, %v1630
      %v1632 = vpop.f32.mrb[0].mxu0
      %v1633 = vpop.f32.mrb[0].mxu0
      %v1634 = vadd.f32 0.0, %v1633
      %v1635 = vpop.f32.mrb[0].mxu0
      %1636 = vmatprep.mubr.bf16.mxu0 0
      %1637 = vmatmul.mubr.bf16.gmra.mrb[0].mxu0 %v1532
      %v1638 = vpop.f32.mrb[0].mxu0
      %v1639 = vadd.f32 0.0, %v1638
      %v1640 = vpop.f32.mrb[0].mxu0
      %v1641 = vpop.f32.mrb[0].mxu0
      %v1642 = vadd.f32 0.0, %v1641
      %v1643 = vpop.f32.mrb[0].mxu0
      %1644 = vmatprep.mubr.bf16.mxu0 0
      %1645 = vmatmul.mubr.bf16.gmra.mrb[0].mxu0 %v1535
      %v1646 = vpop.f32.mrb[0].mxu0
      %v1647 = vadd.f32 0.0, %v1646
      %v1648 = vpop.f32.mrb[0].mxu0
      %v1649 = vpop.f32.mrb[0].mxu0
      %v1650 = vadd.f32 0.0, %v1649
      %v1651 = vpop.f32.mrb[0].mxu0
      %1652 = vmatprep.mubr.bf16.mxu0 0
      %1653 = vmatmul.mubr.bf16.gmra.mrb[0].mxu0 %v1538
      %v1654 = vpop.f32.mrb[0].mxu0
      %v1655 = vadd.f32 0.0, %v1654
      %v1656 = vpop.f32.mrb[0].mxu0
      %v1657 = vpop.f32.mrb[0].mxu0
      %v1658 = vadd.f32 0.0, %v1657
      %v1659 = vpop.f32.mrb[0].mxu0
      %1660 = vdwg.mxu0
      %1661 = vrot.lane.b32.xlu0 %v487, 64
      %v1662 = vpop.permute.xlu0 %1661
      %1663 = vrot.lane.b32.xlu0 %v489, 64
      %v1664 = vpop.permute.xlu0 %1663
      %1665 = vrot.lane.b32.xlu0 %v491, 64
      %v1666 = vpop.permute.xlu0 %1665
      %1667 = vrot.lane.b32.xlu0 %v493, 64
      %v1668 = vpop.permute.xlu0 %1667
      %1669 = vrot.lane.b32.xlu0 %v495, 64
      %v1670 = vpop.permute.xlu0 %1669
      %1671 = vrot.lane.b32.xlu0 %v497, 64
      %v1672 = vpop.permute.xlu0 %1671
      %1673 = vrot.lane.b32.xlu0 %v499, 64
      %v1674 = vpop.permute.xlu0 %1673
      %1675 = vrot.lane.b32.xlu0 %v501, 64
      %v1676 = vpop.permute.xlu0 %1675
      %v1678 = vsel %vm710, %v487, 0
      %v1681 = vsel %vm710, %v489, 0
      %v1684 = vsel %vm710, %v491, 0
      %v1687 = vsel %vm710, %v493, 0
      %v1690 = vsel %vm710, %v495, 0
      %v1693 = vsel %vm710, %v497, 0
      %v1696 = vsel %vm710, %v499, 0
      %v1699 = vsel %vm710, %v501, 0
      %v1702 = vsel %vm710, %v1662, 0
      %v1705 = vsel %vm710, %v1664, 0
      %v1708 = vsel %vm710, %v1666, 0
      %v1711 = vsel %vm710, %v1668, 0
      %v1714 = vsel %vm710, %v1670, 0
      %v1717 = vsel %vm710, %v1672, 0
      %v1720 = vsel %vm710, %v1674, 0
      %v1723 = vsel %vm710, %v1676, 0
      %1725 = vmatprep.subr.bf16.mxu0 0
      %1726 = vmatpush1.bf16.xpose.msra.mxu0 %v1702
      %1727 = vmatprep.subr.bf16.mxu0 0
      %1728 = vmatpush1.bf16.xpose.msra.mxu0 %v1705
      %1729 = vmatprep.subr.bf16.mxu0 0
      %1730 = vmatpush1.bf16.xpose.msra.mxu0 %v1708
      %1731 = vmatprep.subr.bf16.mxu0 0
      %1732 = vmatpush1.bf16.xpose.msra.mxu0 %v1711
      %1733 = vmatprep.subr.bf16.mxu0 0
      %1734 = vmatpush1.bf16.xpose.msra.mxu0 %v1714
      %1735 = vmatprep.subr.bf16.mxu0 0
      %1736 = vmatpush1.bf16.xpose.msra.mxu0 %v1717
      %1737 = vmatprep.subr.bf16.mxu0 0
      %1738 = vmatpush1.bf16.xpose.msra.mxu0 %v1720
      %1739 = vmatprep.subr.bf16.mxu0 0
      %1740 = vmatpush1.bf16.xpose.msra.mxu0 %v1723
      %1741 = vmatprep.subr.bf16.mxu0 0
      %1742 = vmatpush1.bf16.xpose.msra.mxu0 0
      %1743 = vmatprep.subr.bf16.mxu0 0
      %1744 = vmatpush1.bf16.xpose.msra.mxu0 0
      %1745 = vmatprep.subr.bf16.mxu0 0
      %1746 = vmatpush1.bf16.xpose.msra.mxu0 0
      %1747 = vmatprep.subr.bf16.mxu0 0
      %1748 = vmatpush1.bf16.xpose.msra.mxu0 0
      %1749 = vmatprep.subr.bf16.mxu0 0
      %1750 = vmatpush1.bf16.xpose.msra.mxu0 0
      %1751 = vmatprep.subr.bf16.mxu0 0
      %1752 = vmatpush1.bf16.xpose.msra.mxu0 0
      %1753 = vmatprep.subr.bf16.mxu0 0
      %1754 = vmatpush1.bf16.xpose.msra.mxu0 0
      %1755 = vmatprep.subr.bf16.mxu0 0
      %1756 = vmatpush1.bf16.xpose.msra.mxu0 0
      %1757 = vmatprep.mubr.bf16.mxu0 0
      %1758 = vmatmul.mubr.bf16.gmra.mrb[0].mxu0 %v1678
      %v1759 = vpop.f32.mrb[0].mxu0
      %v1760 = vadd.f32 0.0, %v1759
      %v1761 = vpop.f32.mrb[0].mxu0
      %v1762 = vpop.f32.mrb[0].mxu0
      %v1763 = vadd.f32 0.0, %v1762
      %v1764 = vpop.f32.mrb[0].mxu0
      %1765 = vmatprep.mubr.bf16.mxu0 0
      %1766 = vmatmul.mubr.bf16.gmra.mrb[0].mxu0 %v1681
      %v1767 = vpop.f32.mrb[0].mxu0
      %v1768 = vadd.f32 0.0, %v1767
      %v1769 = vpop.f32.mrb[0].mxu0
      %v1770 = vpop.f32.mrb[0].mxu0
      %v1771 = vadd.f32 0.0, %v1770
      %v1772 = vpop.f32.mrb[0].mxu0
      %1773 = vmatprep.mubr.bf16.mxu0 0
      %1774 = vmatmul.mubr.bf16.gmra.mrb[0].mxu0 %v1684
      %v1775 = vpop.f32.mrb[0].mxu0
      %v1776 = vadd.f32 0.0, %v1775
      %v1777 = vpop.f32.mrb[0].mxu0
      %v1778 = vpop.f32.mrb[0].mxu0
      %v1779 = vadd.f32 0.0, %v1778
      %v1780 = vpop.f32.mrb[0].mxu0
      %1781 = vmatprep.mubr.bf16.mxu0 0
      %1782 = vmatmul.mubr.bf16.gmra.mrb[0].mxu0 %v1687
      %v1783 = vpop.f32.mrb[0].mxu0
      %v1784 = vadd.f32 0.0, %v1783
      %v1785 = vpop.f32.mrb[0].mxu0
      %v1786 = vpop.f32.mrb[0].mxu0
      %v1787 = vadd.f32 0.0, %v1786
      %v1788 = vpop.f32.mrb[0].mxu0
      %1789 = vmatprep.mubr.bf16.mxu0 0
      %1790 = vmatmul.mubr.bf16.gmra.mrb[0].mxu0 %v1690
      %v1791 = vpop.f32.mrb[0].mxu0
      %v1792 = vadd.f32 0.0, %v1791
      %v1793 = vpop.f32.mrb[0].mxu0
      %v1794 = vpop.f32.mrb[0].mxu0
      %v1795 = vadd.f32 0.0, %v1794
      %v1796 = vpop.f32.mrb[0].mxu0
      %1797 = vmatprep.mubr.bf16.mxu0 0
      %1798 = vmatmul.mubr.bf16.gmra.mrb[0].mxu0 %v1693
      %v1799 = vpop.f32.mrb[0].mxu0
      %v1800 = vadd.f32 0.0, %v1799
      %v1801 = vpop.f32.mrb[0].mxu0
      %v1802 = vpop.f32.mrb[0].mxu0
      %v1803 = vadd.f32 0.0, %v1802
      %v1804 = vpop.f32.mrb[0].mxu0
      %1805 = vmatprep.mubr.bf16.mxu0 0
      %1806 = vmatmul.mubr.bf16.gmra.mrb[0].mxu0 %v1696
      %v1807 = vpop.f32.mrb[0].mxu0
      %v1808 = vadd.f32 0.0, %v1807
      %v1809 = vpop.f32.mrb[0].mxu0
      %v1810 = vpop.f32.mrb[0].mxu0
      %v1811 = vadd.f32 0.0, %v1810
      %v1812 = vpop.f32.mrb[0].mxu0
      %1813 = vmatprep.mubr.bf16.mxu0 0
      %1814 = vmatmul.mubr.bf16.gmra.mrb[0].mxu0 %v1699
      %v1815 = vpop.f32.mrb[0].mxu0
      %v1816 = vadd.f32 0.0, %v1815
      %v1817 = vpop.f32.mrb[0].mxu0
      %v1818 = vpop.f32.mrb[0].mxu0
      %v1819 = vadd.f32 0.0, %v1818
      %v1820 = vpop.f32.mrb[0].mxu0
      %1821 = vdwg.mxu0
      %1822 = vrot.lane.b32.xlu0 %v503, 64
      %v1823 = vpop.permute.xlu0 %1822
      %1824 = vrot.lane.b32.xlu0 %v505, 64
      %v1825 = vpop.permute.xlu0 %1824
      %1826 = vrot.lane.b32.xlu0 %v507, 64
      %v1827 = vpop.permute.xlu0 %1826
      %1828 = vrot.lane.b32.xlu0 %v509, 64
      %v1829 = vpop.permute.xlu0 %1828
      %1830 = vrot.lane.b32.xlu0 %v511, 64
      %v1831 = vpop.permute.xlu0 %1830
      %1832 = vrot.lane.b32.xlu0 %v513, 64
      %v1833 = vpop.permute.xlu0 %1832
      %1834 = vrot.lane.b32.xlu0 %v515, 64
      %v1835 = vpop.permute.xlu0 %1834
      %1836 = vrot.lane.b32.xlu0 %v517, 64
      %v1837 = vpop.permute.xlu0 %1836
      %v1839 = vsel %vm710, %v503, 0
      %v1842 = vsel %vm710, %v505, 0
      %v1845 = vsel %vm710, %v507, 0
      %v1848 = vsel %vm710, %v509, 0
      %v1851 = vsel %vm710, %v511, 0
      %v1854 = vsel %vm710, %v513, 0
      %v1857 = vsel %vm710, %v515, 0
      %v1860 = vsel %vm710, %v517, 0
      %v1863 = vsel %vm710, %v1823, 0
      %v1866 = vsel %vm710, %v1825, 0
      %v1869 = vsel %vm710, %v1827, 0
      %v1872 = vsel %vm710, %v1829, 0
      %v1875 = vsel %vm710, %v1831, 0
      %v1878 = vsel %vm710, %v1833, 0
      %v1881 = vsel %vm710, %v1835, 0
      %v1884 = vsel %vm710, %v1837, 0
      %1886 = vmatprep.subr.bf16.mxu0 0
      %1887 = vmatpush1.bf16.xpose.msra.mxu0 %v1863
      %1888 = vmatprep.subr.bf16.mxu0 0
      %1889 = vmatpush1.bf16.xpose.msra.mxu0 %v1866
      %1890 = vmatprep.subr.bf16.mxu0 0
      %1891 = vmatpush1.bf16.xpose.msra.mxu0 %v1869
      %1892 = vmatprep.subr.bf16.mxu0 0
      %1893 = vmatpush1.bf16.xpose.msra.mxu0 %v1872
      %1894 = vmatprep.subr.bf16.mxu0 0
      %1895 = vmatpush1.bf16.xpose.msra.mxu0 %v1875
      %1896 = vmatprep.subr.bf16.mxu0 0
      %1897 = vmatpush1.bf16.xpose.msra.mxu0 %v1878
      %1898 = vmatprep.subr.bf16.mxu0 0
      %1899 = vmatpush1.bf16.xpose.msra.mxu0 %v1881
      %1900 = vmatprep.subr.bf16.mxu0 0
      %1901 = vmatpush1.bf16.xpose.msra.mxu0 %v1884
      %1902 = vmatprep.subr.bf16.mxu0 0
      %1903 = vmatpush1.bf16.xpose.msra.mxu0 0
      %1904 = vmatprep.subr.bf16.mxu0 0
      %1905 = vmatpush1.bf16.xpose.msra.mxu0 0
      %1906 = vmatprep.subr.bf16.mxu0 0
      %1907 = vmatpush1.bf16.xpose.msra.mxu0 0
      %1908 = vmatprep.subr.bf16.mxu0 0
      %1909 = vmatpush1.bf16.xpose.msra.mxu0 0
      %1910 = vmatprep.subr.bf16.mxu0 0
      %1911 = vmatpush1.bf16.xpose.msra.mxu0 0
      %1912 = vmatprep.subr.bf16.mxu0 0
      %1913 = vmatpush1.bf16.xpose.msra.mxu0 0
      %1914 = vmatprep.subr.bf16.mxu0 0
      %1915 = vmatpush1.bf16.xpose.msra.mxu0 0
      %1916 = vmatprep.subr.bf16.mxu0 0
      %1917 = vmatpush1.bf16.xpose.msra.mxu0 0
      %1918 = vmatprep.mubr.bf16.mxu0 0
      %1919 = vmatmul.mubr.bf16.gmra.mrb[0].mxu0 %v1839
      %v1920 = vpop.f32.mrb[0].mxu0
      %v1921 = vadd.f32 0.0, %v1920
      %v1922 = vpop.f32.mrb[0].mxu0
      %v1923 = vpop.f32.mrb[0].mxu0
      %v1924 = vadd.f32 0.0, %v1923
      %v1925 = vpop.f32.mrb[0].mxu0
      %1926 = vmatprep.mubr.bf16.mxu0 0
      %1927 = vmatmul.mubr.bf16.gmra.mrb[0].mxu0 %v1842
      %v1928 = vpop.f32.mrb[0].mxu0
      %v1929 = vadd.f32 0.0, %v1928
      %v1930 = vpop.f32.mrb[0].mxu0
      %v1931 = vpop.f32.mrb[0].mxu0
      %v1932 = vadd.f32 0.0, %v1931
      %v1933 = vpop.f32.mrb[0].mxu0
      %1934 = vmatprep.mubr.bf16.mxu0 0
      %1935 = vmatmul.mubr.bf16.gmra.mrb[0].mxu0 %v1845
      %v1936 = vpop.f32.mrb[0].mxu0
      %v1937 = vadd.f32 0.0, %v1936
      %v1938 = vpop.f32.mrb[0].mxu0
      %v1939 = vpop.f32.mrb[0].mxu0
      %v1940 = vadd.f32 0.0, %v1939
      %v1941 = vpop.f32.mrb[0].mxu0
      %1942 = vmatprep.mubr.bf16.mxu0 0
      %1943 = vmatmul.mubr.bf16.gmra.mrb[0].mxu0 %v1848
      %v1944 = vpop.f32.mrb[0].mxu0
      %v1945 = vadd.f32 0.0, %v1944
      %v1946 = vpop.f32.mrb[0].mxu0
      %v1947 = vpop.f32.mrb[0].mxu0
      %v1948 = vadd.f32 0.0, %v1947
      %v1949 = vpop.f32.mrb[0].mxu0
      %1950 = vmatprep.mubr.bf16.mxu0 0
      %1951 = vmatmul.mubr.bf16.gmra.mrb[0].mxu0 %v1851
      %v1952 = vpop.f32.mrb[0].mxu0
      %v1953 = vadd.f32 0.0, %v1952
      %v1954 = vpop.f32.mrb[0].mxu0
      %v1955 = vpop.f32.mrb[0].mxu0
      %v1956 = vadd.f32 0.0, %v1955
      %v1957 = vpop.f32.mrb[0].mxu0
      %1958 = vmatprep.mubr.bf16.mxu0 0
      %1959 = vmatmul.mubr.bf16.gmra.mrb[0].mxu0 %v1854
      %v1960 = vpop.f32.mrb[0].mxu0
      %v1961 = vadd.f32 0.0, %v1960
      %v1962 = vpop.f32.mrb[0].mxu0
      %v1963 = vpop.f32.mrb[0].mxu0
      %v1964 = vadd.f32 0.0, %v1963
      %v1965 = vpop.f32.mrb[0].mxu0
      %1966 = vmatprep.mubr.bf16.mxu0 0
      %1967 = vmatmul.mubr.bf16.gmra.mrb[0].mxu0 %v1857
      %v1968 = vpop.f32.mrb[0].mxu0
      %v1969 = vadd.f32 0.0, %v1968
      %v1970 = vpop.f32.mrb[0].mxu0
      %v1971 = vpop.f32.mrb[0].mxu0
      %v1972 = vadd.f32 0.0, %v1971
      %v1973 = vpop.f32.mrb[0].mxu0
      %1974 = vmatprep.mubr.bf16.mxu0 0
      %1975 = vmatmul.mubr.bf16.gmra.mrb[0].mxu0 %v1860
      %v1976 = vpop.f32.mrb[0].mxu0
      %v1977 = vadd.f32 0.0, %v1976
      %v1978 = vpop.f32.mrb[0].mxu0
      %v1979 = vpop.f32.mrb[0].mxu0
      %v1980 = vadd.f32 0.0, %v1979
      %v1981 = vpop.f32.mrb[0].mxu0
      %1982 = vdwg.mxu0
      %1983 = vmax.xlane.f32.xlu0 %v794
      %v1984 = vpop.xlane.xlu0 %1983
      %1985 = vmax.xlane.f32.xlu0 %v797
      %v1986 = vpop.xlane.xlu0 %1985
      %1987 = vmax.xlane.f32.xlu0 %v802
      %v1988 = vpop.xlane.xlu0 %1987
      %1989 = vmax.xlane.f32.xlu0 %v805
      %v1990 = vpop.xlane.xlu0 %1989
      %1991 = vmax.xlane.f32.xlu0 %v810
      %v1992 = vpop.xlane.xlu0 %1991
      %1993 = vmax.xlane.f32.xlu0 %v813
      %v1994 = vpop.xlane.xlu0 %1993
      %1995 = vmax.xlane.f32.xlu0 %v818
      %v1996 = vpop.xlane.xlu0 %1995
      %1997 = vmax.xlane.f32.xlu0 %v821
      %v1998 = vpop.xlane.xlu0 %1997
      %1999 = vmax.xlane.f32.xlu0 %v826
      %v2000 = vpop.xlane.xlu0 %1999
      %2001 = vmax.xlane.f32.xlu0 %v829
      %v2002 = vpop.xlane.xlu0 %2001
      %2003 = vmax.xlane.f32.xlu0 %v834
      %v2004 = vpop.xlane.xlu0 %2003
      %2005 = vmax.xlane.f32.xlu0 %v837
      %v2006 = vpop.xlane.xlu0 %2005
      %2007 = vmax.xlane.f32.xlu0 %v842
      %v2008 = vpop.xlane.xlu0 %2007
      %2009 = vmax.xlane.f32.xlu0 %v845
      %v2010 = vpop.xlane.xlu0 %2009
      %2011 = vmax.xlane.f32.xlu0 %v850
      %v2012 = vpop.xlane.xlu0 %2011
      %2013 = vmax.xlane.f32.xlu0 %v853
      %v2014 = vpop.xlane.xlu0 %2013
      %2015 = vmax.xlane.f32.xlu0 %v955
      %v2016 = vpop.xlane.xlu0 %2015
      %2017 = vmax.xlane.f32.xlu0 %v958
      %v2018 = vpop.xlane.xlu0 %2017
      %2019 = vmax.xlane.f32.xlu0 %v963
      %v2020 = vpop.xlane.xlu0 %2019
      %2021 = vmax.xlane.f32.xlu0 %v966
      %v2022 = vpop.xlane.xlu0 %2021
      %2023 = vmax.xlane.f32.xlu0 %v971
      %v2024 = vpop.xlane.xlu0 %2023
      %2025 = vmax.xlane.f32.xlu0 %v974
      %v2026 = vpop.xlane.xlu0 %2025
      %2027 = vmax.xlane.f32.xlu0 %v979
      %v2028 = vpop.xlane.xlu0 %2027
      %2029 = vmax.xlane.f32.xlu0 %v982
      %v2030 = vpop.xlane.xlu0 %2029
      %2031 = vmax.xlane.f32.xlu0 %v987
      %v2032 = vpop.xlane.xlu0 %2031
      %2033 = vmax.xlane.f32.xlu0 %v990
      %v2034 = vpop.xlane.xlu0 %2033
      %2035 = vmax.xlane.f32.xlu0 %v995
      %v2036 = vpop.xlane.xlu0 %2035
      %2037 = vmax.xlane.f32.xlu0 %v998
      %v2038 = vpop.xlane.xlu0 %2037
      %2039 = vmax.xlane.f32.xlu0 %v1003
      %v2040 = vpop.xlane.xlu0 %2039
      %2041 = vmax.xlane.f32.xlu0 %v1006
      %v2042 = vpop.xlane.xlu0 %2041
      %2043 = vmax.xlane.f32.xlu0 %v1011
      %v2044 = vpop.xlane.xlu0 %2043
      %2045 = vmax.xlane.f32.xlu0 %v1014
      %v2046 = vpop.xlane.xlu0 %2045
      %2047 = vmax.xlane.f32.xlu0 %v1116
      %v2048 = vpop.xlane.xlu0 %2047
      %2049 = vmax.xlane.f32.xlu0 %v1119
      %v2050 = vpop.xlane.xlu0 %2049
      %2051 = vmax.xlane.f32.xlu0 %v1124
      %v2052 = vpop.xlane.xlu0 %2051
      %2053 = vmax.xlane.f32.xlu0 %v1127
      %v2054 = vpop.xlane.xlu0 %2053
      %2055 = vmax.xlane.f32.xlu0 %v1132
      %v2056 = vpop.xlane.xlu0 %2055
      %2057 = vmax.xlane.f32.xlu0 %v1135
      %v2058 = vpop.xlane.xlu0 %2057
      %2059 = vmax.xlane.f32.xlu0 %v1140
      %v2060 = vpop.xlane.xlu0 %2059
      %2061 = vmax.xlane.f32.xlu0 %v1143
      %v2062 = vpop.xlane.xlu0 %2061
      %2063 = vmax.xlane.f32.xlu0 %v1148
      %v2064 = vpop.xlane.xlu0 %2063
      %2065 = vmax.xlane.f32.xlu0 %v1151
      %v2066 = vpop.xlane.xlu0 %2065
      %2067 = vmax.xlane.f32.xlu0 %v1156
      %v2068 = vpop.xlane.xlu0 %2067
      %2069 = vmax.xlane.f32.xlu0 %v1159
      %v2070 = vpop.xlane.xlu0 %2069
      %2071 = vmax.xlane.f32.xlu0 %v1164
      %v2072 = vpop.xlane.xlu0 %2071
      %2073 = vmax.xlane.f32.xlu0 %v1167
      %v2074 = vpop.xlane.xlu0 %2073
      %2075 = vmax.xlane.f32.xlu0 %v1172
      %v2076 = vpop.xlane.xlu0 %2075
      %2077 = vmax.xlane.f32.xlu0 %v1175
      %v2078 = vpop.xlane.xlu0 %2077
      %2079 = vmax.xlane.f32.xlu0 %v1277
      %v2080 = vpop.xlane.xlu0 %2079
      %2081 = vmax.xlane.f32.xlu0 %v1280
      %v2082 = vpop.xlane.xlu0 %2081
      %2083 = vmax.xlane.f32.xlu0 %v1285
      %v2084 = vpop.xlane.xlu0 %2083
      %2085 = vmax.xlane.f32.xlu0 %v1288
      %v2086 = vpop.xlane.xlu0 %2085
      %2087 = vmax.xlane.f32.xlu0 %v1293
      %v2088 = vpop.xlane.xlu0 %2087
      %2089 = vmax.xlane.f32.xlu0 %v1296
      %v2090 = vpop.xlane.xlu0 %2089
      %2091 = vmax.xlane.f32.xlu0 %v1301
      %v2092 = vpop.xlane.xlu0 %2091
      %2093 = vmax.xlane.f32.xlu0 %v1304
      %v2094 = vpop.xlane.xlu0 %2093
      %2095 = vmax.xlane.f32.xlu0 %v1309
      %v2096 = vpop.xlane.xlu0 %2095
      %2097 = vmax.xlane.f32.xlu0 %v1312
      %v2098 = vpop.xlane.xlu0 %2097
      %2099 = vmax.xlane.f32.xlu0 %v1317
      %v2100 = vpop.xlane.xlu0 %2099
      %2101 = vmax.xlane.f32.xlu0 %v1320
      %v2102 = vpop.xlane.xlu0 %2101
      %2103 = vmax.xlane.f32.xlu0 %v1325
      %v2104 = vpop.xlane.xlu0 %2103
      %2105 = vmax.xlane.f32.xlu0 %v1328
      %v2106 = vpop.xlane.xlu0 %2105
      %2107 = vmax.xlane.f32.xlu0 %v1333
      %v2108 = vpop.xlane.xlu0 %2107
      %2109 = vmax.xlane.f32.xlu0 %v1336
      %v2110 = vpop.xlane.xlu0 %2109
      %2111 = vmax.xlane.f32.xlu0 %v1438
      %v2112 = vpop.xlane.xlu0 %2111
      %2113 = vmax.xlane.f32.xlu0 %v1441
      %v2114 = vpop.xlane.xlu0 %2113
      %2115 = vmax.xlane.f32.xlu0 %v1446
      %v2116 = vpop.xlane.xlu0 %2115
      %2117 = vmax.xlane.f32.xlu0 %v1449
      %v2118 = vpop.xlane.xlu0 %2117
      %2119 = vmax.xlane.f32.xlu0 %v1454
      %v2120 = vpop.xlane.xlu0 %2119
      %2121 = vmax.xlane.f32.xlu0 %v1457
      %v2122 = vpop.xlane.xlu0 %2121
      %2123 = vmax.xlane.f32.xlu0 %v1462
      %v2124 = vpop.xlane.xlu0 %2123
      %2125 = vmax.xlane.f32.xlu0 %v1465
      %v2126 = vpop.xlane.xlu0 %2125
      %2127 = vmax.xlane.f32.xlu0 %v1470
      %v2128 = vpop.xlane.xlu0 %2127
      %2129 = vmax.xlane.f32.xlu0 %v1473
      %v2130 = vpop.xlane.xlu0 %2129
      %2131 = vmax.xlane.f32.xlu0 %v1478
      %v2132 = vpop.xlane.xlu0 %2131
      %2133 = vmax.xlane.f32.xlu0 %v1481
      %v2134 = vpop.xlane.xlu0 %2133
      %2135 = vmax.xlane.f32.xlu0 %v1486
      %v2136 = vpop.xlane.xlu0 %2135
      %2137 = vmax.xlane.f32.xlu0 %v1489
      %v2138 = vpop.xlane.xlu0 %2137
      %2139 = vmax.xlane.f32.xlu0 %v1494
      %v2140 = vpop.xlane.xlu0 %2139
      %2141 = vmax.xlane.f32.xlu0 %v1497
      %v2142 = vpop.xlane.xlu0 %2141
      %2143 = vmax.xlane.f32.xlu0 %v1599
      %v2144 = vpop.xlane.xlu0 %2143
      %2145 = vmax.xlane.f32.xlu0 %v1602
      %v2146 = vpop.xlane.xlu0 %2145
      %2147 = vmax.xlane.f32.xlu0 %v1607
      %v2148 = vpop.xlane.xlu0 %2147
      %2149 = vmax.xlane.f32.xlu0 %v1610
      %v2150 = vpop.xlane.xlu0 %2149
      %2151 = vmax.xlane.f32.xlu0 %v1615
      %v2152 = vpop.xlane.xlu0 %2151
      %2153 = vmax.xlane.f32.xlu0 %v1618
      %v2154 = vpop.xlane.xlu0 %2153
      %2155 = vmax.xlane.f32.xlu0 %v1623
      %v2156 = vpop.xlane.xlu0 %2155
      %2157 = vmax.xlane.f32.xlu0 %v1626
      %v2158 = vpop.xlane.xlu0 %2157
      %2159 = vmax.xlane.f32.xlu0 %v1631
      %v2160 = vpop.xlane.xlu0 %2159
      %2161 = vmax.xlane.f32.xlu0 %v1634
      %v2162 = vpop.xlane.xlu0 %2161
      %2163 = vmax.xlane.f32.xlu0 %v1639
      %v2164 = vpop.xlane.xlu0 %2163
      %2165 = vmax.xlane.f32.xlu0 %v1642
      %v2166 = vpop.xlane.xlu0 %2165
      %2167 = vmax.xlane.f32.xlu0 %v1647
      %v2168 = vpop.xlane.xlu0 %2167
      %2169 = vmax.xlane.f32.xlu0 %v1650
      %v2170 = vpop.xlane.xlu0 %2169
      %2171 = vmax.xlane.f32.xlu0 %v1655
      %v2172 = vpop.xlane.xlu0 %2171
      %2173 = vmax.xlane.f32.xlu0 %v1658
      %v2174 = vpop.xlane.xlu0 %2173
      %2175 = vmax.xlane.f32.xlu0 %v1760
      %v2176 = vpop.xlane.xlu0 %2175
      %2177 = vmax.xlane.f32.xlu0 %v1763
      %v2178 = vpop.xlane.xlu0 %2177
      %2179 = vmax.xlane.f32.xlu0 %v1768
      %v2180 = vpop.xlane.xlu0 %2179
      %2181 = vmax.xlane.f32.xlu0 %v1771
      %v2182 = vpop.xlane.xlu0 %2181
      %2183 = vmax.xlane.f32.xlu0 %v1776
      %v2184 = vpop.xlane.xlu0 %2183
      %2185 = vmax.xlane.f32.xlu0 %v1779
      %v2186 = vpop.xlane.xlu0 %2185
      %2187 = vmax.xlane.f32.xlu0 %v1784
      %v2188 = vpop.xlane.xlu0 %2187
      %2189 = vmax.xlane.f32.xlu0 %v1787
      %v2190 = vpop.xlane.xlu0 %2189
      %2191 = vmax.xlane.f32.xlu0 %v1792
      %v2192 = vpop.xlane.xlu0 %2191
      %2193 = vmax.xlane.f32.xlu0 %v1795
      %v2194 = vpop.xlane.xlu0 %2193
      %2195 = vmax.xlane.f32.xlu0 %v1800
      %v2196 = vpop.xlane.xlu0 %2195
      %2197 = vmax.xlane.f32.xlu0 %v1803
      %v2198 = vpop.xlane.xlu0 %2197
      %2199 = vmax.xlane.f32.xlu0 %v1808
      %v2200 = vpop.xlane.xlu0 %2199
      %2201 = vmax.xlane.f32.xlu0 %v1811
      %v2202 = vpop.xlane.xlu0 %2201
      %2203 = vmax.xlane.f32.xlu0 %v1816
      %v2204 = vpop.xlane.xlu0 %2203
      %2205 = vmax.xlane.f32.xlu0 %v1819
      %v2206 = vpop.xlane.xlu0 %2205
      %2207 = vmax.xlane.f32.xlu0 %v1921
      %v2208 = vpop.xlane.xlu0 %2207
      %2209 = vmax.xlane.f32.xlu0 %v1924
      %v2210 = vpop.xlane.xlu0 %2209
      %2211 = vmax.xlane.f32.xlu0 %v1929
      %v2212 = vpop.xlane.xlu0 %2211
      %2213 = vmax.xlane.f32.xlu0 %v1932
      %v2214 = vpop.xlane.xlu0 %2213
      %2215 = vmax.xlane.f32.xlu0 %v1937
      %v2216 = vpop.xlane.xlu0 %2215
      %2217 = vmax.xlane.f32.xlu0 %v1940
      %v2218 = vpop.xlane.xlu0 %2217
      %2219 = vmax.xlane.f32.xlu0 %v1945
      %v2220 = vpop.xlane.xlu0 %2219
      %2221 = vmax.xlane.f32.xlu0 %v1948
      %v2222 = vpop.xlane.xlu0 %2221
      %2223 = vmax.xlane.f32.xlu0 %v1953
      %v2224 = vpop.xlane.xlu0 %2223
      %2225 = vmax.xlane.f32.xlu0 %v1956
      %v2226 = vpop.xlane.xlu0 %2225
      %2227 = vmax.xlane.f32.xlu0 %v1961
      %v2228 = vpop.xlane.xlu0 %2227
      %2229 = vmax.xlane.f32.xlu0 %v1964
      %v2230 = vpop.xlane.xlu0 %2229
      %2231 = vmax.xlane.f32.xlu0 %v1969
      %v2232 = vpop.xlane.xlu0 %2231
      %2233 = vmax.xlane.f32.xlu0 %v1972
      %v2234 = vpop.xlane.xlu0 %2233
      %2235 = vmax.xlane.f32.xlu0 %v1977
      %v2236 = vpop.xlane.xlu0 %2235
      %2237 = vmax.xlane.f32.xlu0 %v1980
      %v2238 = vpop.xlane.xlu0 %2237
      %v2239 = vsub.f32 %v794, %v1984
      %v2240 = vsub.f32 %v797, %v1986
      %v2241 = vsub.f32 %v802, %v1988
      %v2242 = vsub.f32 %v805, %v1990
      %v2243 = vsub.f32 %v810, %v1992
      %v2244 = vsub.f32 %v813, %v1994
      %v2245 = vsub.f32 %v818, %v1996
      %v2246 = vsub.f32 %v821, %v1998
      %v2247 = vsub.f32 %v826, %v2000
      %v2248 = vsub.f32 %v829, %v2002
      %v2249 = vsub.f32 %v834, %v2004
      %v2250 = vsub.f32 %v837, %v2006
      %v2251 = vsub.f32 %v842, %v2008
      %v2252 = vsub.f32 %v845, %v2010
      %v2253 = vsub.f32 %v850, %v2012
      %v2254 = vsub.f32 %v853, %v2014
      %v2255 = vsub.f32 %v955, %v2016
      %v2256 = vsub.f32 %v958, %v2018
      %v2257 = vsub.f32 %v963, %v2020
      %v2258 = vsub.f32 %v966, %v2022
      %v2259 = vsub.f32 %v971, %v2024
      %v2260 = vsub.f32 %v974, %v2026
      %v2261 = vsub.f32 %v979, %v2028
      %v2262 = vsub.f32 %v982, %v2030
      %v2263 = vsub.f32 %v987, %v2032
      %v2264 = vsub.f32 %v990, %v2034
      %v2265 = vsub.f32 %v995, %v2036
      %v2266 = vsub.f32 %v998, %v2038
      %v2267 = vsub.f32 %v1003, %v2040
      %v2268 = vsub.f32 %v1006, %v2042
      %v2269 = vsub.f32 %v1011, %v2044
      %v2270 = vsub.f32 %v1014, %v2046
      %v2271 = vsub.f32 %v1116, %v2048
      %v2272 = vsub.f32 %v1119, %v2050
      %v2273 = vsub.f32 %v1124, %v2052
      %v2274 = vsub.f32 %v1127, %v2054
      %v2275 = vsub.f32 %v1132, %v2056
      %v2276 = vsub.f32 %v1135, %v2058
      %v2277 = vsub.f32 %v1140, %v2060
      %v2278 = vsub.f32 %v1143, %v2062
      %v2279 = vsub.f32 %v1148, %v2064
      %v2280 = vsub.f32 %v1151, %v2066
      %v2281 = vsub.f32 %v1156, %v2068
      %v2282 = vsub.f32 %v1159, %v2070
      %v2283 = vsub.f32 %v1164, %v2072
      %v2284 = vsub.f32 %v1167, %v2074
      %v2285 = vsub.f32 %v1172, %v2076
      %v2286 = vsub.f32 %v1175, %v2078
      %v2287 = vsub.f32 %v1277, %v2080
      %v2288 = vsub.f32 %v1280, %v2082
      %v2289 = vsub.f32 %v1285, %v2084
      %v2290 = vsub.f32 %v1288, %v2086
      %v2291 = vsub.f32 %v1293, %v2088
      %v2292 = vsub.f32 %v1296, %v2090
      %v2293 = vsub.f32 %v1301, %v2092
      %v2294 = vsub.f32 %v1304, %v2094
      %v2295 = vsub.f32 %v1309, %v2096
      %v2296 = vsub.f32 %v1312, %v2098
      %v2297 = vsub.f32 %v1317, %v2100
      %v2298 = vsub.f32 %v1320, %v2102
      %v2299 = vsub.f32 %v1325, %v2104
      %v2300 = vsub.f32 %v1328, %v2106
      %v2301 = vsub.f32 %v1333, %v2108
      %v2302 = vsub.f32 %v1336, %v2110
      %v2303 = vsub.f32 %v1438, %v2112
      %v2304 = vsub.f32 %v1441, %v2114
      %v2305 = vsub.f32 %v1446, %v2116
      %v2306 = vsub.f32 %v1449, %v2118
      %v2307 = vsub.f32 %v1454, %v2120
      %v2308 = vsub.f32 %v1457, %v2122
      %v2309 = vsub.f32 %v1462, %v2124
      %v2310 = vsub.f32 %v1465, %v2126
      %v2311 = vsub.f32 %v1470, %v2128
      %v2312 = vsub.f32 %v1473, %v2130
      %v2313 = vsub.f32 %v1478, %v2132
      %v2314 = vsub.f32 %v1481, %v2134
      %v2315 = vsub.f32 %v1486, %v2136
      %v2316 = vsub.f32 %v1489, %v2138
      %v2317 = vsub.f32 %v1494, %v2140
      %v2318 = vsub.f32 %v1497, %v2142
      %v2319 = vsub.f32 %v1599, %v2144
      %v2320 = vsub.f32 %v1602, %v2146
      %v2321 = vsub.f32 %v1607, %v2148
      %v2322 = vsub.f32 %v1610, %v2150
      %v2323 = vsub.f32 %v1615, %v2152
      %v2324 = vsub.f32 %v1618, %v2154
      %v2325 = vsub.f32 %v1623, %v2156
      %v2326 = vsub.f32 %v1626, %v2158
      %v2327 = vsub.f32 %v1631, %v2160
      %v2328 = vsub.f32 %v1634, %v2162
      %v2329 = vsub.f32 %v1639, %v2164
      %v2330 = vsub.f32 %v1642, %v2166
      %v2331 = vsub.f32 %v1647, %v2168
      %v2332 = vsub.f32 %v1650, %v2170
      %v2333 = vsub.f32 %v1655, %v2172
      %v2334 = vsub.f32 %v1658, %v2174
      %v2335 = vsub.f32 %v1760, %v2176
      %v2336 = vsub.f32 %v1763, %v2178
      %v2337 = vsub.f32 %v1768, %v2180
      %v2338 = vsub.f32 %v1771, %v2182
      %v2339 = vsub.f32 %v1776, %v2184
      %v2340 = vsub.f32 %v1779, %v2186
      %v2341 = vsub.f32 %v1784, %v2188
      %v2342 = vsub.f32 %v1787, %v2190
      %v2343 = vsub.f32 %v1792, %v2192
      %v2344 = vsub.f32 %v1795, %v2194
      %v2345 = vsub.f32 %v1800, %v2196
      %v2346 = vsub.f32 %v1803, %v2198
      %v2347 = vsub.f32 %v1808, %v2200
      %v2348 = vsub.f32 %v1811, %v2202
      %v2349 = vsub.f32 %v1816, %v2204
      %v2350 = vsub.f32 %v1819, %v2206
      %v2351 = vsub.f32 %v1921, %v2208
      %v2352 = vsub.f32 %v1924, %v2210
      %v2353 = vsub.f32 %v1929, %v2212
      %v2354 = vsub.f32 %v1932, %v2214
      %v2355 = vsub.f32 %v1937, %v2216
      %v2356 = vsub.f32 %v1940, %v2218
      %v2357 = vsub.f32 %v1945, %v2220
      %v2358 = vsub.f32 %v1948, %v2222
      %v2359 = vsub.f32 %v1953, %v2224
      %v2360 = vsub.f32 %v1956, %v2226
      %v2361 = vsub.f32 %v1961, %v2228
      %v2362 = vsub.f32 %v1964, %v2230
      %v2363 = vsub.f32 %v1969, %v2232
      %v2364 = vsub.f32 %v1972, %v2234
      %v2365 = vsub.f32 %v1977, %v2236
      %v2366 = vsub.f32 %v1980, %v2238
      %v2367 = vmul.f32 %v2239, 1.442695
      %v2368 = vpow.pop %v2367
      %v2369 = vmul.f32 %v2240, 1.442695
      %v2370 = vpow.pop %v2369
      %v2371 = vmul.f32 %v2241, 1.442695
      %v2372 = vpow.pop %v2371
      %v2373 = vmul.f32 %v2242, 1.442695
      %v2374 = vpow.pop %v2373
      %v2375 = vmul.f32 %v2243, 1.442695
      %v2376 = vpow.pop %v2375
      %v2377 = vmul.f32 %v2244, 1.442695
      %v2378 = vpow.pop %v2377
      %v2379 = vmul.f32 %v2245, 1.442695
      %v2380 = vpow.pop %v2379
      %v2381 = vmul.f32 %v2246, 1.442695
      %v2382 = vpow.pop %v2381
      %v2383 = vmul.f32 %v2247, 1.442695
      %v2384 = vpow.pop %v2383
      %v2385 = vmul.f32 %v2248, 1.442695
      %v2386 = vpow.pop %v2385
      %v2387 = vmul.f32 %v2249, 1.442695
      %v2388 = vpow.pop %v2387
      %v2389 = vmul.f32 %v2250, 1.442695
      %v2390 = vpow.pop %v2389
      %v2391 = vmul.f32 %v2251, 1.442695
      %v2392 = vpow.pop %v2391
      %v2393 = vmul.f32 %v2252, 1.442695
      %v2394 = vpow.pop %v2393
      %v2395 = vmul.f32 %v2253, 1.442695
      %v2396 = vpow.pop %v2395
      %v2397 = vmul.f32 %v2254, 1.442695
      %v2398 = vpow.pop %v2397
      %v2399 = vmul.f32 %v2255, 1.442695
      %v2400 = vpow.pop %v2399
      %v2401 = vmul.f32 %v2256, 1.442695
      %v2402 = vpow.pop %v2401
      %v2403 = vmul.f32 %v2257, 1.442695
      %v2404 = vpow.pop %v2403
      %v2405 = vmul.f32 %v2258, 1.442695
      %v2406 = vpow.pop %v2405
      %v2407 = vmul.f32 %v2259, 1.442695
      %v2408 = vpow.pop %v2407
      %v2409 = vmul.f32 %v2260, 1.442695
      %v2410 = vpow.pop %v2409
      %v2411 = vmul.f32 %v2261, 1.442695
      %v2412 = vpow.pop %v2411
      %v2413 = vmul.f32 %v2262, 1.442695
      %v2414 = vpow.pop %v2413
      %v2415 = vmul.f32 %v2263, 1.442695
      %v2416 = vpow.pop %v2415
      %v2417 = vmul.f32 %v2264, 1.442695
      %v2418 = vpow.pop %v2417
      %v2419 = vmul.f32 %v2265, 1.442695
      %v2420 = vpow.pop %v2419
      %v2421 = vmul.f32 %v2266, 1.442695
      %v2422 = vpow.pop %v2421
      %v2423 = vmul.f32 %v2267, 1.442695
      %v2424 = vpow.pop %v2423
      %v2425 = vmul.f32 %v2268, 1.442695
      %v2426 = vpow.pop %v2425
      %v2427 = vmul.f32 %v2269, 1.442695
      %v2428 = vpow.pop %v2427
      %v2429 = vmul.f32 %v2270, 1.442695
      %v2430 = vpow.pop %v2429
      %v2431 = vmul.f32 %v2271, 1.442695
      %v2432 = vpow.pop %v2431
      %v2433 = vmul.f32 %v2272, 1.442695
      %v2434 = vpow.pop %v2433
      %v2435 = vmul.f32 %v2273, 1.442695
      %v2436 = vpow.pop %v2435
      %v2437 = vmul.f32 %v2274, 1.442695
      %v2438 = vpow.pop %v2437
      %v2439 = vmul.f32 %v2275, 1.442695
      %v2440 = vpow.pop %v2439
      %v2441 = vmul.f32 %v2276, 1.442695
      %v2442 = vpow.pop %v2441
      %v2443 = vmul.f32 %v2277, 1.442695
      %v2444 = vpow.pop %v2443
      %v2445 = vmul.f32 %v2278, 1.442695
      %v2446 = vpow.pop %v2445
      %v2447 = vmul.f32 %v2279, 1.442695
      %v2448 = vpow.pop %v2447
      %v2449 = vmul.f32 %v2280, 1.442695
      %v2450 = vpow.pop %v2449
      %v2451 = vmul.f32 %v2281, 1.442695
      %v2452 = vpow.pop %v2451
      %v2453 = vmul.f32 %v2282, 1.442695
      %v2454 = vpow.pop %v2453
      %v2455 = vmul.f32 %v2283, 1.442695
      %v2456 = vpow.pop %v2455
      %v2457 = vmul.f32 %v2284, 1.442695
      %v2458 = vpow.pop %v2457
      %v2459 = vmul.f32 %v2285, 1.442695
      %v2460 = vpow.pop %v2459
      %v2461 = vmul.f32 %v2286, 1.442695
      %v2462 = vpow.pop %v2461
      %v2463 = vmul.f32 %v2287, 1.442695
      %v2464 = vpow.pop %v2463
      %v2465 = vmul.f32 %v2288, 1.442695
      %v2466 = vpow.pop %v2465
      %v2467 = vmul.f32 %v2289, 1.442695
      %v2468 = vpow.pop %v2467
      %v2469 = vmul.f32 %v2290, 1.442695
      %v2470 = vpow.pop %v2469
      %v2471 = vmul.f32 %v2291, 1.442695
      %v2472 = vpow.pop %v2471
      %v2473 = vmul.f32 %v2292, 1.442695
      %v2474 = vpow.pop %v2473
      %v2475 = vmul.f32 %v2293, 1.442695
      %v2476 = vpow.pop %v2475
      %v2477 = vmul.f32 %v2294, 1.442695
      %v2478 = vpow.pop %v2477
      %v2479 = vmul.f32 %v2295, 1.442695
      %v2480 = vpow.pop %v2479
      %v2481 = vmul.f32 %v2296, 1.442695
      %v2482 = vpow.pop %v2481
      %v2483 = vmul.f32 %v2297, 1.442695
      %v2484 = vpow.pop %v2483
      %v2485 = vmul.f32 %v2298, 1.442695
      %v2486 = vpow.pop %v2485
      %v2487 = vmul.f32 %v2299, 1.442695
      %v2488 = vpow.pop %v2487
      %v2489 = vmul.f32 %v2300, 1.442695
      %v2490 = vpow.pop %v2489
      %v2491 = vmul.f32 %v2301, 1.442695
      %v2492 = vpow.pop %v2491
      %v2493 = vmul.f32 %v2302, 1.442695
      %v2494 = vpow.pop %v2493
      %v2495 = vmul.f32 %v2303, 1.442695
      %v2496 = vpow.pop %v2495
      %v2497 = vmul.f32 %v2304, 1.442695
      %v2498 = vpow.pop %v2497
      %v2499 = vmul.f32 %v2305, 1.442695
      %v2500 = vpow.pop %v2499
      %v2501 = vmul.f32 %v2306, 1.442695
      %v2502 = vpow.pop %v2501
      %v2503 = vmul.f32 %v2307, 1.442695
      %v2504 = vpow.pop %v2503
      %v2505 = vmul.f32 %v2308, 1.442695
      %v2506 = vpow.pop %v2505
      %v2507 = vmul.f32 %v2309, 1.442695
      %v2508 = vpow.pop %v2507
      %v2509 = vmul.f32 %v2310, 1.442695
      %v2510 = vpow.pop %v2509
      %v2511 = vmul.f32 %v2311, 1.442695
      %v2512 = vpow.pop %v2511
      %v2513 = vmul.f32 %v2312, 1.442695
      %v2514 = vpow.pop %v2513
      %v2515 = vmul.f32 %v2313, 1.442695
      %v2516 = vpow.pop %v2515
      %v2517 = vmul.f32 %v2314, 1.442695
      %v2518 = vpow.pop %v2517
      %v2519 = vmul.f32 %v2315, 1.442695
      %v2520 = vpow.pop %v2519
      %v2521 = vmul.f32 %v2316, 1.442695
      %v2522 = vpow.pop %v2521
      %v2523 = vmul.f32 %v2317, 1.442695
      %v2524 = vpow.pop %v2523
      %v2525 = vmul.f32 %v2318, 1.442695
      %v2526 = vpow.pop %v2525
      %v2527 = vmul.f32 %v2319, 1.442695
      %v2528 = vpow.pop %v2527
      %v2529 = vmul.f32 %v2320, 1.442695
      %v2530 = vpow.pop %v2529
      %v2531 = vmul.f32 %v2321, 1.442695
      %v2532 = vpow.pop %v2531
      %v2533 = vmul.f32 %v2322, 1.442695
      %v2534 = vpow.pop %v2533
      %v2535 = vmul.f32 %v2323, 1.442695
      %v2536 = vpow.pop %v2535
      %v2537 = vmul.f32 %v2324, 1.442695
      %v2538 = vpow.pop %v2537
      %v2539 = vmul.f32 %v2325, 1.442695
      %v2540 = vpow.pop %v2539
      %v2541 = vmul.f32 %v2326, 1.442695
      %v2542 = vpow.pop %v2541
      %v2543 = vmul.f32 %v2327, 1.442695
      %v2544 = vpow.pop %v2543
      %v2545 = vmul.f32 %v2328, 1.442695
      %v2546 = vpow.pop %v2545
      %v2547 = vmul.f32 %v2329, 1.442695
      %v2548 = vpow.pop %v2547
      %v2549 = vmul.f32 %v2330, 1.442695
      %v2550 = vpow.pop %v2549
      %v2551 = vmul.f32 %v2331, 1.442695
      %v2552 = vpow.pop %v2551
      %v2553 = vmul.f32 %v2332, 1.442695
      %v2554 = vpow.pop %v2553
      %v2555 = vmul.f32 %v2333, 1.442695
      %v2556 = vpow.pop %v2555
      %v2557 = vmul.f32 %v2334, 1.442695
      %v2558 = vpow.pop %v2557
      %v2559 = vmul.f32 %v2335, 1.442695
      %v2560 = vpow.pop %v2559
      %v2561 = vmul.f32 %v2336, 1.442695
      %v2562 = vpow.pop %v2561
      %v2563 = vmul.f32 %v2337, 1.442695
      %v2564 = vpow.pop %v2563
      %v2565 = vmul.f32 %v2338, 1.442695
      %v2566 = vpow.pop %v2565
      %v2567 = vmul.f32 %v2339, 1.442695
      %v2568 = vpow.pop %v2567
      %v2569 = vmul.f32 %v2340, 1.442695
      %v2570 = vpow.pop %v2569
      %v2571 = vmul.f32 %v2341, 1.442695
      %v2572 = vpow.pop %v2571
      %v2573 = vmul.f32 %v2342, 1.442695
      %v2574 = vpow.pop %v2573
      %v2575 = vmul.f32 %v2343, 1.442695
      %v2576 = vpow.pop %v2575
      %v2577 = vmul.f32 %v2344, 1.442695
      %v2578 = vpow.pop %v2577
      %v2579 = vmul.f32 %v2345, 1.442695
      %v2580 = vpow.pop %v2579
      %v2581 = vmul.f32 %v2346, 1.442695
      %v2582 = vpow.pop %v2581
      %v2583 = vmul.f32 %v2347, 1.442695
      %v2584 = vpow.pop %v2583
      %v2585 = vmul.f32 %v2348, 1.442695
      %v2586 = vpow.pop %v2585
      %v2587 = vmul.f32 %v2349, 1.442695
      %v2588 = vpow.pop %v2587
      %v2589 = vmul.f32 %v2350, 1.442695
      %v2590 = vpow.pop %v2589
      %v2591 = vmul.f32 %v2351, 1.442695
      %v2592 = vpow.pop %v2591
      %v2593 = vmul.f32 %v2352, 1.442695
      %v2594 = vpow.pop %v2593
      %v2595 = vmul.f32 %v2353, 1.442695
      %v2596 = vpow.pop %v2595
      %v2597 = vmul.f32 %v2354, 1.442695
      %v2598 = vpow.pop %v2597
      %v2599 = vmul.f32 %v2355, 1.442695
      %v2600 = vpow.pop %v2599
      %v2601 = vmul.f32 %v2356, 1.442695
      %v2602 = vpow.pop %v2601
      %v2603 = vmul.f32 %v2357, 1.442695
      %v2604 = vpow.pop %v2603
      %v2605 = vmul.f32 %v2358, 1.442695
      %v2606 = vpow.pop %v2605
      %v2607 = vmul.f32 %v2359, 1.442695
      %v2608 = vpow.pop %v2607
      %v2609 = vmul.f32 %v2360, 1.442695
      %v2610 = vpow.pop %v2609
      %v2611 = vmul.f32 %v2361, 1.442695
      %v2612 = vpow.pop %v2611
      %v2613 = vmul.f32 %v2362, 1.442695
      %v2614 = vpow.pop %v2613
      %v2615 = vmul.f32 %v2363, 1.442695
      %v2616 = vpow.pop %v2615
      %v2617 = vmul.f32 %v2364, 1.442695
      %v2618 = vpow.pop %v2617
      %v2619 = vmul.f32 %v2365, 1.442695
      %v2620 = vpow.pop %v2619
      %v2621 = vmul.f32 %v2366, 1.442695
      %v2622 = vpow.pop %v2621
      %2623 = vadd.xlane.f32.xlu0 %v2368
      %v2624 = vpop.xlane.xlu0 %2623
      %2625 = vadd.xlane.f32.xlu0 %v2370
      %v2626 = vpop.xlane.xlu0 %2625
      %2627 = vadd.xlane.f32.xlu0 %v2372
      %v2628 = vpop.xlane.xlu0 %2627
      %2629 = vadd.xlane.f32.xlu0 %v2374
      %v2630 = vpop.xlane.xlu0 %2629
      %2631 = vadd.xlane.f32.xlu0 %v2376
      %v2632 = vpop.xlane.xlu0 %2631
      %2633 = vadd.xlane.f32.xlu0 %v2378
      %v2634 = vpop.xlane.xlu0 %2633
      %2635 = vadd.xlane.f32.xlu0 %v2380
      %v2636 = vpop.xlane.xlu0 %2635
      %2637 = vadd.xlane.f32.xlu0 %v2382
      %v2638 = vpop.xlane.xlu0 %2637
      %2639 = vadd.xlane.f32.xlu0 %v2384
      %v2640 = vpop.xlane.xlu0 %2639
      %2641 = vadd.xlane.f32.xlu0 %v2386
      %v2642 = vpop.xlane.xlu0 %2641
      %2643 = vadd.xlane.f32.xlu0 %v2388
      %v2644 = vpop.xlane.xlu0 %2643
      %2645 = vadd.xlane.f32.xlu0 %v2390
      %v2646 = vpop.xlane.xlu0 %2645
      %2647 = vadd.xlane.f32.xlu0 %v2392
      %v2648 = vpop.xlane.xlu0 %2647
      %2649 = vadd.xlane.f32.xlu0 %v2394
      %v2650 = vpop.xlane.xlu0 %2649
      %2651 = vadd.xlane.f32.xlu0 %v2396
      %v2652 = vpop.xlane.xlu0 %2651
      %2653 = vadd.xlane.f32.xlu0 %v2398
      %v2654 = vpop.xlane.xlu0 %2653
      %2655 = vadd.xlane.f32.xlu0 %v2400
      %v2656 = vpop.xlane.xlu0 %2655
      %2657 = vadd.xlane.f32.xlu0 %v2402
      %v2658 = vpop.xlane.xlu0 %2657
      %2659 = vadd.xlane.f32.xlu0 %v2404
      %v2660 = vpop.xlane.xlu0 %2659
      %2661 = vadd.xlane.f32.xlu0 %v2406
      %v2662 = vpop.xlane.xlu0 %2661
      %2663 = vadd.xlane.f32.xlu0 %v2408
      %v2664 = vpop.xlane.xlu0 %2663
      %2665 = vadd.xlane.f32.xlu0 %v2410
      %v2666 = vpop.xlane.xlu0 %2665
      %2667 = vadd.xlane.f32.xlu0 %v2412
      %v2668 = vpop.xlane.xlu0 %2667
      %2669 = vadd.xlane.f32.xlu0 %v2414
      %v2670 = vpop.xlane.xlu0 %2669
      %2671 = vadd.xlane.f32.xlu0 %v2416
      %v2672 = vpop.xlane.xlu0 %2671
      %2673 = vadd.xlane.f32.xlu0 %v2418
      %v2674 = vpop.xlane.xlu0 %2673
      %2675 = vadd.xlane.f32.xlu0 %v2420
      %v2676 = vpop.xlane.xlu0 %2675
      %2677 = vadd.xlane.f32.xlu0 %v2422
      %v2678 = vpop.xlane.xlu0 %2677
      %2679 = vadd.xlane.f32.xlu0 %v2424
      %v2680 = vpop.xlane.xlu0 %2679
      %2681 = vadd.xlane.f32.xlu0 %v2426
      %v2682 = vpop.xlane.xlu0 %2681
      %2683 = vadd.xlane.f32.xlu0 %v2428
      %v2684 = vpop.xlane.xlu0 %2683
      %2685 = vadd.xlane.f32.xlu0 %v2430
      %v2686 = vpop.xlane.xlu0 %2685
      %2687 = vadd.xlane.f32.xlu0 %v2432
      %v2688 = vpop.xlane.xlu0 %2687
      %2689 = vadd.xlane.f32.xlu0 %v2434
      %v2690 = vpop.xlane.xlu0 %2689
      %2691 = vadd.xlane.f32.xlu0 %v2436
      %v2692 = vpop.xlane.xlu0 %2691
      %2693 = vadd.xlane.f32.xlu0 %v2438
      %v2694 = vpop.xlane.xlu0 %2693
      %2695 = vadd.xlane.f32.xlu0 %v2440
      %v2696 = vpop.xlane.xlu0 %2695
      %2697 = vadd.xlane.f32.xlu0 %v2442
      %v2698 = vpop.xlane.xlu0 %2697
      %2699 = vadd.xlane.f32.xlu0 %v2444
      %v2700 = vpop.xlane.xlu0 %2699
      %2701 = vadd.xlane.f32.xlu0 %v2446
      %v2702 = vpop.xlane.xlu0 %2701
      %2703 = vadd.xlane.f32.xlu0 %v2448
      %v2704 = vpop.xlane.xlu0 %2703
      %2705 = vadd.xlane.f32.xlu0 %v2450
      %v2706 = vpop.xlane.xlu0 %2705
      %2707 = vadd.xlane.f32.xlu0 %v2452
      %v2708 = vpop.xlane.xlu0 %2707
      %2709 = vadd.xlane.f32.xlu0 %v2454
      %v2710 = vpop.xlane.xlu0 %2709
      %2711 = vadd.xlane.f32.xlu0 %v2456
      %v2712 = vpop.xlane.xlu0 %2711
      %2713 = vadd.xlane.f32.xlu0 %v2458
      %v2714 = vpop.xlane.xlu0 %2713
      %2715 = vadd.xlane.f32.xlu0 %v2460
      %v2716 = vpop.xlane.xlu0 %2715
      %2717 = vadd.xlane.f32.xlu0 %v2462
      %v2718 = vpop.xlane.xlu0 %2717
      %2719 = vadd.xlane.f32.xlu0 %v2464
      %v2720 = vpop.xlane.xlu0 %2719
      %2721 = vadd.xlane.f32.xlu0 %v2466
      %v2722 = vpop.xlane.xlu0 %2721
      %2723 = vadd.xlane.f32.xlu0 %v2468
      %v2724 = vpop.xlane.xlu0 %2723
      %2725 = vadd.xlane.f32.xlu0 %v2470
      %v2726 = vpop.xlane.xlu0 %2725
      %2727 = vadd.xlane.f32.xlu0 %v2472
      %v2728 = vpop.xlane.xlu0 %2727
      %2729 = vadd.xlane.f32.xlu0 %v2474
      %v2730 = vpop.xlane.xlu0 %2729
      %2731 = vadd.xlane.f32.xlu0 %v2476
      %v2732 = vpop.xlane.xlu0 %2731
      %2733 = vadd.xlane.f32.xlu0 %v2478
      %v2734 = vpop.xlane.xlu0 %2733
      %2735 = vadd.xlane.f32.xlu0 %v2480
      %v2736 = vpop.xlane.xlu0 %2735
      %2737 = vadd.xlane.f32.xlu0 %v2482
      %v2738 = vpop.xlane.xlu0 %2737
      %2739 = vadd.xlane.f32.xlu0 %v2484
      %v2740 = vpop.xlane.xlu0 %2739
      %2741 = vadd.xlane.f32.xlu0 %v2486
      %v2742 = vpop.xlane.xlu0 %2741
      %2743 = vadd.xlane.f32.xlu0 %v2488
      %v2744 = vpop.xlane.xlu0 %2743
      %2745 = vadd.xlane.f32.xlu0 %v2490
      %v2746 = vpop.xlane.xlu0 %2745
      %2747 = vadd.xlane.f32.xlu0 %v2492
      %v2748 = vpop.xlane.xlu0 %2747
      %2749 = vadd.xlane.f32.xlu0 %v2494
      %v2750 = vpop.xlane.xlu0 %2749
      %2751 = vadd.xlane.f32.xlu0 %v2496
      %v2752 = vpop.xlane.xlu0 %2751
      %2753 = vadd.xlane.f32.xlu0 %v2498
      %v2754 = vpop.xlane.xlu0 %2753
      %2755 = vadd.xlane.f32.xlu0 %v2500
      %v2756 = vpop.xlane.xlu0 %2755
      %2757 = vadd.xlane.f32.xlu0 %v2502
      %v2758 = vpop.xlane.xlu0 %2757
      %2759 = vadd.xlane.f32.xlu0 %v2504
      %v2760 = vpop.xlane.xlu0 %2759
      %2761 = vadd.xlane.f32.xlu0 %v2506
      %v2762 = vpop.xlane.xlu0 %2761
      %2763 = vadd.xlane.f32.xlu0 %v2508
      %v2764 = vpop.xlane.xlu0 %2763
      %2765 = vadd.xlane.f32.xlu0 %v2510
      %v2766 = vpop.xlane.xlu0 %2765
      %2767 = vadd.xlane.f32.xlu0 %v2512
      %v2768 = vpop.xlane.xlu0 %2767
      %2769 = vadd.xlane.f32.xlu0 %v2514
      %v2770 = vpop.xlane.xlu0 %2769
      %2771 = vadd.xlane.f32.xlu0 %v2516
      %v2772 = vpop.xlane.xlu0 %2771
      %2773 = vadd.xlane.f32.xlu0 %v2518
      %v2774 = vpop.xlane.xlu0 %2773
      %2775 = vadd.xlane.f32.xlu0 %v2520
      %v2776 = vpop.xlane.xlu0 %2775
      %2777 = vadd.xlane.f32.xlu0 %v2522
      %v2778 = vpop.xlane.xlu0 %2777
      %2779 = vadd.xlane.f32.xlu0 %v2524
      %v2780 = vpop.xlane.xlu0 %2779
      %2781 = vadd.xlane.f32.xlu0 %v2526
      %v2782 = vpop.xlane.xlu0 %2781
      %2783 = vadd.xlane.f32.xlu0 %v2528
      %v2784 = vpop.xlane.xlu0 %2783
      %2785 = vadd.xlane.f32.xlu0 %v2530
      %v2786 = vpop.xlane.xlu0 %2785
      %2787 = vadd.xlane.f32.xlu0 %v2532
      %v2788 = vpop.xlane.xlu0 %2787
      %2789 = vadd.xlane.f32.xlu0 %v2534
      %v2790 = vpop.xlane.xlu0 %2789
      %2791 = vadd.xlane.f32.xlu0 %v2536
      %v2792 = vpop.xlane.xlu0 %2791
      %2793 = vadd.xlane.f32.xlu0 %v2538
      %v2794 = vpop.xlane.xlu0 %2793
      %2795 = vadd.xlane.f32.xlu0 %v2540
      %v2796 = vpop.xlane.xlu0 %2795
      %2797 = vadd.xlane.f32.xlu0 %v2542
      %v2798 = vpop.xlane.xlu0 %2797
      %2799 = vadd.xlane.f32.xlu0 %v2544
      %v2800 = vpop.xlane.xlu0 %2799
      %2801 = vadd.xlane.f32.xlu0 %v2546
      %v2802 = vpop.xlane.xlu0 %2801
      %2803 = vadd.xlane.f32.xlu0 %v2548
      %v2804 = vpop.xlane.xlu0 %2803
      %2805 = vadd.xlane.f32.xlu0 %v2550
      %v2806 = vpop.xlane.xlu0 %2805
      %2807 = vadd.xlane.f32.xlu0 %v2552
      %v2808 = vpop.xlane.xlu0 %2807
      %2809 = vadd.xlane.f32.xlu0 %v2554
      %v2810 = vpop.xlane.xlu0 %2809
      %2811 = vadd.xlane.f32.xlu0 %v2556
      %v2812 = vpop.xlane.xlu0 %2811
      %2813 = vadd.xlane.f32.xlu0 %v2558
      %v2814 = vpop.xlane.xlu0 %2813
      %2815 = vadd.xlane.f32.xlu0 %v2560
      %v2816 = vpop.xlane.xlu0 %2815
      %2817 = vadd.xlane.f32.xlu0 %v2562
      %v2818 = vpop.xlane.xlu0 %2817
      %2819 = vadd.xlane.f32.xlu0 %v2564
      %v2820 = vpop.xlane.xlu0 %2819
      %2821 = vadd.xlane.f32.xlu0 %v2566
      %v2822 = vpop.xlane.xlu0 %2821
      %2823 = vadd.xlane.f32.xlu0 %v2568
      %v2824 = vpop.xlane.xlu0 %2823
      %2825 = vadd.xlane.f32.xlu0 %v2570
      %v2826 = vpop.xlane.xlu0 %2825
      %2827 = vadd.xlane.f32.xlu0 %v2572
      %v2828 = vpop.xlane.xlu0 %2827
      %2829 = vadd.xlane.f32.xlu0 %v2574
      %v2830 = vpop.xlane.xlu0 %2829
      %2831 = vadd.xlane.f32.xlu0 %v2576
      %v2832 = vpop.xlane.xlu0 %2831
      %2833 = vadd.xlane.f32.xlu0 %v2578
      %v2834 = vpop.xlane.xlu0 %2833
      %2835 = vadd.xlane.f32.xlu0 %v2580
      %v2836 = vpop.xlane.xlu0 %2835
      %2837 = vadd.xlane.f32.xlu0 %v2582
      %v2838 = vpop.xlane.xlu0 %2837
      %2839 = vadd.xlane.f32.xlu0 %v2584
      %v2840 = vpop.xlane.xlu0 %2839
      %2841 = vadd.xlane.f32.xlu0 %v2586
      %v2842 = vpop.xlane.xlu0 %2841
      %2843 = vadd.xlane.f32.xlu0 %v2588
      %v2844 = vpop.xlane.xlu0 %2843
      %2845 = vadd.xlane.f32.xlu0 %v2590
      %v2846 = vpop.xlane.xlu0 %2845
      %2847 = vadd.xlane.f32.xlu0 %v2592
      %v2848 = vpop.xlane.xlu0 %2847
      %2849 = vadd.xlane.f32.xlu0 %v2594
      %v2850 = vpop.xlane.xlu0 %2849
      %2851 = vadd.xlane.f32.xlu0 %v2596
      %v2852 = vpop.xlane.xlu0 %2851
      %2853 = vadd.xlane.f32.xlu0 %v2598
      %v2854 = vpop.xlane.xlu0 %2853
      %2855 = vadd.xlane.f32.xlu0 %v2600
      %v2856 = vpop.xlane.xlu0 %2855
      %2857 = vadd.xlane.f32.xlu0 %v2602
      %v2858 = vpop.xlane.xlu0 %2857
      %2859 = vadd.xlane.f32.xlu0 %v2604
      %v2860 = vpop.xlane.xlu0 %2859
      %2861 = vadd.xlane.f32.xlu0 %v2606
      %v2862 = vpop.xlane.xlu0 %2861
      %2863 = vadd.xlane.f32.xlu0 %v2608
      %v2864 = vpop.xlane.xlu0 %2863
      %2865 = vadd.xlane.f32.xlu0 %v2610
      %v2866 = vpop.xlane.xlu0 %2865
      %2867 = vadd.xlane.f32.xlu0 %v2612
      %v2868 = vpop.xlane.xlu0 %2867
      %2869 = vadd.xlane.f32.xlu0 %v2614
      %v2870 = vpop.xlane.xlu0 %2869
      %2871 = vadd.xlane.f32.xlu0 %v2616
      %v2872 = vpop.xlane.xlu0 %2871
      %2873 = vadd.xlane.f32.xlu0 %v2618
      %v2874 = vpop.xlane.xlu0 %2873
      %2875 = vadd.xlane.f32.xlu0 %v2620
      %v2876 = vpop.xlane.xlu0 %2875
      %2877 = vadd.xlane.f32.xlu0 %v2622
      %v2878 = vpop.xlane.xlu0 %2877
      %v2879 = vpack.c.bf16 %v2370, %v2368
      %v2880 = vpack.c.bf16 %v2374, %v2372
      %v2881 = vpack.c.bf16 %v2378, %v2376
      %v2882 = vpack.c.bf16 %v2382, %v2380
      %v2883 = vpack.c.bf16 %v2386, %v2384
      %v2884 = vpack.c.bf16 %v2390, %v2388
      %v2885 = vpack.c.bf16 %v2394, %v2392
      %v2886 = vpack.c.bf16 %v2398, %v2396
      %v2887 = vpack.c.bf16 %v2402, %v2400
      %v2888 = vpack.c.bf16 %v2406, %v2404
      %v2889 = vpack.c.bf16 %v2410, %v2408
      %v2890 = vpack.c.bf16 %v2414, %v2412
      %v2891 = vpack.c.bf16 %v2418, %v2416
      %v2892 = vpack.c.bf16 %v2422, %v2420
      %v2893 = vpack.c.bf16 %v2426, %v2424
      %v2894 = vpack.c.bf16 %v2430, %v2428
      %v2895 = vpack.c.bf16 %v2434, %v2432
      %v2896 = vpack.c.bf16 %v2438, %v2436
      %v2897 = vpack.c.bf16 %v2442, %v2440
      %v2898 = vpack.c.bf16 %v2446, %v2444
      %v2899 = vpack.c.bf16 %v2450, %v2448
      %v2900 = vpack.c.bf16 %v2454, %v2452
      %v2901 = vpack.c.bf16 %v2458, %v2456
      %v2902 = vpack.c.bf16 %v2462, %v2460
      %v2903 = vpack.c.bf16 %v2466, %v2464
      %v2904 = vpack.c.bf16 %v2470, %v2468
      %v2905 = vpack.c.bf16 %v2474, %v2472
      %v2906 = vpack.c.bf16 %v2478, %v2476
      %v2907 = vpack.c.bf16 %v2482, %v2480
      %v2908 = vpack.c.bf16 %v2486, %v2484
      %v2909 = vpack.c.bf16 %v2490, %v2488
      %v2910 = vpack.c.bf16 %v2494, %v2492
      %v2911 = vpack.c.bf16 %v2498, %v2496
      %v2912 = vpack.c.bf16 %v2502, %v2500
      %v2913 = vpack.c.bf16 %v2506, %v2504
      %v2914 = vpack.c.bf16 %v2510, %v2508
      %v2915 = vpack.c.bf16 %v2514, %v2512
      %v2916 = vpack.c.bf16 %v2518, %v2516
      %v2917 = vpack.c.bf16 %v2522, %v2520
      %v2918 = vpack.c.bf16 %v2526, %v2524
      %v2919 = vpack.c.bf16 %v2530, %v2528
      %v2920 = vpack.c.bf16 %v2534, %v2532
      %v2921 = vpack.c.bf16 %v2538, %v2536
      %v2922 = vpack.c.bf16 %v2542, %v2540
      %v2923 = vpack.c.bf16 %v2546, %v2544
      %v2924 = vpack.c.bf16 %v2550, %v2548
      %v2925 = vpack.c.bf16 %v2554, %v2552
      %v2926 = vpack.c.bf16 %v2558, %v2556
      %v2927 = vpack.c.bf16 %v2562, %v2560
      %v2928 = vpack.c.bf16 %v2566, %v2564
      %v2929 = vpack.c.bf16 %v2570, %v2568
      %v2930 = vpack.c.bf16 %v2574, %v2572
      %v2931 = vpack.c.bf16 %v2578, %v2576
      %v2932 = vpack.c.bf16 %v2582, %v2580
      %v2933 = vpack.c.bf16 %v2586, %v2584
      %v2934 = vpack.c.bf16 %v2590, %v2588
      %v2935 = vpack.c.bf16 %v2594, %v2592
      %v2936 = vpack.c.bf16 %v2598, %v2596
      %v2937 = vpack.c.bf16 %v2602, %v2600
      %v2938 = vpack.c.bf16 %v2606, %v2604
      %v2939 = vpack.c.bf16 %v2610, %v2608
      %v2940 = vpack.c.bf16 %v2614, %v2612
      %v2941 = vpack.c.bf16 %v2618, %v2616
      %v2942 = vpack.c.bf16 %v2622, %v2620
      %2943 = vmatprep.subr.bf16.mxu0 0
      %2944 = vmatpush1.bf16.msra.mxu0 %v390
      %2945 = vmatprep.subr.bf16.mxu0 0
      %2946 = vmatpush1.bf16.msra.mxu0 %v391
      %2947 = vmatprep.subr.bf16.mxu0 0
      %2948 = vmatpush1.bf16.msra.mxu0 %v392
      %2949 = vmatprep.subr.bf16.mxu0 0
      %2950 = vmatpush1.bf16.msra.mxu0 %v393
      %2951 = vmatprep.subr.bf16.mxu0 0
      %2952 = vmatpush1.bf16.msra.mxu0 %v394
      %2953 = vmatprep.subr.bf16.mxu0 0
      %2954 = vmatpush1.bf16.msra.mxu0 %v395
      %2955 = vmatprep.subr.bf16.mxu0 0
      %2956 = vmatpush1.bf16.msra.mxu0 %v396
      %2957 = vmatprep.subr.bf16.mxu0 0
      %2958 = vmatpush1.bf16.msra.mxu0 %v397
      %2959 = vmatprep.subr.bf16.mxu0 0
      %2960 = vmatpush1.bf16.msra.mxu0 0
      %2961 = vmatprep.subr.bf16.mxu0 0
      %2962 = vmatpush1.bf16.msra.mxu0 0
      %2963 = vmatprep.subr.bf16.mxu0 0
      %2964 = vmatpush1.bf16.msra.mxu0 0
      %2965 = vmatprep.subr.bf16.mxu0 0
      %2966 = vmatpush1.bf16.msra.mxu0 0
      %2967 = vmatprep.subr.bf16.mxu0 0
      %2968 = vmatpush1.bf16.msra.mxu0 0
      %2969 = vmatprep.subr.bf16.mxu0 0
      %2970 = vmatpush1.bf16.msra.mxu0 0
      %2971 = vmatprep.subr.bf16.mxu0 0
      %2972 = vmatpush1.bf16.msra.mxu0 0
      %2973 = vmatprep.subr.bf16.mxu0 0
      %2974 = vmatpush1.bf16.msra.mxu0 0
      %2975 = vmatprep.mubr.bf16.mxu0 0
      %2976 = vmatmul.mubr.bf16.gmra.mrb[0].mxu0 %v2879
      %v2977 = vpop.f32.mrb[0].mxu0
      %v2978 = vadd.f32 0.0, %v2977
      %v2979 = vpop.f32.mrb[0].mxu0
      %v2980 = vpop.f32.mrb[0].mxu0
      %v2981 = vadd.f32 0.0, %v2980
      %v2982 = vpop.f32.mrb[0].mxu0
      %2983 = vmatprep.mubr.bf16.mxu0 0
      %2984 = vmatmul.mubr.bf16.gmra.mrb[0].mxu0 %v2880
      %v2985 = vpop.f32.mrb[0].mxu0
      %v2986 = vadd.f32 0.0, %v2985
      %v2987 = vpop.f32.mrb[0].mxu0
      %v2988 = vpop.f32.mrb[0].mxu0
      %v2989 = vadd.f32 0.0, %v2988
      %v2990 = vpop.f32.mrb[0].mxu0
      %2991 = vmatprep.mubr.bf16.mxu0 0
      %2992 = vmatmul.mubr.bf16.gmra.mrb[0].mxu0 %v2881
      %v2993 = vpop.f32.mrb[0].mxu0
      %v2994 = vadd.f32 0.0, %v2993
      %v2995 = vpop.f32.mrb[0].mxu0
      %v2996 = vpop.f32.mrb[0].mxu0
      %v2997 = vadd.f32 0.0, %v2996
      %v2998 = vpop.f32.mrb[0].mxu0
      %2999 = vmatprep.mubr.bf16.mxu0 0
      %3000 = vmatmul.mubr.bf16.gmra.mrb[0].mxu0 %v2882
      %v3001 = vpop.f32.mrb[0].mxu0
      %v3002 = vadd.f32 0.0, %v3001
      %v3003 = vpop.f32.mrb[0].mxu0
      %v3004 = vpop.f32.mrb[0].mxu0
      %v3005 = vadd.f32 0.0, %v3004
      %v3006 = vpop.f32.mrb[0].mxu0
      %3007 = vmatprep.mubr.bf16.mxu0 0
      %3008 = vmatmul.mubr.bf16.gmra.mrb[0].mxu0 %v2883
      %v3009 = vpop.f32.mrb[0].mxu0
      %v3010 = vadd.f32 0.0, %v3009
      %v3011 = vpop.f32.mrb[0].mxu0
      %v3012 = vpop.f32.mrb[0].mxu0
      %v3013 = vadd.f32 0.0, %v3012
      %v3014 = vpop.f32.mrb[0].mxu0
      %3015 = vmatprep.mubr.bf16.mxu0 0
      %3016 = vmatmul.mubr.bf16.gmra.mrb[0].mxu0 %v2884
      %v3017 = vpop.f32.mrb[0].mxu0
      %v3018 = vadd.f32 0.0, %v3017
      %v3019 = vpop.f32.mrb[0].mxu0
      %v3020 = vpop.f32.mrb[0].mxu0
      %v3021 = vadd.f32 0.0, %v3020
      %v3022 = vpop.f32.mrb[0].mxu0
      %3023 = vmatprep.mubr.bf16.mxu0 0
      %3024 = vmatmul.mubr.bf16.gmra.mrb[0].mxu0 %v2885
      %v3025 = vpop.f32.mrb[0].mxu0
      %v3026 = vadd.f32 0.0, %v3025
      %v3027 = vpop.f32.mrb[0].mxu0
      %v3028 = vpop.f32.mrb[0].mxu0
      %v3029 = vadd.f32 0.0, %v3028
      %v3030 = vpop.f32.mrb[0].mxu0
      %3031 = vmatprep.mubr.bf16.mxu0 0
      %3032 = vmatmul.mubr.bf16.gmra.mrb[0].mxu0 %v2886
      %v3033 = vpop.f32.mrb[0].mxu0
      %v3034 = vadd.f32 0.0, %v3033
      %v3035 = vpop.f32.mrb[0].mxu0
      %v3036 = vpop.f32.mrb[0].mxu0
      %v3037 = vadd.f32 0.0, %v3036
      %v3038 = vpop.f32.mrb[0].mxu0
      %3039 = vdwg.mxu0
      %3040 = vmatprep.subr.bf16.mxu0 0
      %3041 = vmatpush1.bf16.msra.mxu0 %v527
      %3042 = vmatprep.subr.bf16.mxu0 0
      %3043 = vmatpush1.bf16.msra.mxu0 %v529
      %3044 = vmatprep.subr.bf16.mxu0 0
      %3045 = vmatpush1.bf16.msra.mxu0 %v531
      %3046 = vmatprep.subr.bf16.mxu0 0
      %3047 = vmatpush1.bf16.msra.mxu0 %v533
      %3048 = vmatprep.subr.bf16.mxu0 0
      %3049 = vmatpush1.bf16.msra.mxu0 %v535
      %3050 = vmatprep.subr.bf16.mxu0 0
      %3051 = vmatpush1.bf16.msra.mxu0 %v537
      %3052 = vmatprep.subr.bf16.mxu0 0
      %3053 = vmatpush1.bf16.msra.mxu0 %v539
      %3054 = vmatprep.subr.bf16.mxu0 0
      %3055 = vmatpush1.bf16.msra.mxu0 %v541
      %3056 = vmatprep.subr.bf16.mxu0 0
      %3057 = vmatpush1.bf16.msra.mxu0 0
      %3058 = vmatprep.subr.bf16.mxu0 0
      %3059 = vmatpush1.bf16.msra.mxu0 0
      %3060 = vmatprep.subr.bf16.mxu0 0
      %3061 = vmatpush1.bf16.msra.mxu0 0
      %3062 = vmatprep.subr.bf16.mxu0 0
      %3063 = vmatpush1.bf16.msra.mxu0 0
      %3064 = vmatprep.subr.bf16.mxu0 0
      %3065 = vmatpush1.bf16.msra.mxu0 0
      %3066 = vmatprep.subr.bf16.mxu0 0
      %3067 = vmatpush1.bf16.msra.mxu0 0
      %3068 = vmatprep.subr.bf16.mxu0 0
      %3069 = vmatpush1.bf16.msra.mxu0 0
      %3070 = vmatprep.subr.bf16.mxu0 0
      %3071 = vmatpush1.bf16.msra.mxu0 0
      %3072 = vmatprep.mubr.bf16.mxu0 0
      %3073 = vmatmul.mubr.bf16.gmra.mrb[0].mxu0 %v2887
      %v3074 = vpop.f32.mrb[0].mxu0
      %v3075 = vadd.f32 0.0, %v3074
      %v3076 = vpop.f32.mrb[0].mxu0
      %v3077 = vpop.f32.mrb[0].mxu0
      %v3078 = vadd.f32 0.0, %v3077
      %v3079 = vpop.f32.mrb[0].mxu0
      %3080 = vmatprep.mubr.bf16.mxu0 0
      %3081 = vmatmul.mubr.bf16.gmra.mrb[0].mxu0 %v2888
      %v3082 = vpop.f32.mrb[0].mxu0
      %v3083 = vadd.f32 0.0, %v3082
      %v3084 = vpop.f32.mrb[0].mxu0
      %v3085 = vpop.f32.mrb[0].mxu0
      %v3086 = vadd.f32 0.0, %v3085
      %v3087 = vpop.f32.mrb[0].mxu0
      %3088 = vmatprep.mubr.bf16.mxu0 0
      %3089 = vmatmul.mubr.bf16.gmra.mrb[0].mxu0 %v2889
      %v3090 = vpop.f32.mrb[0].mxu0
      %v3091 = vadd.f32 0.0, %v3090
      %v3092 = vpop.f32.mrb[0].mxu0
      %v3093 = vpop.f32.mrb[0].mxu0
      %v3094 = vadd.f32 0.0, %v3093
      %v3095 = vpop.f32.mrb[0].mxu0
      %3096 = vmatprep.mubr.bf16.mxu0 0
      %3097 = vmatmul.mubr.bf16.gmra.mrb[0].mxu0 %v2890
      %v3098 = vpop.f32.mrb[0].mxu0
      %v3099 = vadd.f32 0.0, %v3098
      %v3100 = vpop.f32.mrb[0].mxu0
      %v3101 = vpop.f32.mrb[0].mxu0
      %v3102 = vadd.f32 0.0, %v3101
      %v3103 = vpop.f32.mrb[0].mxu0
      %3104 = vmatprep.mubr.bf16.mxu0 0
      %3105 = vmatmul.mubr.bf16.gmra.mrb[0].mxu0 %v2891
      %v3106 = vpop.f32.mrb[0].mxu0
      %v3107 = vadd.f32 0.0, %v3106
      %v3108 = vpop.f32.mrb[0].mxu0
      %v3109 = vpop.f32.mrb[0].mxu0
      %v3110 = vadd.f32 0.0, %v3109
      %v3111 = vpop.f32.mrb[0].mxu0
      %3112 = vmatprep.mubr.bf16.mxu0 0
      %3113 = vmatmul.mubr.bf16.gmra.mrb[0].mxu0 %v2892
      %v3114 = vpop.f32.mrb[0].mxu0
      %v3115 = vadd.f32 0.0, %v3114
      %v3116 = vpop.f32.mrb[0].mxu0
      %v3117 = vpop.f32.mrb[0].mxu0
      %v3118 = vadd.f32 0.0, %v3117
      %v3119 = vpop.f32.mrb[0].mxu0
      %3120 = vmatprep.mubr.bf16.mxu0 0
      %3121 = vmatmul.mubr.bf16.gmra.mrb[0].mxu0 %v2893
      %v3122 = vpop.f32.mrb[0].mxu0
      %v3123 = vadd.f32 0.0, %v3122
      %v3124 = vpop.f32.mrb[0].mxu0
      %v3125 = vpop.f32.mrb[0].mxu0
      %v3126 = vadd.f32 0.0, %v3125
      %v3127 = vpop.f32.mrb[0].mxu0
      %3128 = vmatprep.mubr.bf16.mxu0 0
      %3129 = vmatmul.mubr.bf16.gmra.mrb[0].mxu0 %v2894
      %v3130 = vpop.f32.mrb[0].mxu0
      %v3131 = vadd.f32 0.0, %v3130
      %v3132 = vpop.f32.mrb[0].mxu0
      %v3133 = vpop.f32.mrb[0].mxu0
      %v3134 = vadd.f32 0.0, %v3133
      %v3135 = vpop.f32.mrb[0].mxu0
      %3136 = vdwg.mxu0
      %3137 = vmatprep.subr.bf16.mxu0 0
      %3138 = vmatpush1.bf16.msra.mxu0 %v551
      %3139 = vmatprep.subr.bf16.mxu0 0
      %3140 = vmatpush1.bf16.msra.mxu0 %v553
      %3141 = vmatprep.subr.bf16.mxu0 0
      %3142 = vmatpush1.bf16.msra.mxu0 %v555
      %3143 = vmatprep.subr.bf16.mxu0 0
      %3144 = vmatpush1.bf16.msra.mxu0 %v557
      %3145 = vmatprep.subr.bf16.mxu0 0
      %3146 = vmatpush1.bf16.msra.mxu0 %v559
      %3147 = vmatprep.subr.bf16.mxu0 0
      %3148 = vmatpush1.bf16.msra.mxu0 %v561
      %3149 = vmatprep.subr.bf16.mxu0 0
      %3150 = vmatpush1.bf16.msra.mxu0 %v563
      %3151 = vmatprep.subr.bf16.mxu0 0
      %3152 = vmatpush1.bf16.msra.mxu0 %v565
      %3153 = vmatprep.subr.bf16.mxu0 0
      %3154 = vmatpush1.bf16.msra.mxu0 0
      %3155 = vmatprep.subr.bf16.mxu0 0
      %3156 = vmatpush1.bf16.msra.mxu0 0
      %3157 = vmatprep.subr.bf16.mxu0 0
      %3158 = vmatpush1.bf16.msra.mxu0 0
      %3159 = vmatprep.subr.bf16.mxu0 0
      %3160 = vmatpush1.bf16.msra.mxu0 0
      %3161 = vmatprep.subr.bf16.mxu0 0
      %3162 = vmatpush1.bf16.msra.mxu0 0
      %3163 = vmatprep.subr.bf16.mxu0 0
      %3164 = vmatpush1.bf16.msra.mxu0 0
      %3165 = vmatprep.subr.bf16.mxu0 0
      %3166 = vmatpush1.bf16.msra.mxu0 0
      %3167 = vmatprep.subr.bf16.mxu0 0
      %3168 = vmatpush1.bf16.msra.mxu0 0
      %3169 = vmatprep.mubr.bf16.mxu0 0
      %3170 = vmatmul.mubr.bf16.gmra.mrb[0].mxu0 %v2895
      %v3171 = vpop.f32.mrb[0].mxu0
      %v3172 = vadd.f32 0.0, %v3171
      %v3173 = vpop.f32.mrb[0].mxu0
      %v3174 = vpop.f32.mrb[0].mxu0
      %v3175 = vadd.f32 0.0, %v3174
      %v3176 = vpop.f32.mrb[0].mxu0
      %3177 = vmatprep.mubr.bf16.mxu0 0
      %3178 = vmatmul.mubr.bf16.gmra.mrb[0].mxu0 %v2896
      %v3179 = vpop.f32.mrb[0].mxu0
      %v3180 = vadd.f32 0.0, %v3179
      %v3181 = vpop.f32.mrb[0].mxu0
      %v3182 = vpop.f32.mrb[0].mxu0
      %v3183 = vadd.f32 0.0, %v3182
      %v3184 = vpop.f32.mrb[0].mxu0
      %3185 = vmatprep.mubr.bf16.mxu0 0
      %3186 = vmatmul.mubr.bf16.gmra.mrb[0].mxu0 %v2897
      %v3187 = vpop.f32.mrb[0].mxu0
      %v3188 = vadd.f32 0.0, %v3187
      %v3189 = vpop.f32.mrb[0].mxu0
      %v3190 = vpop.f32.mrb[0].mxu0
      %v3191 = vadd.f32 0.0, %v3190
      %v3192 = vpop.f32.mrb[0].mxu0
      %3193 = vmatprep.mubr.bf16.mxu0 0
      %3194 = vmatmul.mubr.bf16.gmra.mrb[0].mxu0 %v2898
      %v3195 = vpop.f32.mrb[0].mxu0
      %v3196 = vadd.f32 0.0, %v3195
      %v3197 = vpop.f32.mrb[0].mxu0
      %v3198 = vpop.f32.mrb[0].mxu0
      %v3199 = vadd.f32 0.0, %v3198
      %v3200 = vpop.f32.mrb[0].mxu0
      %3201 = vmatprep.mubr.bf16.mxu0 0
      %3202 = vmatmul.mubr.bf16.gmra.mrb[0].mxu0 %v2899
      %v3203 = vpop.f32.mrb[0].mxu0
      %v3204 = vadd.f32 0.0, %v3203
      %v3205 = vpop.f32.mrb[0].mxu0
      %v3206 = vpop.f32.mrb[0].mxu0
      %v3207 = vadd.f32 0.0, %v3206
      %v3208 = vpop.f32.mrb[0].mxu0
      %3209 = vmatprep.mubr.bf16.mxu0 0
      %3210 = vmatmul.mubr.bf16.gmra.mrb[0].mxu0 %v2900
      %v3211 = vpop.f32.mrb[0].mxu0
      %v3212 = vadd.f32 0.0, %v3211
      %v3213 = vpop.f32.mrb[0].mxu0
      %v3214 = vpop.f32.mrb[0].mxu0
      %v3215 = vadd.f32 0.0, %v3214
      %v3216 = vpop.f32.mrb[0].mxu0
      %3217 = vmatprep.mubr.bf16.mxu0 0
      %3218 = vmatmul.mubr.bf16.gmra.mrb[0].mxu0 %v2901
      %v3219 = vpop.f32.mrb[0].mxu0
      %v3220 = vadd.f32 0.0, %v3219
      %v3221 = vpop.f32.mrb[0].mxu0
      %v3222 = vpop.f32.mrb[0].mxu0
      %v3223 = vadd.f32 0.0, %v3222
      %v3224 = vpop.f32.mrb[0].mxu0
      %3225 = vmatprep.mubr.bf16.mxu0 0
      %3226 = vmatmul.mubr.bf16.gmra.mrb[0].mxu0 %v2902
      %v3227 = vpop.f32.mrb[0].mxu0
      %v3228 = vadd.f32 0.0, %v3227
      %v3229 = vpop.f32.mrb[0].mxu0
      %v3230 = vpop.f32.mrb[0].mxu0
      %v3231 = vadd.f32 0.0, %v3230
      %v3232 = vpop.f32.mrb[0].mxu0
      %3233 = vdwg.mxu0
      %3234 = vmatprep.subr.bf16.mxu0 0
      %3235 = vmatpush1.bf16.msra.mxu0 %v575
      %3236 = vmatprep.subr.bf16.mxu0 0
      %3237 = vmatpush1.bf16.msra.mxu0 %v577
      %3238 = vmatprep.subr.bf16.mxu0 0
      %3239 = vmatpush1.bf16.msra.mxu0 %v579
      %3240 = vmatprep.subr.bf16.mxu0 0
      %3241 = vmatpush1.bf16.msra.mxu0 %v581
      %3242 = vmatprep.subr.bf16.mxu0 0
      %3243 = vmatpush1.bf16.msra.mxu0 %v583
      %3244 = vmatprep.subr.bf16.mxu0 0
      %3245 = vmatpush1.bf16.msra.mxu0 %v585
      %3246 = vmatprep.subr.bf16.mxu0 0
      %3247 = vmatpush1.bf16.msra.mxu0 %v587
      %3248 = vmatprep.subr.bf16.mxu0 0
      %3249 = vmatpush1.bf16.msra.mxu0 %v589
      %3250 = vmatprep.subr.bf16.mxu0 0
      %3251 = vmatpush1.bf16.msra.mxu0 0
      %3252 = vmatprep.subr.bf16.mxu0 0
      %3253 = vmatpush1.bf16.msra.mxu0 0
      %3254 = vmatprep.subr.bf16.mxu0 0
      %3255 = vmatpush1.bf16.msra.mxu0 0
      %3256 = vmatprep.subr.bf16.mxu0 0
      %3257 = vmatpush1.bf16.msra.mxu0 0
      %3258 = vmatprep.subr.bf16.mxu0 0
      %3259 = vmatpush1.bf16.msra.mxu0 0
      %3260 = vmatprep.subr.bf16.mxu0 0
      %3261 = vmatpush1.bf16.msra.mxu0 0
      %3262 = vmatprep.subr.bf16.mxu0 0
      %3263 = vmatpush1.bf16.msra.mxu0 0
      %3264 = vmatprep.subr.bf16.mxu0 0
      %3265 = vmatpush1.bf16.msra.mxu0 0
      %3266 = vmatprep.mubr.bf16.mxu0 0
      %3267 = vmatmul.mubr.bf16.gmra.mrb[0].mxu0 %v2903
      %v3268 = vpop.f32.mrb[0].mxu0
      %v3269 = vadd.f32 0.0, %v3268
      %v3270 = vpop.f32.mrb[0].mxu0
      %v3271 = vpop.f32.mrb[0].mxu0
      %v3272 = vadd.f32 0.0, %v3271
      %v3273 = vpop.f32.mrb[0].mxu0
      %3274 = vmatprep.mubr.bf16.mxu0 0
      %3275 = vmatmul.mubr.bf16.gmra.mrb[0].mxu0 %v2904
      %v3276 = vpop.f32.mrb[0].mxu0
      %v3277 = vadd.f32 0.0, %v3276
      %v3278 = vpop.f32.mrb[0].mxu0
      %v3279 = vpop.f32.mrb[0].mxu0
      %v3280 = vadd.f32 0.0, %v3279
      %v3281 = vpop.f32.mrb[0].mxu0
      %3282 = vmatprep.mubr.bf16.mxu0 0
      %3283 = vmatmul.mubr.bf16.gmra.mrb[0].mxu0 %v2905
      %v3284 = vpop.f32.mrb[0].mxu0
      %v3285 = vadd.f32 0.0, %v3284
      %v3286 = vpop.f32.mrb[0].mxu0
      %v3287 = vpop.f32.mrb[0].mxu0
      %v3288 = vadd.f32 0.0, %v3287
      %v3289 = vpop.f32.mrb[0].mxu0
      %3290 = vmatprep.mubr.bf16.mxu0 0
      %3291 = vmatmul.mubr.bf16.gmra.mrb[0].mxu0 %v2906
      %v3292 = vpop.f32.mrb[0].mxu0
      %v3293 = vadd.f32 0.0, %v3292
      %v3294 = vpop.f32.mrb[0].mxu0
      %v3295 = vpop.f32.mrb[0].mxu0
      %v3296 = vadd.f32 0.0, %v3295
      %v3297 = vpop.f32.mrb[0].mxu0
      %3298 = vmatprep.mubr.bf16.mxu0 0
      %3299 = vmatmul.mubr.bf16.gmra.mrb[0].mxu0 %v2907
      %v3300 = vpop.f32.mrb[0].mxu0
      %v3301 = vadd.f32 0.0, %v3300
      %v3302 = vpop.f32.mrb[0].mxu0
      %v3303 = vpop.f32.mrb[0].mxu0
      %v3304 = vadd.f32 0.0, %v3303
      %v3305 = vpop.f32.mrb[0].mxu0
      %3306 = vmatprep.mubr.bf16.mxu0 0
      %3307 = vmatmul.mubr.bf16.gmra.mrb[0].mxu0 %v2908
      %v3308 = vpop.f32.mrb[0].mxu0
      %v3309 = vadd.f32 0.0, %v3308
      %v3310 = vpop.f32.mrb[0].mxu0
      %v3311 = vpop.f32.mrb[0].mxu0
      %v3312 = vadd.f32 0.0, %v3311
      %v3313 = vpop.f32.mrb[0].mxu0
      %3314 = vmatprep.mubr.bf16.mxu0 0
      %3315 = vmatmul.mubr.bf16.gmra.mrb[0].mxu0 %v2909
      %v3316 = vpop.f32.mrb[0].mxu0
      %v3317 = vadd.f32 0.0, %v3316
      %v3318 = vpop.f32.mrb[0].mxu0
      %v3319 = vpop.f32.mrb[0].mxu0
      %v3320 = vadd.f32 0.0, %v3319
      %v3321 = vpop.f32.mrb[0].mxu0
      %3322 = vmatprep.mubr.bf16.mxu0 0
      %3323 = vmatmul.mubr.bf16.gmra.mrb[0].mxu0 %v2910
      %v3324 = vpop.f32.mrb[0].mxu0
      %v3325 = vadd.f32 0.0, %v3324
      %v3326 = vpop.f32.mrb[0].mxu0
      %v3327 = vpop.f32.mrb[0].mxu0
      %v3328 = vadd.f32 0.0, %v3327
      %v3329 = vpop.f32.mrb[0].mxu0
      %3330 = vdwg.mxu0
      %3331 = vmatprep.subr.bf16.mxu0 0
      %3332 = vmatpush1.bf16.msra.mxu0 %v599
      %3333 = vmatprep.subr.bf16.mxu0 0
      %3334 = vmatpush1.bf16.msra.mxu0 %v601
      %3335 = vmatprep.subr.bf16.mxu0 0
      %3336 = vmatpush1.bf16.msra.mxu0 %v603
      %3337 = vmatprep.subr.bf16.mxu0 0
      %3338 = vmatpush1.bf16.msra.mxu0 %v605
      %3339 = vmatprep.subr.bf16.mxu0 0
      %3340 = vmatpush1.bf16.msra.mxu0 %v607
      %3341 = vmatprep.subr.bf16.mxu0 0
      %3342 = vmatpush1.bf16.msra.mxu0 %v609
      %3343 = vmatprep.subr.bf16.mxu0 0
      %3344 = vmatpush1.bf16.msra.mxu0 %v611
      %3345 = vmatprep.subr.bf16.mxu0 0
      %3346 = vmatpush1.bf16.msra.mxu0 %v613
      %3347 = vmatprep.subr.bf16.mxu0 0
      %3348 = vmatpush1.bf16.msra.mxu0 0
      %3349 = vmatprep.subr.bf16.mxu0 0
      %3350 = vmatpush1.bf16.msra.mxu0 0
      %3351 = vmatprep.subr.bf16.mxu0 0
      %3352 = vmatpush1.bf16.msra.mxu0 0
      %3353 = vmatprep.subr.bf16.mxu0 0
      %3354 = vmatpush1.bf16.msra.mxu0 0
      %3355 = vmatprep.subr.bf16.mxu0 0
      %3356 = vmatpush1.bf16.msra.mxu0 0
      %3357 = vmatprep.subr.bf16.mxu0 0
      %3358 = vmatpush1.bf16.msra.mxu0 0
      %3359 = vmatprep.subr.bf16.mxu0 0
      %3360 = vmatpush1.bf16.msra.mxu0 0
      %3361 = vmatprep.subr.bf16.mxu0 0
      %3362 = vmatpush1.bf16.msra.mxu0 0
      %3363 = vmatprep.mubr.bf16.mxu0 0
      %3364 = vmatmul.mubr.bf16.gmra.mrb[0].mxu0 %v2911
      %v3365 = vpop.f32.mrb[0].mxu0
      %v3366 = vadd.f32 0.0, %v3365
      %v3367 = vpop.f32.mrb[0].mxu0
      %v3368 = vpop.f32.mrb[0].mxu0
      %v3369 = vadd.f32 0.0, %v3368
      %v3370 = vpop.f32.mrb[0].mxu0
      %3371 = vmatprep.mubr.bf16.mxu0 0
      %3372 = vmatmul.mubr.bf16.gmra.mrb[0].mxu0 %v2912
      %v3373 = vpop.f32.mrb[0].mxu0
      %v3374 = vadd.f32 0.0, %v3373
      %v3375 = vpop.f32.mrb[0].mxu0
      %v3376 = vpop.f32.mrb[0].mxu0
      %v3377 = vadd.f32 0.0, %v3376
      %v3378 = vpop.f32.mrb[0].mxu0
      %3379 = vmatprep.mubr.bf16.mxu0 0
      %3380 = vmatmul.mubr.bf16.gmra.mrb[0].mxu0 %v2913
      %v3381 = vpop.f32.mrb[0].mxu0
      %v3382 = vadd.f32 0.0, %v3381
      %v3383 = vpop.f32.mrb[0].mxu0
      %v3384 = vpop.f32.mrb[0].mxu0
      %v3385 = vadd.f32 0.0, %v3384
      %v3386 = vpop.f32.mrb[0].mxu0
      %3387 = vmatprep.mubr.bf16.mxu0 0
      %3388 = vmatmul.mubr.bf16.gmra.mrb[0].mxu0 %v2914
      %v3389 = vpop.f32.mrb[0].mxu0
      %v3390 = vadd.f32 0.0, %v3389
      %v3391 = vpop.f32.mrb[0].mxu0
      %v3392 = vpop.f32.mrb[0].mxu0
      %v3393 = vadd.f32 0.0, %v3392
      %v3394 = vpop.f32.mrb[0].mxu0
      %3395 = vmatprep.mubr.bf16.mxu0 0
      %3396 = vmatmul.mubr.bf16.gmra.mrb[0].mxu0 %v2915
      %v3397 = vpop.f32.mrb[0].mxu0
      %v3398 = vadd.f32 0.0, %v3397
      %v3399 = vpop.f32.mrb[0].mxu0
      %v3400 = vpop.f32.mrb[0].mxu0
      %v3401 = vadd.f32 0.0, %v3400
      %v3402 = vpop.f32.mrb[0].mxu0
      %3403 = vmatprep.mubr.bf16.mxu0 0
      %3404 = vmatmul.mubr.bf16.gmra.mrb[0].mxu0 %v2916
      %v3405 = vpop.f32.mrb[0].mxu0
      %v3406 = vadd.f32 0.0, %v3405
      %v3407 = vpop.f32.mrb[0].mxu0
      %v3408 = vpop.f32.mrb[0].mxu0
      %v3409 = vadd.f32 0.0, %v3408
      %v3410 = vpop.f32.mrb[0].mxu0
      %3411 = vmatprep.mubr.bf16.mxu0 0
      %3412 = vmatmul.mubr.bf16.gmra.mrb[0].mxu0 %v2917
      %v3413 = vpop.f32.mrb[0].mxu0
      %v3414 = vadd.f32 0.0, %v3413
      %v3415 = vpop.f32.mrb[0].mxu0
      %v3416 = vpop.f32.mrb[0].mxu0
      %v3417 = vadd.f32 0.0, %v3416
      %v3418 = vpop.f32.mrb[0].mxu0
      %3419 = vmatprep.mubr.bf16.mxu0 0
      %3420 = vmatmul.mubr.bf16.gmra.mrb[0].mxu0 %v2918
      %v3421 = vpop.f32.mrb[0].mxu0
      %v3422 = vadd.f32 0.0, %v3421
      %v3423 = vpop.f32.mrb[0].mxu0
      %v3424 = vpop.f32.mrb[0].mxu0
      %v3425 = vadd.f32 0.0, %v3424
      %v3426 = vpop.f32.mrb[0].mxu0
      %3427 = vdwg.mxu0
      %3428 = vmatprep.subr.bf16.mxu0 0
      %3429 = vmatpush1.bf16.msra.mxu0 %v623
      %3430 = vmatprep.subr.bf16.mxu0 0
      %3431 = vmatpush1.bf16.msra.mxu0 %v625
      %3432 = vmatprep.subr.bf16.mxu0 0
      %3433 = vmatpush1.bf16.msra.mxu0 %v627
      %3434 = vmatprep.subr.bf16.mxu0 0
      %3435 = vmatpush1.bf16.msra.mxu0 %v629
      %3436 = vmatprep.subr.bf16.mxu0 0
      %3437 = vmatpush1.bf16.msra.mxu0 %v631
      %3438 = vmatprep.subr.bf16.mxu0 0
      %3439 = vmatpush1.bf16.msra.mxu0 %v633
      %3440 = vmatprep.subr.bf16.mxu0 0
      %3441 = vmatpush1.bf16.msra.mxu0 %v635
      %3442 = vmatprep.subr.bf16.mxu0 0
      %3443 = vmatpush1.bf16.msra.mxu0 %v637
      %3444 = vmatprep.subr.bf16.mxu0 0
      %3445 = vmatpush1.bf16.msra.mxu0 0
      %3446 = vmatprep.subr.bf16.mxu0 0
      %3447 = vmatpush1.bf16.msra.mxu0 0
      %3448 = vmatprep.subr.bf16.mxu0 0
      %3449 = vmatpush1.bf16.msra.mxu0 0
      %3450 = vmatprep.subr.bf16.mxu0 0
      %3451 = vmatpush1.bf16.msra.mxu0 0
      %3452 = vmatprep.subr.bf16.mxu0 0
      %3453 = vmatpush1.bf16.msra.mxu0 0
      %3454 = vmatprep.subr.bf16.mxu0 0
      %3455 = vmatpush1.bf16.msra.mxu0 0
      %3456 = vmatprep.subr.bf16.mxu0 0
      %3457 = vmatpush1.bf16.msra.mxu0 0
      %3458 = vmatprep.subr.bf16.mxu0 0
      %3459 = vmatpush1.bf16.msra.mxu0 0
      %3460 = vmatprep.mubr.bf16.mxu0 0
      %3461 = vmatmul.mubr.bf16.gmra.mrb[0].mxu0 %v2919
      %v3462 = vpop.f32.mrb[0].mxu0
      %v3463 = vadd.f32 0.0, %v3462
      %v3464 = vpop.f32.mrb[0].mxu0
      %v3465 = vpop.f32.mrb[0].mxu0
      %v3466 = vadd.f32 0.0, %v3465
      %v3467 = vpop.f32.mrb[0].mxu0
      %3468 = vmatprep.mubr.bf16.mxu0 0
      %3469 = vmatmul.mubr.bf16.gmra.mrb[0].mxu0 %v2920
      %v3470 = vpop.f32.mrb[0].mxu0
      %v3471 = vadd.f32 0.0, %v3470
      %v3472 = vpop.f32.mrb[0].mxu0
      %v3473 = vpop.f32.mrb[0].mxu0
      %v3474 = vadd.f32 0.0, %v3473
      %v3475 = vpop.f32.mrb[0].mxu0
      %3476 = vmatprep.mubr.bf16.mxu0 0
      %3477 = vmatmul.mubr.bf16.gmra.mrb[0].mxu0 %v2921
      %v3478 = vpop.f32.mrb[0].mxu0
      %v3479 = vadd.f32 0.0, %v3478
      %v3480 = vpop.f32.mrb[0].mxu0
      %v3481 = vpop.f32.mrb[0].mxu0
      %v3482 = vadd.f32 0.0, %v3481
      %v3483 = vpop.f32.mrb[0].mxu0
      %3484 = vmatprep.mubr.bf16.mxu0 0
      %3485 = vmatmul.mubr.bf16.gmra.mrb[0].mxu0 %v2922
      %v3486 = vpop.f32.mrb[0].mxu0
      %v3487 = vadd.f32 0.0, %v3486
      %v3488 = vpop.f32.mrb[0].mxu0
      %v3489 = vpop.f32.mrb[0].mxu0
      %v3490 = vadd.f32 0.0, %v3489
      %v3491 = vpop.f32.mrb[0].mxu0
      %3492 = vmatprep.mubr.bf16.mxu0 0
      %3493 = vmatmul.mubr.bf16.gmra.mrb[0].mxu0 %v2923
      %v3494 = vpop.f32.mrb[0].mxu0
      %v3495 = vadd.f32 0.0, %v3494
      %v3496 = vpop.f32.mrb[0].mxu0
      %v3497 = vpop.f32.mrb[0].mxu0
      %v3498 = vadd.f32 0.0, %v3497
      %v3499 = vpop.f32.mrb[0].mxu0
      %3500 = vmatprep.mubr.bf16.mxu0 0
      %3501 = vmatmul.mubr.bf16.gmra.mrb[0].mxu0 %v2924
      %v3502 = vpop.f32.mrb[0].mxu0
      %v3503 = vadd.f32 0.0, %v3502
      %v3504 = vpop.f32.mrb[0].mxu0
      %v3505 = vpop.f32.mrb[0].mxu0
      %v3506 = vadd.f32 0.0, %v3505
      %v3507 = vpop.f32.mrb[0].mxu0
      %3508 = vmatprep.mubr.bf16.mxu0 0
      %3509 = vmatmul.mubr.bf16.gmra.mrb[0].mxu0 %v2925
      %v3510 = vpop.f32.mrb[0].mxu0
      %v3511 = vadd.f32 0.0, %v3510
      %v3512 = vpop.f32.mrb[0].mxu0
      %v3513 = vpop.f32.mrb[0].mxu0
      %v3514 = vadd.f32 0.0, %v3513
      %v3515 = vpop.f32.mrb[0].mxu0
      %3516 = vmatprep.mubr.bf16.mxu0 0
      %3517 = vmatmul.mubr.bf16.gmra.mrb[0].mxu0 %v2926
      %v3518 = vpop.f32.mrb[0].mxu0
      %v3519 = vadd.f32 0.0, %v3518
      %v3520 = vpop.f32.mrb[0].mxu0
      %v3521 = vpop.f32.mrb[0].mxu0
      %v3522 = vadd.f32 0.0, %v3521
      %v3523 = vpop.f32.mrb[0].mxu0
      %3524 = vdwg.mxu0
      %3525 = vmatprep.subr.bf16.mxu0 0
      %3526 = vmatpush1.bf16.msra.mxu0 %v647
      %3527 = vmatprep.subr.bf16.mxu0 0
      %3528 = vmatpush1.bf16.msra.mxu0 %v649
      %3529 = vmatprep.subr.bf16.mxu0 0
      %3530 = vmatpush1.bf16.msra.mxu0 %v651
      %3531 = vmatprep.subr.bf16.mxu0 0
      %3532 = vmatpush1.bf16.msra.mxu0 %v653
      %3533 = vmatprep.subr.bf16.mxu0 0
      %3534 = vmatpush1.bf16.msra.mxu0 %v655
      %3535 = vmatprep.subr.bf16.mxu0 0
      %3536 = vmatpush1.bf16.msra.mxu0 %v657
      %3537 = vmatprep.subr.bf16.mxu0 0
      %3538 = vmatpush1.bf16.msra.mxu0 %v659
      %3539 = vmatprep.subr.bf16.mxu0 0
      %3540 = vmatpush1.bf16.msra.mxu0 %v661
      %3541 = vmatprep.subr.bf16.mxu0 0
      %3542 = vmatpush1.bf16.msra.mxu0 0
      %3543 = vmatprep.subr.bf16.mxu0 0
      %3544 = vmatpush1.bf16.msra.mxu0 0
      %3545 = vmatprep.subr.bf16.mxu0 0
      %3546 = vmatpush1.bf16.msra.mxu0 0
      %3547 = vmatprep.subr.bf16.mxu0 0
      %3548 = vmatpush1.bf16.msra.mxu0 0
      %3549 = vmatprep.subr.bf16.mxu0 0
      %3550 = vmatpush1.bf16.msra.mxu0 0
      %3551 = vmatprep.subr.bf16.mxu0 0
      %3552 = vmatpush1.bf16.msra.mxu0 0
      %3553 = vmatprep.subr.bf16.mxu0 0
      %3554 = vmatpush1.bf16.msra.mxu0 0
      %3555 = vmatprep.subr.bf16.mxu0 0
      %3556 = vmatpush1.bf16.msra.mxu0 0
      %3557 = vmatprep.mubr.bf16.mxu0 0
      %3558 = vmatmul.mubr.bf16.gmra.mrb[0].mxu0 %v2927
      %v3559 = vpop.f32.mrb[0].mxu0
      %v3560 = vadd.f32 0.0, %v3559
      %v3561 = vpop.f32.mrb[0].mxu0
      %v3562 = vpop.f32.mrb[0].mxu0
      %v3563 = vadd.f32 0.0, %v3562
      %v3564 = vpop.f32.mrb[0].mxu0
      %3565 = vmatprep.mubr.bf16.mxu0 0
      %3566 = vmatmul.mubr.bf16.gmra.mrb[0].mxu0 %v2928
      %v3567 = vpop.f32.mrb[0].mxu0
      %v3568 = vadd.f32 0.0, %v3567
      %v3569 = vpop.f32.mrb[0].mxu0
      %v3570 = vpop.f32.mrb[0].mxu0
      %v3571 = vadd.f32 0.0, %v3570
      %v3572 = vpop.f32.mrb[0].mxu0
      %3573 = vmatprep.mubr.bf16.mxu0 0
      %3574 = vmatmul.mubr.bf16.gmra.mrb[0].mxu0 %v2929
      %v3575 = vpop.f32.mrb[0].mxu0
      %v3576 = vadd.f32 0.0, %v3575
      %v3577 = vpop.f32.mrb[0].mxu0
      %v3578 = vpop.f32.mrb[0].mxu0
      %v3579 = vadd.f32 0.0, %v3578
      %v3580 = vpop.f32.mrb[0].mxu0
      %3581 = vmatprep.mubr.bf16.mxu0 0
      %3582 = vmatmul.mubr.bf16.gmra.mrb[0].mxu0 %v2930
      %v3583 = vpop.f32.mrb[0].mxu0
      %v3584 = vadd.f32 0.0, %v3583
      %v3585 = vpop.f32.mrb[0].mxu0
      %v3586 = vpop.f32.mrb[0].mxu0
      %v3587 = vadd.f32 0.0, %v3586
      %v3588 = vpop.f32.mrb[0].mxu0
      %3589 = vmatprep.mubr.bf16.mxu0 0
      %3590 = vmatmul.mubr.bf16.gmra.mrb[0].mxu0 %v2931
      %v3591 = vpop.f32.mrb[0].mxu0
      %v3592 = vadd.f32 0.0, %v3591
      %v3593 = vpop.f32.mrb[0].mxu0
      %v3594 = vpop.f32.mrb[0].mxu0
      %v3595 = vadd.f32 0.0, %v3594
      %v3596 = vpop.f32.mrb[0].mxu0
      %3597 = vmatprep.mubr.bf16.mxu0 0
      %3598 = vmatmul.mubr.bf16.gmra.mrb[0].mxu0 %v2932
      %v3599 = vpop.f32.mrb[0].mxu0
      %v3600 = vadd.f32 0.0, %v3599
      %v3601 = vpop.f32.mrb[0].mxu0
      %v3602 = vpop.f32.mrb[0].mxu0
      %v3603 = vadd.f32 0.0, %v3602
      %v3604 = vpop.f32.mrb[0].mxu0
      %3605 = vmatprep.mubr.bf16.mxu0 0
      %3606 = vmatmul.mubr.bf16.gmra.mrb[0].mxu0 %v2933
      %v3607 = vpop.f32.mrb[0].mxu0
      %v3608 = vadd.f32 0.0, %v3607
      %v3609 = vpop.f32.mrb[0].mxu0
      %v3610 = vpop.f32.mrb[0].mxu0
      %v3611 = vadd.f32 0.0, %v3610
      %v3612 = vpop.f32.mrb[0].mxu0
      %3613 = vmatprep.mubr.bf16.mxu0 0
      %3614 = vmatmul.mubr.bf16.gmra.mrb[0].mxu0 %v2934
      %v3615 = vpop.f32.mrb[0].mxu0
      %v3616 = vadd.f32 0.0, %v3615
      %v3617 = vpop.f32.mrb[0].mxu0
      %v3618 = vpop.f32.mrb[0].mxu0
      %v3619 = vadd.f32 0.0, %v3618
      %v3620 = vpop.f32.mrb[0].mxu0
      %3621 = vdwg.mxu0
      %3622 = vmatprep.subr.bf16.mxu0 0
      %3623 = vmatpush1.bf16.msra.mxu0 %v671
      %3624 = vmatprep.subr.bf16.mxu0 0
      %3625 = vmatpush1.bf16.msra.mxu0 %v673
      %3626 = vmatprep.subr.bf16.mxu0 0
      %3627 = vmatpush1.bf16.msra.mxu0 %v675
      %3628 = vmatprep.subr.bf16.mxu0 0
      %3629 = vmatpush1.bf16.msra.mxu0 %v677
      %3630 = vmatprep.subr.bf16.mxu0 0
      %3631 = vmatpush1.bf16.msra.mxu0 %v679
      %3632 = vmatprep.subr.bf16.mxu0 0
      %3633 = vmatpush1.bf16.msra.mxu0 %v681
      %3634 = vmatprep.subr.bf16.mxu0 0
      %3635 = vmatpush1.bf16.msra.mxu0 %v683
      %3636 = vmatprep.subr.bf16.mxu0 0
      %3637 = vmatpush1.bf16.msra.mxu0 %v685
      %3638 = vmatprep.subr.bf16.mxu0 0
      %3639 = vmatpush1.bf16.msra.mxu0 0
      %3640 = vmatprep.subr.bf16.mxu0 0
      %3641 = vmatpush1.bf16.msra.mxu0 0
      %3642 = vmatprep.subr.bf16.mxu0 0
      %3643 = vmatpush1.bf16.msra.mxu0 0
      %3644 = vmatprep.subr.bf16.mxu0 0
      %3645 = vmatpush1.bf16.msra.mxu0 0
      %3646 = vmatprep.subr.bf16.mxu0 0
      %3647 = vmatpush1.bf16.msra.mxu0 0
      %3648 = vmatprep.subr.bf16.mxu0 0
      %3649 = vmatpush1.bf16.msra.mxu0 0
      %3650 = vmatprep.subr.bf16.mxu0 0
      %3651 = vmatpush1.bf16.msra.mxu0 0
      %3652 = vmatprep.subr.bf16.mxu0 0
      %3653 = vmatpush1.bf16.msra.mxu0 0
      %3654 = vmatprep.mubr.bf16.mxu0 0
      %3655 = vmatmul.mubr.bf16.gmra.mrb[0].mxu0 %v2935
      %v3656 = vpop.f32.mrb[0].mxu0
      %v3657 = vadd.f32 0.0, %v3656
      %v3658 = vpop.f32.mrb[0].mxu0
      %v3659 = vpop.f32.mrb[0].mxu0
      %v3660 = vadd.f32 0.0, %v3659
      %v3661 = vpop.f32.mrb[0].mxu0
      %3662 = vmatprep.mubr.bf16.mxu0 0
      %3663 = vmatmul.mubr.bf16.gmra.mrb[0].mxu0 %v2936
      %v3664 = vpop.f32.mrb[0].mxu0
      %v3665 = vadd.f32 0.0, %v3664
      %v3666 = vpop.f32.mrb[0].mxu0
      %v3667 = vpop.f32.mrb[0].mxu0
      %v3668 = vadd.f32 0.0, %v3667
      %v3669 = vpop.f32.mrb[0].mxu0
      %3670 = vmatprep.mubr.bf16.mxu0 0
      %3671 = vmatmul.mubr.bf16.gmra.mrb[0].mxu0 %v2937
      %v3672 = vpop.f32.mrb[0].mxu0
      %v3673 = vadd.f32 0.0, %v3672
      %v3674 = vpop.f32.mrb[0].mxu0
      %v3675 = vpop.f32.mrb[0].mxu0
      %v3676 = vadd.f32 0.0, %v3675
      %v3677 = vpop.f32.mrb[0].mxu0
      %3678 = vmatprep.mubr.bf16.mxu0 0
      %3679 = vmatmul.mubr.bf16.gmra.mrb[0].mxu0 %v2938
      %v3680 = vpop.f32.mrb[0].mxu0
      %v3681 = vadd.f32 0.0, %v3680
      %v3682 = vpop.f32.mrb[0].mxu0
      %v3683 = vpop.f32.mrb[0].mxu0
      %v3684 = vadd.f32 0.0, %v3683
      %v3685 = vpop.f32.mrb[0].mxu0
      %3686 = vmatprep.mubr.bf16.mxu0 0
      %3687 = vmatmul.mubr.bf16.gmra.mrb[0].mxu0 %v2939
      %v3688 = vpop.f32.mrb[0].mxu0
      %v3689 = vadd.f32 0.0, %v3688
      %v3690 = vpop.f32.mrb[0].mxu0
      %v3691 = vpop.f32.mrb[0].mxu0
      %v3692 = vadd.f32 0.0, %v3691
      %v3693 = vpop.f32.mrb[0].mxu0
      %3694 = vmatprep.mubr.bf16.mxu0 0
      %3695 = vmatmul.mubr.bf16.gmra.mrb[0].mxu0 %v2940
      %v3696 = vpop.f32.mrb[0].mxu0
      %v3697 = vadd.f32 0.0, %v3696
      %v3698 = vpop.f32.mrb[0].mxu0
      %v3699 = vpop.f32.mrb[0].mxu0
      %v3700 = vadd.f32 0.0, %v3699
      %v3701 = vpop.f32.mrb[0].mxu0
      %3702 = vmatprep.mubr.bf16.mxu0 0
      %3703 = vmatmul.mubr.bf16.gmra.mrb[0].mxu0 %v2941
      %v3704 = vpop.f32.mrb[0].mxu0
      %v3705 = vadd.f32 0.0, %v3704
      %v3706 = vpop.f32.mrb[0].mxu0
      %v3707 = vpop.f32.mrb[0].mxu0
      %v3708 = vadd.f32 0.0, %v3707
      %v3709 = vpop.f32.mrb[0].mxu0
      %3710 = vmatprep.mubr.bf16.mxu0 0
      %3711 = vmatmul.mubr.bf16.gmra.mrb[0].mxu0 %v2942
      %v3712 = vpop.f32.mrb[0].mxu0
      %v3713 = vadd.f32 0.0, %v3712
      %v3714 = vpop.f32.mrb[0].mxu0
      %v3715 = vpop.f32.mrb[0].mxu0
      %v3716 = vadd.f32 0.0, %v3715
      %v3717 = vpop.f32.mrb[0].mxu0
      %3718 = vdwg.mxu0
      %v3719 = vrcp.pop %v2624
      %v3720 = vmul.f32 1.0, %v3719
      %v3721 = vrcp.pop %v2626
      %v3722 = vmul.f32 1.0, %v3721
      %v3723 = vrcp.pop %v2628
      %v3724 = vmul.f32 1.0, %v3723
      %v3725 = vrcp.pop %v2630
      %v3726 = vmul.f32 1.0, %v3725
      %v3727 = vrcp.pop %v2632
      %v3728 = vmul.f32 1.0, %v3727
      %v3729 = vrcp.pop %v2634
      %v3730 = vmul.f32 1.0, %v3729
      %v3731 = vrcp.pop %v2636
      %v3732 = vmul.f32 1.0, %v3731
      %v3733 = vrcp.pop %v2638
      %v3734 = vmul.f32 1.0, %v3733
      %v3735 = vrcp.pop %v2640
      %v3736 = vmul.f32 1.0, %v3735
      %v3737 = vrcp.pop %v2642
      %v3738 = vmul.f32 1.0, %v3737
      %v3739 = vrcp.pop %v2644
      %v3740 = vmul.f32 1.0, %v3739
      %v3741 = vrcp.pop %v2646
      %v3742 = vmul.f32 1.0, %v3741
      %v3743 = vrcp.pop %v2648
      %v3744 = vmul.f32 1.0, %v3743
      %v3745 = vrcp.pop %v2650
      %v3746 = vmul.f32 1.0, %v3745
      %v3747 = vrcp.pop %v2652
      %v3748 = vmul.f32 1.0, %v3747
      %v3749 = vrcp.pop %v2654
      %v3750 = vmul.f32 1.0, %v3749
      %v3751 = vrcp.pop %v2656
      %v3752 = vmul.f32 1.0, %v3751
      %v3753 = vrcp.pop %v2658
      %v3754 = vmul.f32 1.0, %v3753
      %v3755 = vrcp.pop %v2660
      %v3756 = vmul.f32 1.0, %v3755
      %v3757 = vrcp.pop %v2662
      %v3758 = vmul.f32 1.0, %v3757
      %v3759 = vrcp.pop %v2664
      %v3760 = vmul.f32 1.0, %v3759
      %v3761 = vrcp.pop %v2666
      %v3762 = vmul.f32 1.0, %v3761
      %v3763 = vrcp.pop %v2668
      %v3764 = vmul.f32 1.0, %v3763
      %v3765 = vrcp.pop %v2670
      %v3766 = vmul.f32 1.0, %v3765
      %v3767 = vrcp.pop %v2672
      %v3768 = vmul.f32 1.0, %v3767
      %v3769 = vrcp.pop %v2674
      %v3770 = vmul.f32 1.0, %v3769
      %v3771 = vrcp.pop %v2676
      %v3772 = vmul.f32 1.0, %v3771
      %v3773 = vrcp.pop %v2678
      %v3774 = vmul.f32 1.0, %v3773
      %v3775 = vrcp.pop %v2680
      %v3776 = vmul.f32 1.0, %v3775
      %v3777 = vrcp.pop %v2682
      %v3778 = vmul.f32 1.0, %v3777
      %v3779 = vrcp.pop %v2684
      %v3780 = vmul.f32 1.0, %v3779
      %v3781 = vrcp.pop %v2686
      %v3782 = vmul.f32 1.0, %v3781
      %v3783 = vrcp.pop %v2688
      %v3784 = vmul.f32 1.0, %v3783
      %v3785 = vrcp.pop %v2690
      %v3786 = vmul.f32 1.0, %v3785
      %v3787 = vrcp.pop %v2692
      %v3788 = vmul.f32 1.0, %v3787
      %v3789 = vrcp.pop %v2694
      %v3790 = vmul.f32 1.0, %v3789
      %v3791 = vrcp.pop %v2696
      %v3792 = vmul.f32 1.0, %v3791
      %v3793 = vrcp.pop %v2698
      %v3794 = vmul.f32 1.0, %v3793
      %v3795 = vrcp.pop %v2700
      %v3796 = vmul.f32 1.0, %v3795
      %v3797 = vrcp.pop %v2702
      %v3798 = vmul.f32 1.0, %v3797
      %v3799 = vrcp.pop %v2704
      %v3800 = vmul.f32 1.0, %v3799
      %v3801 = vrcp.pop %v2706
      %v3802 = vmul.f32 1.0, %v3801
      %v3803 = vrcp.pop %v2708
      %v3804 = vmul.f32 1.0, %v3803
      %v3805 = vrcp.pop %v2710
      %v3806 = vmul.f32 1.0, %v3805
      %v3807 = vrcp.pop %v2712
      %v3808 = vmul.f32 1.0, %v3807
      %v3809 = vrcp.pop %v2714
      %v3810 = vmul.f32 1.0, %v3809
      %v3811 = vrcp.pop %v2716
      %v3812 = vmul.f32 1.0, %v3811
      %v3813 = vrcp.pop %v2718
      %v3814 = vmul.f32 1.0, %v3813
      %v3815 = vrcp.pop %v2720
      %v3816 = vmul.f32 1.0, %v3815
      %v3817 = vrcp.pop %v2722
      %v3818 = vmul.f32 1.0, %v3817
      %v3819 = vrcp.pop %v2724
      %v3820 = vmul.f32 1.0, %v3819
      %v3821 = vrcp.pop %v2726
      %v3822 = vmul.f32 1.0, %v3821
      %v3823 = vrcp.pop %v2728
      %v3824 = vmul.f32 1.0, %v3823
      %v3825 = vrcp.pop %v2730
      %v3826 = vmul.f32 1.0, %v3825
      %v3827 = vrcp.pop %v2732
      %v3828 = vmul.f32 1.0, %v3827
      %v3829 = vrcp.pop %v2734
      %v3830 = vmul.f32 1.0, %v3829
      %v3831 = vrcp.pop %v2736
      %v3832 = vmul.f32 1.0, %v3831
      %v3833 = vrcp.pop %v2738
      %v3834 = vmul.f32 1.0, %v3833
      %v3835 = vrcp.pop %v2740
      %v3836 = vmul.f32 1.0, %v3835
      %v3837 = vrcp.pop %v2742
      %v3838 = vmul.f32 1.0, %v3837
      %v3839 = vrcp.pop %v2744
      %v3840 = vmul.f32 1.0, %v3839
      %v3841 = vrcp.pop %v2746
      %v3842 = vmul.f32 1.0, %v3841
      %v3843 = vrcp.pop %v2748
      %v3844 = vmul.f32 1.0, %v3843
      %v3845 = vrcp.pop %v2750
      %v3846 = vmul.f32 1.0, %v3845
      %v3847 = vrcp.pop %v2752
      %v3848 = vmul.f32 1.0, %v3847
      %v3849 = vrcp.pop %v2754
      %v3850 = vmul.f32 1.0, %v3849
      %v3851 = vrcp.pop %v2756
      %v3852 = vmul.f32 1.0, %v3851
      %v3853 = vrcp.pop %v2758
      %v3854 = vmul.f32 1.0, %v3853
      %v3855 = vrcp.pop %v2760
      %v3856 = vmul.f32 1.0, %v3855
      %v3857 = vrcp.pop %v2762
      %v3858 = vmul.f32 1.0, %v3857
      %v3859 = vrcp.pop %v2764
      %v3860 = vmul.f32 1.0, %v3859
      %v3861 = vrcp.pop %v2766
      %v3862 = vmul.f32 1.0, %v3861
      %v3863 = vrcp.pop %v2768
      %v3864 = vmul.f32 1.0, %v3863
      %v3865 = vrcp.pop %v2770
      %v3866 = vmul.f32 1.0, %v3865
      %v3867 = vrcp.pop %v2772
      %v3868 = vmul.f32 1.0, %v3867
      %v3869 = vrcp.pop %v2774
      %v3870 = vmul.f32 1.0, %v3869
      %v3871 = vrcp.pop %v2776
      %v3872 = vmul.f32 1.0, %v3871
      %v3873 = vrcp.pop %v2778
      %v3874 = vmul.f32 1.0, %v3873
      %v3875 = vrcp.pop %v2780
      %v3876 = vmul.f32 1.0, %v3875
      %v3877 = vrcp.pop %v2782
      %v3878 = vmul.f32 1.0, %v3877
      %v3879 = vrcp.pop %v2784
      %v3880 = vmul.f32 1.0, %v3879
      %v3881 = vrcp.pop %v2786
      %v3882 = vmul.f32 1.0, %v3881
      %v3883 = vrcp.pop %v2788
      %v3884 = vmul.f32 1.0, %v3883
      %v3885 = vrcp.pop %v2790
      %v3886 = vmul.f32 1.0, %v3885
      %v3887 = vrcp.pop %v2792
      %v3888 = vmul.f32 1.0, %v3887
      %v3889 = vrcp.pop %v2794
      %v3890 = vmul.f32 1.0, %v3889
      %v3891 = vrcp.pop %v2796
      %v3892 = vmul.f32 1.0, %v3891
      %v3893 = vrcp.pop %v2798
      %v3894 = vmul.f32 1.0, %v3893
      %v3895 = vrcp.pop %v2800
      %v3896 = vmul.f32 1.0, %v3895
      %v3897 = vrcp.pop %v2802
      %v3898 = vmul.f32 1.0, %v3897
      %v3899 = vrcp.pop %v2804
      %v3900 = vmul.f32 1.0, %v3899
      %v3901 = vrcp.pop %v2806
      %v3902 = vmul.f32 1.0, %v3901
      %v3903 = vrcp.pop %v2808
      %v3904 = vmul.f32 1.0, %v3903
      %v3905 = vrcp.pop %v2810
      %v3906 = vmul.f32 1.0, %v3905
      %v3907 = vrcp.pop %v2812
      %v3908 = vmul.f32 1.0, %v3907
      %v3909 = vrcp.pop %v2814
      %v3910 = vmul.f32 1.0, %v3909
      %v3911 = vrcp.pop %v2816
      %v3912 = vmul.f32 1.0, %v3911
      %v3913 = vrcp.pop %v2818
      %v3914 = vmul.f32 1.0, %v3913
      %v3915 = vrcp.pop %v2820
      %v3916 = vmul.f32 1.0, %v3915
      %v3917 = vrcp.pop %v2822
      %v3918 = vmul.f32 1.0, %v3917
      %v3919 = vrcp.pop %v2824
      %v3920 = vmul.f32 1.0, %v3919
      %v3921 = vrcp.pop %v2826
      %v3922 = vmul.f32 1.0, %v3921
      %v3923 = vrcp.pop %v2828
      %v3924 = vmul.f32 1.0, %v3923
      %v3925 = vrcp.pop %v2830
      %v3926 = vmul.f32 1.0, %v3925
      %v3927 = vrcp.pop %v2832
      %v3928 = vmul.f32 1.0, %v3927
      %v3929 = vrcp.pop %v2834
      %v3930 = vmul.f32 1.0, %v3929
      %v3931 = vrcp.pop %v2836
      %v3932 = vmul.f32 1.0, %v3931
      %v3933 = vrcp.pop %v2838
      %v3934 = vmul.f32 1.0, %v3933
      %v3935 = vrcp.pop %v2840
      %v3936 = vmul.f32 1.0, %v3935
      %v3937 = vrcp.pop %v2842
      %v3938 = vmul.f32 1.0, %v3937
      %v3939 = vrcp.pop %v2844
      %v3940 = vmul.f32 1.0, %v3939
      %v3941 = vrcp.pop %v2846
      %v3942 = vmul.f32 1.0, %v3941
      %v3943 = vrcp.pop %v2848
      %v3944 = vmul.f32 1.0, %v3943
      %v3945 = vrcp.pop %v2850
      %v3946 = vmul.f32 1.0, %v3945
      %v3947 = vrcp.pop %v2852
      %v3948 = vmul.f32 1.0, %v3947
      %v3949 = vrcp.pop %v2854
      %v3950 = vmul.f32 1.0, %v3949
      %v3951 = vrcp.pop %v2856
      %v3952 = vmul.f32 1.0, %v3951
      %v3953 = vrcp.pop %v2858
      %v3954 = vmul.f32 1.0, %v3953
      %v3955 = vrcp.pop %v2860
      %v3956 = vmul.f32 1.0, %v3955
      %v3957 = vrcp.pop %v2862
      %v3958 = vmul.f32 1.0, %v3957
      %v3959 = vrcp.pop %v2864
      %v3960 = vmul.f32 1.0, %v3959
      %v3961 = vrcp.pop %v2866
      %v3962 = vmul.f32 1.0, %v3961
      %v3963 = vrcp.pop %v2868
      %v3964 = vmul.f32 1.0, %v3963
      %v3965 = vrcp.pop %v2870
      %v3966 = vmul.f32 1.0, %v3965
      %v3967 = vrcp.pop %v2872
      %v3968 = vmul.f32 1.0, %v3967
      %v3969 = vrcp.pop %v2874
      %v3970 = vmul.f32 1.0, %v3969
      %v3971 = vrcp.pop %v2876
      %v3972 = vmul.f32 1.0, %v3971
      %v3973 = vrcp.pop %v2878
      %v3974 = vmul.f32 1.0, %v3973
      %v3975 = vmul.f32 %v2978, %v3720
      %v3976 = vmul.f32 %v2981, %v3722
      %v3977 = vmul.f32 %v2986, %v3724
      %v3978 = vmul.f32 %v2989, %v3726
      %v3979 = vmul.f32 %v2994, %v3728
      %v3980 = vmul.f32 %v2997, %v3730
      %v3981 = vmul.f32 %v3002, %v3732
      %v3982 = vmul.f32 %v3005, %v3734
      %v3983 = vmul.f32 %v3010, %v3736
      %v3984 = vmul.f32 %v3013, %v3738
      %v3985 = vmul.f32 %v3018, %v3740
      %v3986 = vmul.f32 %v3021, %v3742
      %v3987 = vmul.f32 %v3026, %v3744
      %v3988 = vmul.f32 %v3029, %v3746
      %v3989 = vmul.f32 %v3034, %v3748
      %v3990 = vmul.f32 %v3037, %v3750
      %v3991 = vmul.f32 %v3075, %v3752
      %v3992 = vmul.f32 %v3078, %v3754
      %v3993 = vmul.f32 %v3083, %v3756
      %v3994 = vmul.f32 %v3086, %v3758
      %v3995 = vmul.f32 %v3091, %v3760
      %v3996 = vmul.f32 %v3094, %v3762
      %v3997 = vmul.f32 %v3099, %v3764
      %v3998 = vmul.f32 %v3102, %v3766
      %v3999 = vmul.f32 %v3107, %v3768
      %v4000 = vmul.f32 %v3110, %v3770
      %v4001 = vmul.f32 %v3115, %v3772
      %v4002 = vmul.f32 %v3118, %v3774
      %v4003 = vmul.f32 %v3123, %v3776
      %v4004 = vmul.f32 %v3126, %v3778
      %v4005 = vmul.f32 %v3131, %v3780
      %v4006 = vmul.f32 %v3134, %v3782
      %v4007 = vmul.f32 %v3172, %v3784
      %v4008 = vmul.f32 %v3175, %v3786
      %v4009 = vmul.f32 %v3180, %v3788
      %v4010 = vmul.f32 %v3183, %v3790
      %v4011 = vmul.f32 %v3188, %v3792
      %v4012 = vmul.f32 %v3191, %v3794
      %v4013 = vmul.f32 %v3196, %v3796
      %v4014 = vmul.f32 %v3199, %v3798
      %v4015 = vmul.f32 %v3204, %v3800
      %v4016 = vmul.f32 %v3207, %v3802
      %v4017 = vmul.f32 %v3212, %v3804
      %v4018 = vmul.f32 %v3215, %v3806
      %v4019 = vmul.f32 %v3220, %v3808
      %v4020 = vmul.f32 %v3223, %v3810
      %v4021 = vmul.f32 %v3228, %v3812
      %v4022 = vmul.f32 %v3231, %v3814
      %v4023 = vmul.f32 %v3269, %v3816
      %v4024 = vmul.f32 %v3272, %v3818
      %v4025 = vmul.f32 %v3277, %v3820
      %v4026 = vmul.f32 %v3280, %v3822
      %v4027 = vmul.f32 %v3285, %v3824
      %v4028 = vmul.f32 %v3288, %v3826
      %v4029 = vmul.f32 %v3293, %v3828
      %v4030 = vmul.f32 %v3296, %v3830
      %v4031 = vmul.f32 %v3301, %v3832
      %v4032 = vmul.f32 %v3304, %v3834
      %v4033 = vmul.f32 %v3309, %v3836
      %v4034 = vmul.f32 %v3312, %v3838
      %v4035 = vmul.f32 %v3317, %v3840
      %v4036 = vmul.f32 %v3320, %v3842
      %v4037 = vmul.f32 %v3325, %v3844
      %v4038 = vmul.f32 %v3328, %v3846
      %v4039 = vmul.f32 %v3366, %v3848
      %v4040 = vmul.f32 %v3369, %v3850
      %v4041 = vmul.f32 %v3374, %v3852
      %v4042 = vmul.f32 %v3377, %v3854
      %v4043 = vmul.f32 %v3382, %v3856
      %v4044 = vmul.f32 %v3385, %v3858
      %v4045 = vmul.f32 %v3390, %v3860
      %v4046 = vmul.f32 %v3393, %v3862
      %v4047 = vmul.f32 %v3398, %v3864
      %v4048 = vmul.f32 %v3401, %v3866
      %v4049 = vmul.f32 %v3406, %v3868
      %v4050 = vmul.f32 %v3409, %v3870
      %v4051 = vmul.f32 %v3414, %v3872
      %v4052 = vmul.f32 %v3417, %v3874
      %v4053 = vmul.f32 %v3422, %v3876
      %v4054 = vmul.f32 %v3425, %v3878
      %v4055 = vmul.f32 %v3463, %v3880
      %v4056 = vmul.f32 %v3466, %v3882
      %v4057 = vmul.f32 %v3471, %v3884
      %v4058 = vmul.f32 %v3474, %v3886
      %v4059 = vmul.f32 %v3479, %v3888
      %v4060 = vmul.f32 %v3482, %v3890
      %v4061 = vmul.f32 %v3487, %v3892
      %v4062 = vmul.f32 %v3490, %v3894
      %v4063 = vmul.f32 %v3495, %v3896
      %v4064 = vmul.f32 %v3498, %v3898
      %v4065 = vmul.f32 %v3503, %v3900
      %v4066 = vmul.f32 %v3506, %v3902
      %v4067 = vmul.f32 %v3511, %v3904
      %v4068 = vmul.f32 %v3514, %v3906
      %v4069 = vmul.f32 %v3519, %v3908
      %v4070 = vmul.f32 %v3522, %v3910
      %v4071 = vmul.f32 %v3560, %v3912
      %v4072 = vmul.f32 %v3563, %v3914
      %v4073 = vmul.f32 %v3568, %v3916
      %v4074 = vmul.f32 %v3571, %v3918
      %v4075 = vmul.f32 %v3576, %v3920
      %v4076 = vmul.f32 %v3579, %v3922
      %v4077 = vmul.f32 %v3584, %v3924
      %v4078 = vmul.f32 %v3587, %v3926
      %v4079 = vmul.f32 %v3592, %v3928
      %v4080 = vmul.f32 %v3595, %v3930
      %v4081 = vmul.f32 %v3600, %v3932
      %v4082 = vmul.f32 %v3603, %v3934
      %v4083 = vmul.f32 %v3608, %v3936
      %v4084 = vmul.f32 %v3611, %v3938
      %v4085 = vmul.f32 %v3616, %v3940
      %v4086 = vmul.f32 %v3619, %v3942
      %v4087 = vmul.f32 %v3657, %v3944
      %v4088 = vmul.f32 %v3660, %v3946
      %v4089 = vmul.f32 %v3665, %v3948
      %v4090 = vmul.f32 %v3668, %v3950
      %v4091 = vmul.f32 %v3673, %v3952
      %v4092 = vmul.f32 %v3676, %v3954
      %v4093 = vmul.f32 %v3681, %v3956
      %v4094 = vmul.f32 %v3684, %v3958
      %v4095 = vmul.f32 %v3689, %v3960
      %v4096 = vmul.f32 %v3692, %v3962
      %v4097 = vmul.f32 %v3697, %v3964
      %v4098 = vmul.f32 %v3700, %v3966
      %v4099 = vmul.f32 %v3705, %v3968
      %v4100 = vmul.f32 %v3708, %v3970
      %v4101 = vmul.f32 %v3713, %v3972
      %v4102 = vmul.f32 %v3716, %v3974
      %4119 = vrot.lane.b32.xlu0 %v3991, 8
      %v4120 = vpop.permute.xlu0 %4119
      %4121 = vrot.lane.b32.xlu0 %v3992, 8
      %v4122 = vpop.permute.xlu0 %4121
      %4123 = vrot.lane.b32.xlu0 %v3993, 8
      %v4124 = vpop.permute.xlu0 %4123
      %4125 = vrot.lane.b32.xlu0 %v3994, 8
      %v4126 = vpop.permute.xlu0 %4125
      %4127 = vrot.lane.b32.xlu0 %v3995, 8
      %v4128 = vpop.permute.xlu0 %4127
      %4129 = vrot.lane.b32.xlu0 %v3996, 8
      %v4130 = vpop.permute.xlu0 %4129
      %4131 = vrot.lane.b32.xlu0 %v3997, 8
      %v4132 = vpop.permute.xlu0 %4131
      %4133 = vrot.lane.b32.xlu0 %v3998, 8
      %v4134 = vpop.permute.xlu0 %4133
      %4135 = vrot.lane.b32.xlu0 %v3999, 8
      %v4136 = vpop.permute.xlu0 %4135
      %4137 = vrot.lane.b32.xlu0 %v4000, 8
      %v4138 = vpop.permute.xlu0 %4137
      %4139 = vrot.lane.b32.xlu0 %v4001, 8
      %v4140 = vpop.permute.xlu0 %4139
      %4141 = vrot.lane.b32.xlu0 %v4002, 8
      %v4142 = vpop.permute.xlu0 %4141
      %4143 = vrot.lane.b32.xlu0 %v4003, 8
      %v4144 = vpop.permute.xlu0 %4143
      %4145 = vrot.lane.b32.xlu0 %v4004, 8
      %v4146 = vpop.permute.xlu0 %4145
      %4147 = vrot.lane.b32.xlu0 %v4005, 8
      %v4148 = vpop.permute.xlu0 %4147
      %4149 = vrot.lane.b32.xlu0 %v4006, 8
      %v4150 = vpop.permute.xlu0 %4149
      %4183 = vrot.lane.b32.xlu0 %v4007, 16
      %v4184 = vpop.permute.xlu0 %4183
      %4185 = vrot.lane.b32.xlu0 %v4008, 16
      %v4186 = vpop.permute.xlu0 %4185
      %4187 = vrot.lane.b32.xlu0 %v4009, 16
      %v4188 = vpop.permute.xlu0 %4187
      %4189 = vrot.lane.b32.xlu0 %v4010, 16
      %v4190 = vpop.permute.xlu0 %4189
      %4191 = vrot.lane.b32.xlu0 %v4011, 16
      %v4192 = vpop.permute.xlu0 %4191
      %4193 = vrot.lane.b32.xlu0 %v4012, 16
      %v4194 = vpop.permute.xlu0 %4193
      %4195 = vrot.lane.b32.xlu0 %v4013, 16
      %v4196 = vpop.permute.xlu0 %4195
      %4197 = vrot.lane.b32.xlu0 %v4014, 16
      %v4198 = vpop.permute.xlu0 %4197
      %4199 = vrot.lane.b32.xlu0 %v4015, 16
      %v4200 = vpop.permute.xlu0 %4199
      %4201 = vrot.lane.b32.xlu0 %v4016, 16
      %v4202 = vpop.permute.xlu0 %4201
      %4203 = vrot.lane.b32.xlu0 %v4017, 16
      %v4204 = vpop.permute.xlu0 %4203
      %4205 = vrot.lane.b32.xlu0 %v4018, 16
      %v4206 = vpop.permute.xlu0 %4205
      %4207 = vrot.lane.b32.xlu0 %v4019, 16
      %v4208 = vpop.permute.xlu0 %4207
      %4209 = vrot.lane.b32.xlu0 %v4020, 16
      %v4210 = vpop.permute.xlu0 %4209
      %4211 = vrot.lane.b32.xlu0 %v4021, 16
      %v4212 = vpop.permute.xlu0 %4211
      %4213 = vrot.lane.b32.xlu0 %v4022, 16
      %v4214 = vpop.permute.xlu0 %4213
      %4247 = vrot.lane.b32.xlu0 %v4023, 24
      %v4248 = vpop.permute.xlu0 %4247
      %4249 = vrot.lane.b32.xlu0 %v4024, 24
      %v4250 = vpop.permute.xlu0 %4249
      %4251 = vrot.lane.b32.xlu0 %v4025, 24
      %v4252 = vpop.permute.xlu0 %4251
      %4253 = vrot.lane.b32.xlu0 %v4026, 24
      %v4254 = vpop.permute.xlu0 %4253
      %4255 = vrot.lane.b32.xlu0 %v4027, 24
      %v4256 = vpop.permute.xlu0 %4255
      %4257 = vrot.lane.b32.xlu0 %v4028, 24
      %v4258 = vpop.permute.xlu0 %4257
      %4259 = vrot.lane.b32.xlu0 %v4029, 24
      %v4260 = vpop.permute.xlu0 %4259
      %4261 = vrot.lane.b32.xlu0 %v4030, 24
      %v4262 = vpop.permute.xlu0 %4261
      %4263 = vrot.lane.b32.xlu0 %v4031, 24
      %v4264 = vpop.permute.xlu0 %4263
      %4265 = vrot.lane.b32.xlu0 %v4032, 24
      %v4266 = vpop.permute.xlu0 %4265
      %4267 = vrot.lane.b32.xlu0 %v4033, 24
      %v4268 = vpop.permute.xlu0 %4267
      %4269 = vrot.lane.b32.xlu0 %v4034, 24
      %v4270 = vpop.permute.xlu0 %4269
      %4271 = vrot.lane.b32.xlu0 %v4035, 24
      %v4272 = vpop.permute.xlu0 %4271
      %4273 = vrot.lane.b32.xlu0 %v4036, 24
      %v4274 = vpop.permute.xlu0 %4273
      %4275 = vrot.lane.b32.xlu0 %v4037, 24
      %v4276 = vpop.permute.xlu0 %4275
      %4277 = vrot.lane.b32.xlu0 %v4038, 24
      %v4278 = vpop.permute.xlu0 %4277
      %4311 = vrot.lane.b32.xlu0 %v4039, 32
      %v4312 = vpop.permute.xlu0 %4311
      %4313 = vrot.lane.b32.xlu0 %v4040, 32
      %v4314 = vpop.permute.xlu0 %4313
      %4315 = vrot.lane.b32.xlu0 %v4041, 32
      %v4316 = vpop.permute.xlu0 %4315
      %4317 = vrot.lane.b32.xlu0 %v4042, 32
      %v4318 = vpop.permute.xlu0 %4317
      %4319 = vrot.lane.b32.xlu0 %v4043, 32
      %v4320 = vpop.permute.xlu0 %4319
      %4321 = vrot.lane.b32.xlu0 %v4044, 32
      %v4322 = vpop.permute.xlu0 %4321
      %4323 = vrot.lane.b32.xlu0 %v4045, 32
      %v4324 = vpop.permute.xlu0 %4323
      %4325 = vrot.lane.b32.xlu0 %v4046, 32
      %v4326 = vpop.permute.xlu0 %4325
      %4327 = vrot.lane.b32.xlu0 %v4047, 32
      %v4328 = vpop.permute.xlu0 %4327
      %4329 = vrot.lane.b32.xlu0 %v4048, 32
      %v4330 = vpop.permute.xlu0 %4329
      %4331 = vrot.lane.b32.xlu0 %v4049, 32
      %v4332 = vpop.permute.xlu0 %4331
      %4333 = vrot.lane.b32.xlu0 %v4050, 32
      %v4334 = vpop.permute.xlu0 %4333
      %4335 = vrot.lane.b32.xlu0 %v4051, 32
      %v4336 = vpop.permute.xlu0 %4335
      %4337 = vrot.lane.b32.xlu0 %v4052, 32
      %v4338 = vpop.permute.xlu0 %4337
      %4339 = vrot.lane.b32.xlu0 %v4053, 32
      %v4340 = vpop.permute.xlu0 %4339
      %4341 = vrot.lane.b32.xlu0 %v4054, 32
      %v4342 = vpop.permute.xlu0 %4341
      %4375 = vrot.lane.b32.xlu0 %v4055, 40
      %v4376 = vpop.permute.xlu0 %4375
      %4377 = vrot.lane.b32.xlu0 %v4056, 40
      %v4378 = vpop.permute.xlu0 %4377
      %4379 = vrot.lane.b32.xlu0 %v4057, 40
      %v4380 = vpop.permute.xlu0 %4379
      %4381 = vrot.lane.b32.xlu0 %v4058, 40
      %v4382 = vpop.permute.xlu0 %4381
      %4383 = vrot.lane.b32.xlu0 %v4059, 40
      %v4384 = vpop.permute.xlu0 %4383
      %4385 = vrot.lane.b32.xlu0 %v4060, 40
      %v4386 = vpop.permute.xlu0 %4385
      %4387 = vrot.lane.b32.xlu0 %v4061, 40
      %v4388 = vpop.permute.xlu0 %4387
      %4389 = vrot.lane.b32.xlu0 %v4062, 40
      %v4390 = vpop.permute.xlu0 %4389
      %4391 = vrot.lane.b32.xlu0 %v4063, 40
      %v4392 = vpop.permute.xlu0 %4391
      %4393 = vrot.lane.b32.xlu0 %v4064, 40
      %v4394 = vpop.permute.xlu0 %4393
      %4395 = vrot.lane.b32.xlu0 %v4065, 40
      %v4396 = vpop.permute.xlu0 %4395
      %4397 = vrot.lane.b32.xlu0 %v4066, 40
      %v4398 = vpop.permute.xlu0 %4397
      %4399 = vrot.lane.b32.xlu0 %v4067, 40
      %v4400 = vpop.permute.xlu0 %4399
      %4401 = vrot.lane.b32.xlu0 %v4068, 40
      %v4402 = vpop.permute.xlu0 %4401
      %4403 = vrot.lane.b32.xlu0 %v4069, 40
      %v4404 = vpop.permute.xlu0 %4403
      %4405 = vrot.lane.b32.xlu0 %v4070, 40
      %v4406 = vpop.permute.xlu0 %4405
      %4439 = vrot.lane.b32.xlu0 %v4071, 48
      %v4440 = vpop.permute.xlu0 %4439
      %4441 = vrot.lane.b32.xlu0 %v4072, 48
      %v4442 = vpop.permute.xlu0 %4441
      %4443 = vrot.lane.b32.xlu0 %v4073, 48
      %v4444 = vpop.permute.xlu0 %4443
      %4445 = vrot.lane.b32.xlu0 %v4074, 48
      %v4446 = vpop.permute.xlu0 %4445
      %4447 = vrot.lane.b32.xlu0 %v4075, 48
      %v4448 = vpop.permute.xlu0 %4447
      %4449 = vrot.lane.b32.xlu0 %v4076, 48
      %v4450 = vpop.permute.xlu0 %4449
      %4451 = vrot.lane.b32.xlu0 %v4077, 48
      %v4452 = vpop.permute.xlu0 %4451
      %4453 = vrot.lane.b32.xlu0 %v4078, 48
      %v4454 = vpop.permute.xlu0 %4453
      %4455 = vrot.lane.b32.xlu0 %v4079, 48
      %v4456 = vpop.permute.xlu0 %4455
      %4457 = vrot.lane.b32.xlu0 %v4080, 48
      %v4458 = vpop.permute.xlu0 %4457
      %4459 = vrot.lane.b32.xlu0 %v4081, 48
      %v4460 = vpop.permute.xlu0 %4459
      %4461 = vrot.lane.b32.xlu0 %v4082, 48
      %v4462 = vpop.permute.xlu0 %4461
      %4463 = vrot.lane.b32.xlu0 %v4083, 48
      %v4464 = vpop.permute.xlu0 %4463
      %4465 = vrot.lane.b32.xlu0 %v4084, 48
      %v4466 = vpop.permute.xlu0 %4465
      %4467 = vrot.lane.b32.xlu0 %v4085, 48
      %v4468 = vpop.permute.xlu0 %4467
      %4469 = vrot.lane.b32.xlu0 %v4086, 48
      %v4470 = vpop.permute.xlu0 %4469
      %4503 = vrot.lane.b32.xlu0 %v4087, 56
      %v4504 = vpop.permute.xlu0 %4503
      %4505 = vrot.lane.b32.xlu0 %v4088, 56
      %v4506 = vpop.permute.xlu0 %4505
      %4507 = vrot.lane.b32.xlu0 %v4089, 56
      %v4508 = vpop.permute.xlu0 %4507
      %4509 = vrot.lane.b32.xlu0 %v4090, 56
      %v4510 = vpop.permute.xlu0 %4509
      %4511 = vrot.lane.b32.xlu0 %v4091, 56
      %v4512 = vpop.permute.xlu0 %4511
      %4513 = vrot.lane.b32.xlu0 %v4092, 56
      %v4514 = vpop.permute.xlu0 %4513
      %4515 = vrot.lane.b32.xlu0 %v4093, 56
      %v4516 = vpop.permute.xlu0 %4515
      %4517 = vrot.lane.b32.xlu0 %v4094, 56
      %v4518 = vpop.permute.xlu0 %4517
      %4519 = vrot.lane.b32.xlu0 %v4095, 56
      %v4520 = vpop.permute.xlu0 %4519
      %4521 = vrot.lane.b32.xlu0 %v4096, 56
      %v4522 = vpop.permute.xlu0 %4521
      %4523 = vrot.lane.b32.xlu0 %v4097, 56
      %v4524 = vpop.permute.xlu0 %4523
      %4525 = vrot.lane.b32.xlu0 %v4098, 56
      %v4526 = vpop.permute.xlu0 %4525
      %4527 = vrot.lane.b32.xlu0 %v4099, 56
      %v4528 = vpop.permute.xlu0 %4527
      %4529 = vrot.lane.b32.xlu0 %v4100, 56
      %v4530 = vpop.permute.xlu0 %4529
      %4531 = vrot.lane.b32.xlu0 %v4101, 56
      %v4532 = vpop.permute.xlu0 %4531
      %4533 = vrot.lane.b32.xlu0 %v4102, 56
      %v4534 = vpop.permute.xlu0 %4533
      %v4551 = vsel %vm710, %v3975, %v4120
      %v4552 = vsel %vm710, %v3976, %v4122
      %v4553 = vsel %vm710, %v3977, %v4124
      %v4554 = vsel %vm710, %v3978, %v4126
      %v4555 = vsel %vm710, %v3979, %v4128
      %v4556 = vsel %vm710, %v3980, %v4130
      %v4557 = vsel %vm710, %v3981, %v4132
      %v4558 = vsel %vm710, %v3982, %v4134
      %v4559 = vsel %vm710, %v3983, %v4136
      %v4560 = vsel %vm710, %v3984, %v4138
      %v4561 = vsel %vm710, %v3985, %v4140
      %v4562 = vsel %vm710, %v3986, %v4142
      %v4563 = vsel %vm710, %v3987, %v4144
      %v4564 = vsel %vm710, %v3988, %v4146
      %v4565 = vsel %vm710, %v3989, %v4148
      %v4566 = vsel %vm710, %v3990, %v4150
      %vm4567 = vcmask 130048
      %v4568 = vsel %vm4567, %v4551, %v4184
      %v4569 = vsel %vm4567, %v4552, %v4186
      %v4570 = vsel %vm4567, %v4553, %v4188
      %v4571 = vsel %vm4567, %v4554, %v4190
      %v4572 = vsel %vm4567, %v4555, %v4192
      %v4573 = vsel %vm4567, %v4556, %v4194
      %v4574 = vsel %vm4567, %v4557, %v4196
      %v4575 = vsel %vm4567, %v4558, %v4198
      %v4576 = vsel %vm4567, %v4559, %v4200
      %v4577 = vsel %vm4567, %v4560, %v4202
      %v4578 = vsel %vm4567, %v4561, %v4204
      %v4579 = vsel %vm4567, %v4562, %v4206
      %v4580 = vsel %vm4567, %v4563, %v4208
      %v4581 = vsel %vm4567, %v4564, %v4210
      %v4582 = vsel %vm4567, %v4565, %v4212
      %v4583 = vsel %vm4567, %v4566, %v4214
      %vm4584 = vcmask 195584
      %v4585 = vsel %vm4584, %v4568, %v4248
      %v4586 = vsel %vm4584, %v4569, %v4250
      %v4587 = vsel %vm4584, %v4570, %v4252
      %v4588 = vsel %vm4584, %v4571, %v4254
      %v4589 = vsel %vm4584, %v4572, %v4256
      %v4590 = vsel %vm4584, %v4573, %v4258
      %v4591 = vsel %vm4584, %v4574, %v4260
      %v4592 = vsel %vm4584, %v4575, %v4262
      %v4593 = vsel %vm4584, %v4576, %v4264
      %v4594 = vsel %vm4584, %v4577, %v4266
      %v4595 = vsel %vm4584, %v4578, %v4268
      %v4596 = vsel %vm4584, %v4579, %v4270
      %v4597 = vsel %vm4584, %v4580, %v4272
      %v4598 = vsel %vm4584, %v4581, %v4274
      %v4599 = vsel %vm4584, %v4582, %v4276
      %v4600 = vsel %vm4584, %v4583, %v4278
      %vm4601 = vcmask 261120
      %v4602 = vsel %vm4601, %v4585, %v4312
      %v4603 = vsel %vm4601, %v4586, %v4314
      %v4604 = vsel %vm4601, %v4587, %v4316
      %v4605 = vsel %vm4601, %v4588, %v4318
      %v4606 = vsel %vm4601, %v4589, %v4320
      %v4607 = vsel %vm4601, %v4590, %v4322
      %v4608 = vsel %vm4601, %v4591, %v4324
      %v4609 = vsel %vm4601, %v4592, %v4326
      %v4610 = vsel %vm4601, %v4593, %v4328
      %v4611 = vsel %vm4601, %v4594, %v4330
      %v4612 = vsel %vm4601, %v4595, %v4332
      %v4613 = vsel %vm4601, %v4596, %v4334
      %v4614 = vsel %vm4601, %v4597, %v4336
      %v4615 = vsel %vm4601, %v4598, %v4338
      %v4616 = vsel %vm4601, %v4599, %v4340
      %v4617 = vsel %vm4601, %v4600, %v4342
      %vm4618 = vcmask 326656
      %v4619 = vsel %vm4618, %v4602, %v4376
      %v4620 = vsel %vm4618, %v4603, %v4378
      %v4621 = vsel %vm4618, %v4604, %v4380
      %v4622 = vsel %vm4618, %v4605, %v4382
      %v4623 = vsel %vm4618, %v4606, %v4384
      %v4624 = vsel %vm4618, %v4607, %v4386
      %v4625 = vsel %vm4618, %v4608, %v4388
      %v4626 = vsel %vm4618, %v4609, %v4390
      %v4627 = vsel %vm4618, %v4610, %v4392
      %v4628 = vsel %vm4618, %v4611, %v4394
      %v4629 = vsel %vm4618, %v4612, %v4396
      %v4630 = vsel %vm4618, %v4613, %v4398
      %v4631 = vsel %vm4618, %v4614, %v4400
      %v4632 = vsel %vm4618, %v4615, %v4402
      %v4633 = vsel %vm4618, %v4616, %v4404
      %v4634 = vsel %vm4618, %v4617, %v4406
      %vm4635 = vcmask 392192
      %v4636 = vsel %vm4635, %v4619, %v4440
      %v4637 = vsel %vm4635, %v4620, %v4442
      %v4638 = vsel %vm4635, %v4621, %v4444
      %v4639 = vsel %vm4635, %v4622, %v4446
      %v4640 = vsel %vm4635, %v4623, %v4448
      %v4641 = vsel %vm4635, %v4624, %v4450
      %v4642 = vsel %vm4635, %v4625, %v4452
      %v4643 = vsel %vm4635, %v4626, %v4454
      %v4644 = vsel %vm4635, %v4627, %v4456
      %v4645 = vsel %vm4635, %v4628, %v4458
      %v4646 = vsel %vm4635, %v4629, %v4460
      %v4647 = vsel %vm4635, %v4630, %v4462
      %v4648 = vsel %vm4635, %v4631, %v4464
      %v4649 = vsel %vm4635, %v4632, %v4466
      %v4650 = vsel %vm4635, %v4633, %v4468
      %v4651 = vsel %vm4635, %v4634, %v4470
      %vm4652 = vcmask 457728
      %v4653 = vsel %vm4652, %v4636, %v4504
      %v4654 = vsel %vm4652, %v4637, %v4506
      %v4655 = vsel %vm4652, %v4638, %v4508
      %v4656 = vsel %vm4652, %v4639, %v4510
      %v4657 = vsel %vm4652, %v4640, %v4512
      %v4658 = vsel %vm4652, %v4641, %v4514
      %v4659 = vsel %vm4652, %v4642, %v4516
      %v4660 = vsel %vm4652, %v4643, %v4518
      %v4661 = vsel %vm4652, %v4644, %v4520
      %v4662 = vsel %vm4652, %v4645, %v4522
      %v4663 = vsel %vm4652, %v4646, %v4524
      %v4664 = vsel %vm4652, %v4647, %v4526
      %v4665 = vsel %vm4652, %v4648, %v4528
      %v4666 = vsel %vm4652, %v4649, %v4530
      %v4667 = vsel %vm4652, %v4650, %v4532
      %v4668 = vsel %vm4652, %v4651, %v4534
      %v4669 = vpack.c.bf16 %v4654, %v4653
      %v4670 = vpack.c.bf16 %v4656, %v4655
      %v4671 = vpack.c.bf16 %v4658, %v4657
      %v4672 = vpack.c.bf16 %v4660, %v4659
      %v4673 = vpack.c.bf16 %v4662, %v4661
      %v4674 = vpack.c.bf16 %v4664, %v4663
      %v4675 = vpack.c.bf16 %v4666, %v4665
      %v4676 = vpack.c.bf16 %v4668, %v4667
      %v4677 = vld [vmem:[%s2] sm:$0xf]
      %v4678 = vld [vmem:[%s2 + $0x4] sm:$0xf]
      %v4679 = vld [vmem:[%s2 + $0x8] sm:$0xf]
      %v4680 = vld [vmem:[%s2 + $0xc] sm:$0xf]
      %v4681 = vld [vmem:[%s2 + $0x10] sm:$0xf]
      %v4682 = vld [vmem:[%s2 + $0x14] sm:$0xf]
      %v4683 = vld [vmem:[%s2 + $0x18] sm:$0xf]
      %v4684 = vld [vmem:[%s2 + $0x1c] sm:$0xf]
      %v4693 = vunpack.c.l.b16 %v4677
      %v4694 = vunpack.c.l.b16 %v4678
      %v4695 = vunpack.c.l.b16 %v4679
      %v4696 = vunpack.c.l.b16 %v4680
      %v4697 = vunpack.c.l.b16 %v4681
      %v4698 = vunpack.c.l.b16 %v4682
      %v4699 = vunpack.c.l.b16 %v4683
      %v4700 = vunpack.c.l.b16 %v4684
      %v4701 = vpack.c.b16 %v4694, %v4693
      %v4702 = vpack.c.b16 %v4696, %v4695
      %v4703 = vpack.c.b16 %v4698, %v4697
      %v4704 = vpack.c.b16 %v4700, %v4699
      %v4710 = vsel %vm244, %v4669, 0
      %v4713 = vsel %vm244, %v4670, 0
      %v4716 = vsel %vm244, %v4671, 0
      %v4719 = vsel %vm244, %v4672, 0
      %v4722 = vsel %vm244, %v4673, 0
      %v4725 = vsel %vm244, %v4674, 0
      %v4728 = vsel %vm244, %v4675, 0
      %v4731 = vsel %vm244, %v4676, 0
      %4733 = vmatprep.subr.bf16.mxu0 0
      %4734 = vmatpush1.bf16.msra.mxu0 %v4701
      %4735 = vmatprep.subr.bf16.mxu0 0
      %4736 = vmatpush1.bf16.msra.mxu0 %v4702
      %4737 = vmatprep.subr.bf16.mxu0 0
      %4738 = vmatpush1.bf16.msra.mxu0 %v4703
      %4739 = vmatprep.subr.bf16.mxu0 0
      %4740 = vmatpush1.bf16.msra.mxu0 %v4704
      %4741 = vmatprep.subr.bf16.mxu0 0
      %4742 = vmatpush1.bf16.msra.mxu0 0
      %4743 = vmatprep.subr.bf16.mxu0 0
      %4744 = vmatpush1.bf16.msra.mxu0 0
      %4745 = vmatprep.subr.bf16.mxu0 0
      %4746 = vmatpush1.bf16.msra.mxu0 0
      %4747 = vmatprep.subr.bf16.mxu0 0
      %4748 = vmatpush1.bf16.msra.mxu0 0
      %4749 = vmatprep.subr.bf16.mxu0 0
      %4750 = vmatpush1.bf16.msra.mxu0 0
      %4751 = vmatprep.subr.bf16.mxu0 0
      %4752 = vmatpush1.bf16.msra.mxu0 0
      %4753 = vmatprep.subr.bf16.mxu0 0
      %4754 = vmatpush1.bf16.msra.mxu0 0
      %4755 = vmatprep.subr.bf16.mxu0 0
      %4756 = vmatpush1.bf16.msra.mxu0 0
      %4757 = vmatprep.subr.bf16.mxu0 0
      %4758 = vmatpush1.bf16.msra.mxu0 0
      %4759 = vmatprep.subr.bf16.mxu0 0
      %4760 = vmatpush1.bf16.msra.mxu0 0
      %4761 = vmatprep.subr.bf16.mxu0 0
      %4762 = vmatpush1.bf16.msra.mxu0 0
      %4763 = vmatprep.subr.bf16.mxu0 0
      %4764 = vmatpush1.bf16.msra.mxu0 0
      %4765 = vmatprep.mubr.bf16.mxu0 0
      %4766 = vmatmul.mubr.bf16.gmra.mrb[0].mxu0 %v4710
      %v4767 = vpop.f32.mrb[0].mxu0
      %v4768 = vadd.f32 0.0, %v4767
      %v4769 = vpop.f32.mrb[0].mxu0
      %v4770 = vpop.f32.mrb[0].mxu0
      %v4771 = vadd.f32 0.0, %v4770
      %v4772 = vpop.f32.mrb[0].mxu0
      %4773 = vmatprep.mubr.bf16.mxu0 0
      %4774 = vmatmul.mubr.bf16.gmra.mrb[0].mxu0 %v4713
      %v4775 = vpop.f32.mrb[0].mxu0
      %v4776 = vadd.f32 0.0, %v4775
      %v4777 = vpop.f32.mrb[0].mxu0
      %v4778 = vpop.f32.mrb[0].mxu0
      %v4779 = vadd.f32 0.0, %v4778
      %v4780 = vpop.f32.mrb[0].mxu0
      %4781 = vmatprep.mubr.bf16.mxu0 0
      %4782 = vmatmul.mubr.bf16.gmra.mrb[0].mxu0 %v4716
      %v4783 = vpop.f32.mrb[0].mxu0
      %v4784 = vadd.f32 0.0, %v4783
      %v4785 = vpop.f32.mrb[0].mxu0
      %v4786 = vpop.f32.mrb[0].mxu0
      %v4787 = vadd.f32 0.0, %v4786
      %v4788 = vpop.f32.mrb[0].mxu0
      %4789 = vmatprep.mubr.bf16.mxu0 0
      %4790 = vmatmul.mubr.bf16.gmra.mrb[0].mxu0 %v4719
      %v4791 = vpop.f32.mrb[0].mxu0
      %v4792 = vadd.f32 0.0, %v4791
      %v4793 = vpop.f32.mrb[0].mxu0
      %v4794 = vpop.f32.mrb[0].mxu0
      %v4795 = vadd.f32 0.0, %v4794
      %v4796 = vpop.f32.mrb[0].mxu0
      %4797 = vmatprep.mubr.bf16.mxu0 0
      %4798 = vmatmul.mubr.bf16.gmra.mrb[0].mxu0 %v4722
      %v4799 = vpop.f32.mrb[0].mxu0
      %v4800 = vadd.f32 0.0, %v4799
      %v4801 = vpop.f32.mrb[0].mxu0
      %v4802 = vpop.f32.mrb[0].mxu0
      %v4803 = vadd.f32 0.0, %v4802
      %v4804 = vpop.f32.mrb[0].mxu0
      %4805 = vmatprep.mubr.bf16.mxu0 0
      %4806 = vmatmul.mubr.bf16.gmra.mrb[0].mxu0 %v4725
      %v4807 = vpop.f32.mrb[0].mxu0
      %v4808 = vadd.f32 0.0, %v4807
      %v4809 = vpop.f32.mrb[0].mxu0
      %v4810 = vpop.f32.mrb[0].mxu0
      %v4811 = vadd.f32 0.0, %v4810
      %v4812 = vpop.f32.mrb[0].mxu0
      %4813 = vmatprep.mubr.bf16.mxu0 0
      %4814 = vmatmul.mubr.bf16.gmra.mrb[0].mxu0 %v4728
      %v4815 = vpop.f32.mrb[0].mxu0
      %v4816 = vadd.f32 0.0, %v4815
      %v4817 = vpop.f32.mrb[0].mxu0
      %v4818 = vpop.f32.mrb[0].mxu0
      %v4819 = vadd.f32 0.0, %v4818
      %v4820 = vpop.f32.mrb[0].mxu0
      %4821 = vmatprep.mubr.bf16.mxu0 0
      %4822 = vmatmul.mubr.bf16.gmra.mrb[0].mxu0 %v4731
      %v4823 = vpop.f32.mrb[0].mxu0
      %v4824 = vadd.f32 0.0, %v4823
      %v4825 = vpop.f32.mrb[0].mxu0
      %v4826 = vpop.f32.mrb[0].mxu0
      %v4827 = vadd.f32 0.0, %v4826
      %v4828 = vpop.f32.mrb[0].mxu0
      %4829 = vdwg.mxu0
      %4830 = vst.msk [vmem:[%s170] sm:$0xff] %vm244, %v4768
      %4831 = vst.msk [vmem:[%s170 + $0x8] sm:$0xff] %vm244, %v4771
      %4832 = vst.msk [vmem:[%s170 + $0x10] sm:$0xff] %vm244, %v4776
      %4833 = vst.msk [vmem:[%s170 + $0x18] sm:$0xff] %vm244, %v4779
      %4834 = vst.msk [vmem:[%s170 + $0x20] sm:$0xff] %vm244, %v4784
      %4835 = vst.msk [vmem:[%s170 + $0x28] sm:$0xff] %vm244, %v4787
      %4836 = vst.msk [vmem:[%s170 + $0x30] sm:$0xff] %vm244, %v4792
      %4837 = vst.msk [vmem:[%s170 + $0x38] sm:$0xff] %vm244, %v4795
      %4838 = vst.msk [vmem:[%s170 + $0x40] sm:$0xff] %vm244, %v4800
      %4839 = vst.msk [vmem:[%s170 + $0x48] sm:$0xff] %vm244, %v4803
      %4840 = vst.msk [vmem:[%s170 + $0x50] sm:$0xff] %vm244, %v4808
      %4841 = vst.msk [vmem:[%s170 + $0x58] sm:$0xff] %vm244, %v4811
      %4842 = vst.msk [vmem:[%s170 + $0x60] sm:$0xff] %vm244, %v4816
      %4843 = vst.msk [vmem:[%s170 + $0x68] sm:$0xff] %vm244, %v4819
      %4844 = vst.msk [vmem:[%s170 + $0x70] sm:$0xff] %vm244, %v4824
      %4845 = vst.msk [vmem:[%s170 + $0x78] sm:$0xff] %vm244, %v4827
      %p4846 = scmp.lt.s32.totalorder %s14, 1
      %s4847 = scalar_select %p4846, %s14, 1
      %s4848 = smul.addr %s4847, 16
      %s4849 = smul.addr %s4848, 8
      %s4850 = scalar_lea.vmem %s3, %s4849
      // Predicated region
      $region33: #{tpu_custom_call.1} parent=31 // pred_check
        %p4851 = pneg %p100
      $region34: #{tpu_custom_call.1} parent=31 // pred_check_branch
        %4853 = sbr.rel (%p4851) target = $region36
      $region35: #{tpu_custom_call.1} parent=31 // pred_region
        _
      $region36: #{tpu_custom_call.1} parent=31 // pred_fallthru
        _
    $region32: #{tpu_custom_call.1} parent=5 // pred_fallthru
      _
    %p4854 = scmp.le.s32.totalorder 2, %s9
    // Predicated region
    $region37: #{tpu_custom_call.1} parent=5 // pred_check
      %p4855 = pneg %p4854
    $region38: #{tpu_custom_call.1} parent=5 // pred_check_branch
      %4857 = sbr.rel (%p4855) target = $region40
    $region39: #{tpu_custom_call.1} parent=5 // pred_region
      %s4858 = ssub.s32 %s9, 2
      // Predicated region
      $region41: #{tpu_custom_call.1} parent=39 // pred_check
        %p4859 = pneg %p106
      $region42: #{tpu_custom_call.1} parent=39 // pred_check_branch
        %4861 = sbr.rel (%p4859) target = $region44
      $region43: #{tpu_custom_call.1} parent=39 // pred_region
        %p4862 = scmp.lt.s32.totalorder %s15, 1
        %s4863 = scalar_select %p4862, %s15, 1
        %s4864 = smul.addr %s4863, 16
        %s4865 = smul.addr %s4864, 8
        %s4866 = scalar_lea.vmem %s3, %s4865
      $region44: #{tpu_custom_call.1} parent=39 // pred_fallthru
        _
    $region40: #{tpu_custom_call.1} parent=5 // pred_fallthru
      _
  $region6: #{tpu_custom_call.1} parent=0 // loop_footer
    %s13 = sadd.s32 1, %s9
  $region7: #{tpu_custom_call.1} parent=0 // loop_footer_branch
    %8 = sbr.rel target = $region3
  $region8: #{tpu_custom_call.1} parent=0 // loop_exit
    _

</llo_original>
